<compile_context>
chip_gen: v6e
topology: v6e:2x2x1
jax: 0.10.0
libtpu: 0.0.40
codegen_flags: <defaults>
</compile_context>

<pallas_src>
import functools
import numpy as np

import jax
import jax.numpy as jnp
from jax import lax
from jax.experimental import pallas as pl
from jax.experimental.pallas import tpu as pltpu


NEG_INF = -1e9


# ----------------------------- kernel helpers -----------------------------

def _mm(x, w):
    """(M, K) activations x (K, N) bf16 weights -> (M, N) f32 (MXU, f32 acc)."""
    return lax.dot_general(x.astype(jnp.bfloat16), w,
                           (((1,), (0,)), ((), ())),
                           preferred_element_type=jnp.float32)


def _layernorm(x, w, b, eps=1e-5):
    # x: (M, E) f32, w/b: (1, E) f32
    mu = jnp.mean(x, axis=-1, keepdims=True)
    var = jnp.mean((x - mu) ** 2, axis=-1, keepdims=True)
    return (x - mu) * lax.rsqrt(var + eps) * w + b


def _attention(q, k, v, add_mask, n_heads):
    """Exact-flop multi-head attention.

    q:        (B, Tq, E) f32, already scaled by 1/sqrt(Dh) (folded into W_q).
    k, v:     (B, Tk, E) f32.
    add_mask: additive f32, broadcastable to (B, Tq, Tk); shared by all heads.

    Each head's lane-aligned (B, T, Dh) slice goes through two batched
    contractions over Dh (the flash-attention einsum pattern), so the total
    MXU work is exactly B*Tq*Tk*E per matmul pair — no query replication, no
    head masks, no head-sum.  The head loop is a static Python unroll.
    """
    B, Tq, E = q.shape
    H = n_heads
    Dh = E // H
    q16 = q.astype(jnp.bfloat16)
    k16 = k.astype(jnp.bfloat16)
    v16 = v.astype(jnp.bfloat16)

    ctx = []
    for h in range(H):
        sl = slice(h * Dh, (h + 1) * Dh)
        s = jnp.einsum('bqd,bkd->bqk', q16[:, :, sl], k16[:, :, sl],
                       preferred_element_type=jnp.float32)          # (B, Tq, Tk)
        s = s + add_mask
        s = s - jnp.max(s, axis=-1, keepdims=True)
        p = jnp.exp(s)
        p = p * pl.reciprocal(jnp.sum(p, axis=-1, keepdims=True), approx=True)
        ctx.append(jnp.einsum('bqk,bkd->bqd', p.astype(jnp.bfloat16),
                              v16[:, :, sl],
                              preferred_element_type=jnp.float32))   # (B, Tq, Dh)
    return jnp.concatenate(ctx, axis=-1)                             # (B, Tq, E)


# ----------------------------- Pallas kernels -----------------------------

def decoder_stack_kernel(
        tgt_ref, mem_ref, sa_mask_ref, mem_mask_ref,
        sa_qkv_w_ref, sa_qkv_b_ref, sa_out_w_ref, sa_out_b_ref,
        ca_q_w_ref, ca_q_b_ref, ca_kv_w_ref, ca_kv_b_ref,
        ca_out_w_ref, ca_out_b_ref,
        ff1_w_ref, ff1_b_ref, ff2_w_ref, ff2_b_ref,
        n1_w_ref, n1_b_ref, n2_w_ref, n2_b_ref, n3_w_ref, n3_b_ref,
        out_ref, *, n_heads):
    Bt, T, E = out_ref.shape
    S = mem_ref.shape[1]

    # Layer 0 of this batch block: seed the resident activation block with the
    # embedded + positionally-encoded target.
    @pl.when(pl.program_id(1) == 0)
    def _():
        out_ref[...] = tgt_ref[...]

    x = out_ref[...].reshape(Bt * T, E)               # f32, resident across layers
    mem16 = mem_ref[...].reshape(Bt * S, E)           # bf16 (uploaded as bf16)
    sa_mask = sa_mask_ref[...].astype(jnp.float32)    # (Bt, T, T) additive
    mem_mask = mem_mask_ref[...].astype(jnp.float32)  # (Bt, 1, S) additive

    # ---- self-attention block (post-norm, as nn.TransformerDecoderLayer) ----
    qkv = _mm(x, sa_qkv_w_ref[0]) + sa_qkv_b_ref[0]                  # (Bt*T, 3E)
    q = qkv[:, 0 * E:1 * E].reshape(Bt, T, E)
    k = qkv[:, 1 * E:2 * E].reshape(Bt, T, E)
    v = qkv[:, 2 * E:3 * E].reshape(Bt, T, E)
    ctx = _attention(q, k, v, sa_mask, n_heads)
    sa = _mm(ctx.reshape(Bt * T, E), sa_out_w_ref[0]) + sa_out_b_ref[0]
    x = _layernorm(x + sa, n1_w_ref[0], n1_b_ref[0])

    # ---- cross-attention block over encoder memory ----
    q = (_mm(x, ca_q_w_ref[0]) + ca_q_b_ref[0]).reshape(Bt, T, E)
    kv = _mm(mem16, ca_kv_w_ref[0]) + ca_kv_b_ref[0]                 # (Bt*S, 2E)
    k = kv[:, 0 * E:1 * E].reshape(Bt, S, E)
    v = kv[:, 1 * E:2 * E].reshape(Bt, S, E)
    ctx = _attention(q, k, v, mem_mask, n_heads)
    ca = _mm(ctx.reshape(Bt * T, E), ca_out_w_ref[0]) + ca_out_b_ref[0]
    x = _layernorm(x + ca, n2_w_ref[0], n2_b_ref[0])

    # ---- feed-forward block (relu) ----
    h = jnp.maximum(_mm(x, ff1_w_ref[0]) + ff1_b_ref[0], 0.0)
    ff = _mm(h, ff2_w_ref[0]) + ff2_b_ref[0]
    x = _layernorm(x + ff, n3_w_ref[0], n3_b_ref[0])

    out_ref[...] = x.reshape(Bt, T, E)


def out_proj_kernel(x_ref, w_ref, b_ref, o_ref):
    o_ref[...] = lax.dot_general(x_ref[...], w_ref[...],
                                 (((1,), (0,)), ((), ())),
                                 preferred_element_type=jnp.float32) + b_ref[...]


# ----------------------------- pallas_call wrappers -----------------------------

_WEIGHT_ORDER = ['sa_qkv_w', 'sa_qkv_b', 'sa_out_w', 'sa_out_b',
                 'ca_q_w', 'ca_q_b', 'ca_kv_w', 'ca_kv_b',
                 'ca_out_w', 'ca_out_b',
                 'ff1_w', 'ff1_b', 'ff2_w', 'ff2_b',
                 'n1_w', 'n1_b', 'n2_w', 'n2_b', 'n3_w', 'n3_b']


def _vmem_limit_bytes(default=48 * 1024 * 1024):
    """3/4 of physical VMEM: ~96 MiB on v5e/v6e, ~48 MiB on v7x."""
    try:
        info = pltpu.get_tpu_info()
        cap = int(getattr(info, "vmem_capacity_bytes", 0))
        if cap > 0:
            return (cap * 3) // 4
    except Exception:
        pass
    return default


def _batch_spec(shape, b_block):
    """Per-batch-block data: block (b_block, *rest), constant across layers."""
    rest = tuple(shape[1:])
    zeros = (0,) * len(rest)
    return pl.BlockSpec((b_block,) + rest, lambda b, l: (b,) + zeros)


def _layer_spec(shape):
    """Per-layer stacked weights: leading L axis indexed by the layer id."""
    rest = tuple(shape[1:])
    zeros = (0,) * len(rest)
    return pl.BlockSpec((1,) + rest, lambda b, l: (l,) + zeros)


def decoder_stack_call(tgt, mem, sa_mask, mem_mask, layer_weights, n_heads,
                       b_block=None):
    B, T, E = tgt.shape
    L = layer_weights['sa_qkv_w'].shape[0]
    if b_block is None:
        # Two batch blocks when possible -> parallel axis feeds both v7x cores.
        b_block = B // 2 if (B % 2 == 0 and B > 1) else B
    assert B % b_block == 0

    weights = [layer_weights[name] for name in _WEIGHT_ORDER]
    in_specs = ([_batch_spec(tgt.shape, b_block),
                 _batch_spec(mem.shape, b_block),
                 _batch_spec(sa_mask.shape, b_block),
                 _batch_spec(mem_mask.shape, b_block)]
                + [_layer_spec(w.shape) for w in weights])

    kernel = functools.partial(decoder_stack_kernel, n_heads=n_heads)
    return pl.pallas_call(
        kernel,
        out_shape=jax.ShapeDtypeStruct((B, T, E), jnp.float32),
        grid=(B // b_block, L),
        in_specs=in_specs,
        # Constant block index along the layer axis -> activation stays resident
        # in VMEM across all layers of a batch block.
        out_specs=pl.BlockSpec((b_block, T, E), lambda b, l: (b, 0, 0)),
        compiler_params=pltpu.CompilerParams(
            dimension_semantics=("parallel", "arbitrary"),
            vmem_limit_bytes=_vmem_limit_bytes()),
    )(tgt, mem, sa_mask, mem_mask, *weights)


def out_linear_call(x, w, b, *, tm=256, tn=2048):
    # x: (N, E) bf16, w: (E, V) bf16, b: (1, V) f32 -> (N, V) f32
    N, E = x.shape
    V = w.shape[1]
    if N < tm or N % tm:
        tm = N
    if V < tn or V % tn:
        tn = V
    grid = (N // tm, V // tn)
    return pl.pallas_call(
        out_proj_kernel,
        out_shape=jax.ShapeDtypeStruct((N, V), jnp.float32),
        grid=grid,
        in_specs=[pl.BlockSpec((tm, E), lambda i, j: (i, 0)),
                  pl.BlockSpec((E, tn), lambda i, j: (0, j)),
                  pl.BlockSpec((1, tn), lambda i, j: (0, j))],
        out_specs=pl.BlockSpec((tm, tn), lambda i, j: (i, j)),
        compiler_params=pltpu.CompilerParams(
            dimension_semantics=("parallel", "parallel")),
    )(x, w, b)


# ----------------------------- full forward -----------------------------

def transformer_decoder_forward(packed, encoded, encoded_pad_mask,
                                target, target_mask, target_pad_mask, n_heads):
    B, T = target.shape
    E = packed['embedding'].shape[1]
    V = packed['out_w'].shape[1]

    # ---- embedding + positional encoding (dropout p=0.0 -> identity) ----
    emb = jnp.take(packed['embedding'], target, axis=0)              # (B, T, E)
    # Reproduces the original module exactly: x is batch-first but the
    # PositionalEncoding indexes pe by x.size(0) (= batch), i.e. pe[:B, 0, :]
    # broadcast over the sequence dimension.
    tgt = (emb + packed['pe'][:B, :, :]).astype(jnp.float32)

    # ---- bool masks -> small additive masks (bf16 upload, f32 in-kernel) ----
    causal = jnp.where(target_mask, NEG_INF, 0.0).astype(jnp.float32)      # (T, T)
    tpad = jnp.where(target_pad_mask, NEG_INF, 0.0).astype(jnp.float32)    # (B, T)
    sa_mask = (causal[None, :, :] + tpad[:, None, :]).astype(jnp.bfloat16)  # (B,T,T)
    mem_mask = jnp.where(encoded_pad_mask, NEG_INF, 0.0
                         ).astype(jnp.bfloat16)[:, None, :]                # (B,1,S)

    out = decoder_stack_call(tgt, encoded.astype(jnp.bfloat16),
                             sa_mask, mem_mask, packed['layers'], n_heads)

    logits = out_linear_call(out.reshape(B * T, E).astype(jnp.bfloat16),
                             packed['out_w'], packed['out_b'])
    return logits.reshape(B, T, V)


# ----------------------------- pure-JAX reference -----------------------------

def reference_forward(packed, encoded, encoded_pad_mask,
                      target, target_mask, target_pad_mask, n_heads):
    """Same math as the kernels (same packed bf16 weights), plain XLA ops."""
    emb = jnp.take(packed['embedding'], target, axis=0)
    B, T, E = emb.shape
    S = encoded.shape[1]
    H = n_heads
    Dh = E // H
    x = (emb + packed['pe'][:B, :, :]).astype(jnp.float32).reshape(B * T, E)
    mem = encoded.astype(jnp.bfloat16).reshape(B * S, E)

    causal = jnp.where(target_mask, NEG_INF, 0.0).astype(jnp.float32)
    tpad = jnp.where(target_pad_mask, NEG_INF, 0.0).astype(jnp.float32)
    sa_mask = causal[None, :, :] + tpad[:, None, :]
    mem_mask = jnp.where(encoded_pad_mask, NEG_INF, 0.0
                         ).astype(jnp.float32)[:, None, :]

    def mm(a, w):
        return jnp.einsum('mk,kn->mn', a.astype(jnp.bfloat16), w,
                          preferred_element_type=jnp.float32)

    def ln(x, w, b, eps=1e-5):
        mu = jnp.mean(x, -1, keepdims=True)
        var = jnp.mean((x - mu) ** 2, -1, keepdims=True)
        return (x - mu) * lax.rsqrt(var + eps) * w + b

    def attn(q, k, v, m):
        q16, k16, v16 = (t.astype(jnp.bfloat16) for t in (q, k, v))
        ctx = []
        for h in range(H):
            sl = slice(h * Dh, (h + 1) * Dh)
            s = jnp.einsum('bqd,bkd->bqk', q16[..., sl], k16[..., sl],
                           preferred_element_type=jnp.float32) + m
            s = s - jnp.max(s, -1, keepdims=True)
            p = jnp.exp(s)
            p = p / jnp.sum(p, -1, keepdims=True)
            ctx.append(jnp.einsum('bqk,bkd->bqd', p.astype(jnp.bfloat16),
                                  v16[..., sl],
                                  preferred_element_type=jnp.float32))
        return jnp.concatenate(ctx, -1)

    lw = packed['layers']
    for li in range(lw['sa_qkv_w'].shape[0]):
        qkv = mm(x, lw['sa_qkv_w'][li]) + lw['sa_qkv_b'][li]
        q = qkv[:, :E].reshape(B, T, E)
        k = qkv[:, E:2 * E].reshape(B, T, E)
        v = qkv[:, 2 * E:].reshape(B, T, E)
        sa = mm(attn(q, k, v, sa_mask).reshape(B * T, E),
                lw['sa_out_w'][li]) + lw['sa_out_b'][li]
        x = ln(x + sa, lw['n1_w'][li], lw['n1_b'][li])

        q = (mm(x, lw['ca_q_w'][li]) + lw['ca_q_b'][li]).reshape(B, T, E)
        kv = mm(mem, lw['ca_kv_w'][li]) + lw['ca_kv_b'][li]
        k = kv[:, :E].reshape(B, S, E)
        v = kv[:, E:].reshape(B, S, E)
        ca = mm(attn(q, k, v, mem_mask).reshape(B * T, E),
                lw['ca_out_w'][li]) + lw['ca_out_b'][li]
        x = ln(x + ca, lw['n2_w'][li], lw['n2_b'][li])

        h = jnp.maximum(mm(x, lw['ff1_w'][li]) + lw['ff1_b'][li], 0.0)
        ff = mm(h, lw['ff2_w'][li]) + lw['ff2_b'][li]
        x = ln(x + ff, lw['n3_w'][li], lw['n3_b'][li])

    logits = jnp.einsum('me,ev->mv', x.astype(jnp.bfloat16), packed['out_w'],
                        preferred_element_type=jnp.float32) + packed['out_b']
    return logits.reshape(B, T, -1)


# ----------------------------- parameters -----------------------------

def init_params(key, vocab, emb_dim, ff_dim, n_layers, max_len=64):
    """Random parameters in the PyTorch layout (W[out, in])."""
    def nrm(k, shape, scale=0.1):
        return scale * jax.random.normal(k, shape, jnp.float32)

    keys = jax.random.split(key, 4 + n_layers)
    params = {}
    params['embedding'] = jax.random.normal(keys[0], (vocab, emb_dim), jnp.float32)

    # sinusoidal positional encoding, shape (max_len, 1, emb_dim)
    pe = np.zeros((max_len, emb_dim), np.float32)
    position = np.arange(max_len, dtype=np.float32)[:, None]
    div_term = np.exp(np.arange(0, emb_dim, 2, dtype=np.float32)
                      * (-np.log(10000.0) / emb_dim))
    pe[:, 0::2] = np.sin(position * div_term)
    pe[:, 1::2] = np.cos(position * div_term)
    params['pe'] = jnp.asarray(pe[:, None, :])

    layers = []
    for li in range(n_layers):
        lk = jax.random.split(keys[1 + li], 12)
        E, F = emb_dim, ff_dim
        layers.append({
            'sa_in_w': nrm(lk[0], (3 * E, E)), 'sa_in_b': nrm(lk[1], (1, 3 * E)),
            'sa_out_w': nrm(lk[2], (E, E)),    'sa_out_b': nrm(lk[3], (1, E)),
            'ca_in_w': nrm(lk[4], (3 * E, E)), 'ca_in_b': nrm(lk[5], (1, 3 * E)),
            'ca_out_w': nrm(lk[6], (E, E)),    'ca_out_b': nrm(lk[7], (1, E)),
            'ff1_w': nrm(lk[8], (F, E)),       'ff1_b': nrm(lk[9], (1, F)),
            'ff2_w': nrm(lk[10], (E, F)),      'ff2_b': nrm(lk[11], (1, E)),
            'n1_w': jnp.ones((1, E), jnp.float32), 'n1_b': jnp.zeros((1, E), jnp.float32),
            'n2_w': jnp.ones((1, E), jnp.float32), 'n2_b': jnp.zeros((1, E), jnp.float32),
            'n3_w': jnp.ones((1, E), jnp.float32), 'n3_b': jnp.zeros((1, E), jnp.float32),
        })
    params['layers'] = layers
    params['out_w'] = nrm(keys[-2], (vocab, emb_dim))
    params['out_b'] = nrm(keys[-1], (1, vocab))
    return params


def pack_params(params, n_heads):
    """Host-side, one-time packing: transpose to (In, Out), fold 1/sqrt(Dh) into
    the Q projections, cast matmul weights to bf16, stack per-layer weights on a
    leading layer axis (prefetched by the layer grid axis)."""
    E = params['embedding'].shape[1]
    scale = jnp.float32(1.0 / np.sqrt(E // n_heads))
    bf16 = jnp.bfloat16

    def stack(fn):
        return jnp.stack([fn(lp) for lp in params['layers']], axis=0)

    layers = {
        'sa_qkv_w': stack(lambda lp: jnp.concatenate(
            [lp['sa_in_w'][:E].T * scale,
             lp['sa_in_w'][E:2 * E].T,
             lp['sa_in_w'][2 * E:].T], axis=1).astype(bf16)),          # (L, E, 3E)
        'sa_qkv_b': stack(lambda lp: jnp.concatenate(
            [lp['sa_in_b'][:, :E] * scale, lp['sa_in_b'][:, E:]], axis=1)),
        'sa_out_w': stack(lambda lp: lp['sa_out_w'].T.astype(bf16)),
        'sa_out_b': stack(lambda lp: lp['sa_out_b']),
        'ca_q_w':  stack(lambda lp: (lp['ca_in_w'][:E].T * scale).astype(bf16)),
        'ca_q_b':  stack(lambda lp: lp['ca_in_b'][:, :E] * scale),
        'ca_kv_w': stack(lambda lp: lp['ca_in_w'][E:].T.astype(bf16)),  # (L, E, 2E)
        'ca_kv_b': stack(lambda lp: lp['ca_in_b'][:, E:]),
        'ca_out_w': stack(lambda lp: lp['ca_out_w'].T.astype(bf16)),
        'ca_out_b': stack(lambda lp: lp['ca_out_b']),
        'ff1_w': stack(lambda lp: lp['ff1_w'].T.astype(bf16)),          # (L, E, F)
        'ff1_b': stack(lambda lp: lp['ff1_b']),
        'ff2_w': stack(lambda lp: lp['ff2_w'].T.astype(bf16)),          # (L, F, E)
        'ff2_b': stack(lambda lp: lp['ff2_b']),
        'n1_w': stack(lambda lp: lp['n1_w']), 'n1_b': stack(lambda lp: lp['n1_b']),
        'n2_w': stack(lambda lp: lp['n2_w']), 'n2_b': stack(lambda lp: lp['n2_b']),
        'n3_w': stack(lambda lp: lp['n3_w']), 'n3_b': stack(lambda lp: lp['n3_b']),
    }
    return {
        'embedding': params['embedding'],
        'pe': params['pe'],
        'layers': layers,
        'out_w': params['out_w'].T.astype(bf16),                        # (E, V)
        'out_b': params['out_b'],                                       # (1, V)
    }


# ----------------------------- main -----------------------------

if __name__ == "__main__":
    # Small but lane-dense config (Dh = E // H = 128, so every per-head slice,
    # matmul N dim and output store is a multiple of 128 lanes).
    B, T, S = 2, 8, 16                   # batch, target len, encoder (memory) len
    E, F, H, L, V = 256, 512, 2, 2, 512  # emb_dim, dim_feedforward, heads, layers, vocab
    # TODO(synk): sentencepiece tokenizer not reproducible in-script; vocab size
    # is taken as the config constant V.

    key = jax.random.PRNGKey(0)
    kp, ke, kt = jax.random.split(key, 3)

    params = init_params(kp, V, E, F, L)
    packed = pack_params(params, H)

    encoded = jax.random.normal(ke, (B, S, E), jnp.float32)             # encoder output
    target = jax.random.randint(kt, (B, T), 0, V, jnp.int32)            # token ids

    # causal target mask (True = masked), as torch generate_square_subsequent_mask
    target_mask = jnp.asarray(np.triu(np.ones((T, T), dtype=bool), k=1))

    # key padding masks (True = pad position)
    target_pad_mask = np.zeros((B, T), dtype=bool)
    target_pad_mask[1, -2:] = True
    target_pad_mask = jnp.asarray(target_pad_mask)

    encoded_pad_mask = np.zeros((B, S), dtype=bool)
    encoded_pad_mask[0, -4:] = True
    encoded_pad_mask = jnp.asarray(encoded_pad_mask)

    logits = transformer_decoder_forward(
        packed, encoded, encoded_pad_mask, target, target_mask, target_pad_mask, H)
    logits = jax.block_until_ready(logits)

    assert logits.shape == (B, T, V)
    assert bool(jnp.all(jnp.isfinite(logits)))

    # Gross-error check against a pure-JAX reference using the same packed
    # bf16 weights (loose tolerance covers the approx-reciprocal softmax).
    ref = reference_forward(
        packed, encoded, encoded_pad_mask, target, target_mask, target_pad_mask, H)
    ref = jax.block_until_ready(ref)
    assert float(jnp.max(jnp.abs(logits - ref))) < 1e-1

    print("KERNEL_OK")
</pallas_src>

<mosaic_0001>
module attributes {stable_mosaic.version = 11 : i64} {
  func.func @decoder_stack_kernel(%arg0: i32, %arg1: i32, %arg2: memref<1x8x256xf32, #tpu.memory_space<vmem>>, %arg3: memref<1x16x256xbf16, #tpu.memory_space<vmem>>, %arg4: memref<1x8x8xbf16, #tpu.memory_space<vmem>>, %arg5: memref<1x1x16xbf16, #tpu.memory_space<vmem>>, %arg6: memref<1x256x768xbf16, #tpu.memory_space<vmem>>, %arg7: memref<1x1x768xf32, #tpu.memory_space<vmem>>, %arg8: memref<1x256x256xbf16, #tpu.memory_space<vmem>>, %arg9: memref<1x1x256xf32, #tpu.memory_space<vmem>>, %arg10: memref<1x256x256xbf16, #tpu.memory_space<vmem>>, %arg11: memref<1x1x256xf32, #tpu.memory_space<vmem>>, %arg12: memref<1x256x512xbf16, #tpu.memory_space<vmem>>, %arg13: memref<1x1x512xf32, #tpu.memory_space<vmem>>, %arg14: memref<1x256x256xbf16, #tpu.memory_space<vmem>>, %arg15: memref<1x1x256xf32, #tpu.memory_space<vmem>>, %arg16: memref<1x256x512xbf16, #tpu.memory_space<vmem>>, %arg17: memref<1x1x512xf32, #tpu.memory_space<vmem>>, %arg18: memref<1x512x256xbf16, #tpu.memory_space<vmem>>, %arg19: memref<1x1x256xf32, #tpu.memory_space<vmem>>, %arg20: memref<1x1x256xf32, #tpu.memory_space<vmem>>, %arg21: memref<1x1x256xf32, #tpu.memory_space<vmem>>, %arg22: memref<1x1x256xf32, #tpu.memory_space<vmem>>, %arg23: memref<1x1x256xf32, #tpu.memory_space<vmem>>, %arg24: memref<1x1x256xf32, #tpu.memory_space<vmem>>, %arg25: memref<1x1x256xf32, #tpu.memory_space<vmem>>, %arg26: memref<1x8x256xf32, #tpu.memory_space<vmem>>) attributes {dimension_semantics = [#tpu.dimension_semantics<parallel>, #tpu.dimension_semantics<arbitrary>], iteration_bounds = array<i64: 2, 2>, scalar_prefetch = 0 : i64, scratch_operands = 0 : i64, tpu.core_type = #tpu.core_type<tc>, window_params = [{transform_indices = @transform_0, window_bounds = array<i64: 1, 8, 256>}, {transform_indices = @transform_1, window_bounds = array<i64: 1, 16, 256>}, {transform_indices = @transform_2, window_bounds = array<i64: 1, 8, 8>}, {transform_indices = @transform_3, window_bounds = array<i64: 1, 1, 16>}, {transform_indices = @transform_4, window_bounds = array<i64: 1, 256, 768>}, {transform_indices = @transform_5, window_bounds = array<i64: 1, 1, 768>}, {transform_indices = @transform_6, window_bounds = array<i64: 1, 256, 256>}, {transform_indices = @transform_7, window_bounds = array<i64: 1, 1, 256>}, {transform_indices = @transform_8, window_bounds = array<i64: 1, 256, 256>}, {transform_indices = @transform_9, window_bounds = array<i64: 1, 1, 256>}, {transform_indices = @transform_10, window_bounds = array<i64: 1, 256, 512>}, {transform_indices = @transform_11, window_bounds = array<i64: 1, 1, 512>}, {transform_indices = @transform_12, window_bounds = array<i64: 1, 256, 256>}, {transform_indices = @transform_13, window_bounds = array<i64: 1, 1, 256>}, {transform_indices = @transform_14, window_bounds = array<i64: 1, 256, 512>}, {transform_indices = @transform_15, window_bounds = array<i64: 1, 1, 512>}, {transform_indices = @transform_16, window_bounds = array<i64: 1, 512, 256>}, {transform_indices = @transform_17, window_bounds = array<i64: 1, 1, 256>}, {transform_indices = @transform_18, window_bounds = array<i64: 1, 1, 256>}, {transform_indices = @transform_19, window_bounds = array<i64: 1, 1, 256>}, {transform_indices = @transform_20, window_bounds = array<i64: 1, 1, 256>}, {transform_indices = @transform_21, window_bounds = array<i64: 1, 1, 256>}, {transform_indices = @transform_22, window_bounds = array<i64: 1, 1, 256>}, {transform_indices = @transform_23, window_bounds = array<i64: 1, 1, 256>}, {transform_indices = @transform_24, window_bounds = array<i64: 1, 8, 256>}]} {
    %c0_i32 = arith.constant 0 : i32
    %0 = arith.cmpi eq, %arg1, %c0_i32 : i32
    %1 = arith.extui %0 : i1 to i32
    %c0_i32_0 = arith.constant 0 : i32
    %2 = arith.cmpi ne, %1, %c0_i32_0 : i32
    scf.if %2 {
      %c0_113 = arith.constant 0 : index
      %c0_114 = arith.constant 0 : index
      %c0_115 = arith.constant 0 : index
      %242 = vector.load %arg2[%c0_113, %c0_114, %c0_115] : memref<1x8x256xf32, #tpu.memory_space<vmem>>, vector<1x8x256xf32>
      %c0_116 = arith.constant 0 : index
      %c0_117 = arith.constant 0 : index
      %c0_118 = arith.constant 0 : index
      %243 = vector.load %arg26[%c0_116, %c0_117, %c0_118] : memref<1x8x256xf32, #tpu.memory_space<vmem>>, vector<1x8x256xf32>
      tpu.vector_store %arg26[%c0_116, %c0_117, %c0_118], %242 {strides = array<i32>} : memref<1x8x256xf32, #tpu.memory_space<vmem>>, vector<1x8x256xf32>,
    } else {
    }
    %c0 = arith.constant 0 : index
    %c0_1 = arith.constant 0 : index
    %c0_2 = arith.constant 0 : index
    %3 = vector.load %arg26[%c0, %c0_1, %c0_2] : memref<1x8x256xf32, #tpu.memory_space<vmem>>, vector<1x8x256xf32>
    %4 = vector.shape_cast %3 : vector<1x8x256xf32> to vector<8x256xf32>
    %c0_3 = arith.constant 0 : index
    %c0_4 = arith.constant 0 : index
    %c0_5 = arith.constant 0 : index
    %5 = vector.load %arg3[%c0_3, %c0_4, %c0_5] : memref<1x16x256xbf16, #tpu.memory_space<vmem>>, vector<1x16x256xbf16>
    %6 = vector.shape_cast %5 : vector<1x16x256xbf16> to vector<16x256xbf16>
    %c0_6 = arith.constant 0 : index
    %c0_7 = arith.constant 0 : index
    %c0_8 = arith.constant 0 : index
    %7 = vector.load %arg4[%c0_6, %c0_7, %c0_8] : memref<1x8x8xbf16, #tpu.memory_space<vmem>>, vector<1x8x8xbf16>
    %8 = arith.extf %7 : vector<1x8x8xbf16> to vector<1x8x8xf32>
    %c0_9 = arith.constant 0 : index
    %c0_10 = arith.constant 0 : index
    %c0_11 = arith.constant 0 : index
    %9 = vector.load %arg5[%c0_9, %c0_10, %c0_11] : memref<1x1x16xbf16, #tpu.memory_space<vmem>>, vector<1x1x16xbf16>
    %10 = arith.extf %9 : vector<1x1x16xbf16> to vector<1x1x16xf32>
    %c0_12 = arith.constant 0 : index
    %c0_13 = arith.constant 0 : index
    %c0_14 = arith.constant 0 : index
    %11 = vector.load %arg6[%c0_12, %c0_13, %c0_14] : memref<1x256x768xbf16, #tpu.memory_space<vmem>>, vector<1x256x768xbf16>
    %12 = vector.shape_cast %11 : vector<1x256x768xbf16> to vector<256x768xbf16>
    %13 = arith.truncf %4 : vector<8x256xf32> to vector<8x256xbf16>
    %cst = arith.constant dense<0.000000e+00> : vector<8x768xf32>
    %14 = tpu.matmul %13, %12, %cst {dimension_numbers = #tpu.dot_dimension_numbers<[1], [0], [0], [1], [0, 0, 1, 1], [], []>} : vector<8x256xbf16>, vector<256x768xbf16>, vector<8x768xf32> -> vector<8x768xf32>
    %c0_15 = arith.constant 0 : index
    %c0_16 = arith.constant 0 : index
    %c0_17 = arith.constant 0 : index
    %15 = vector.load %arg7[%c0_15, %c0_16, %c0_17] : memref<1x1x768xf32, #tpu.memory_space<vmem>>, vector<1x1x768xf32>
    %16 = vector.shape_cast %15 : vector<1x1x768xf32> to vector<1x768xf32>
    %17 = vector.broadcast %16 : vector<1x768xf32> to vector<8x768xf32>
    %18 = arith.addf %14, %17 : vector<8x768xf32>
    %19 = vector.extract_strided_slice %18 {offsets = [0, 0], sizes = [8, 256], strides = [1, 1]} : vector<8x768xf32> to vector<8x256xf32>
    %20 = vector.shape_cast %19 : vector<8x256xf32> to vector<1x8x256xf32>
    %21 = vector.extract_strided_slice %18 {offsets = [0, 256], sizes = [8, 256], strides = [1, 1]} : vector<8x768xf32> to vector<8x256xf32>
    %22 = vector.shape_cast %21 : vector<8x256xf32> to vector<1x8x256xf32>
    %23 = vector.extract_strided_slice %18 {offsets = [0, 512], sizes = [8, 256], strides = [1, 1]} : vector<8x768xf32> to vector<8x256xf32>
    %24 = vector.shape_cast %23 : vector<8x256xf32> to vector<1x8x256xf32>
    %25 = arith.truncf %20 : vector<1x8x256xf32> to vector<1x8x256xbf16>
    %26 = arith.truncf %22 : vector<1x8x256xf32> to vector<1x8x256xbf16>
    %27 = arith.truncf %24 : vector<1x8x256xf32> to vector<1x8x256xbf16>
    %28 = vector.extract_strided_slice %25 {offsets = [0, 0, 0], sizes = [1, 8, 128], strides = [1, 1, 1]} : vector<1x8x256xbf16> to vector<1x8x128xbf16>
    %29 = vector.extract_strided_slice %26 {offsets = [0, 0, 0], sizes = [1, 8, 128], strides = [1, 1, 1]} : vector<1x8x256xbf16> to vector<1x8x128xbf16>
    "tpu.trace_start"() <{level = 10 : i32, message = "bqd,bkd->bqk"}> : () -> ()
    %cst_18 = arith.constant dense<0.000000e+00> : vector<1x8x8xf32>
    %30 = tpu.matmul %28, %29, %cst_18 {dimension_numbers = #tpu.dot_dimension_numbers<[2], [2], [1], [1], [0, 0, 0, 1, 1, 1], [0], [0]>} : vector<1x8x128xbf16>, vector<1x8x128xbf16>, vector<1x8x8xf32> -> vector<1x8x8xf32>
    "tpu.trace_stop"() : () -> ()
    %31 = arith.addf %30, %8 : vector<1x8x8xf32>
    %cst_19 = arith.constant dense<0xFF800000> : vector<1x8xf32>
    %32 = vector.multi_reduction <maximumf>, %31, %cst_19 [2] : vector<1x8x8xf32> to vector<1x8xf32>
    %33 = vector.shape_cast %32 : vector<1x8xf32> to vector<1x8x1xf32>
    %34 = vector.broadcast %33 : vector<1x8x1xf32> to vector<1x8x8xf32>
    %35 = arith.subf %31, %34 : vector<1x8x8xf32>
    %36 = math.exp %35 : vector<1x8x8xf32>
    %cst_20 = arith.constant dense<0.000000e+00> : vector<1x8xf32>
    %37 = vector.multi_reduction <add>, %36, %cst_20 [2] : vector<1x8x8xf32> to vector<1x8xf32>
    %38 = vector.shape_cast %37 : vector<1x8xf32> to vector<1x8x1xf32>
    %39 = tpu.reciprocal %38 {approx = true} : vector<1x8x1xf32> -> vector<1x8x1xf32>
    %40 = vector.broadcast %39 : vector<1x8x1xf32> to vector<1x8x8xf32>
    %41 = arith.mulf %36, %40 : vector<1x8x8xf32>
    %42 = arith.truncf %41 : vector<1x8x8xf32> to vector<1x8x8xbf16>
    %43 = vector.extract_strided_slice %27 {offsets = [0, 0, 0], sizes = [1, 8, 128], strides = [1, 1, 1]} : vector<1x8x256xbf16> to vector<1x8x128xbf16>
    "tpu.trace_start"() <{level = 10 : i32, message = "bqk,bkd->bqd"}> : () -> ()
    %cst_21 = arith.constant dense<0.000000e+00> : vector<1x8x128xf32>
    %44 = tpu.matmul %42, %43, %cst_21 {dimension_numbers = #tpu.dot_dimension_numbers<[2], [1], [1], [2], [0, 0, 0, 1, 1, 2], [0], [0]>} : vector<1x8x8xbf16>, vector<1x8x128xbf16>, vector<1x8x128xf32> -> vector<1x8x128xf32>
    "tpu.trace_stop"() : () -> ()
    %45 = vector.extract_strided_slice %25 {offsets = [0, 0, 128], sizes = [1, 8, 128], strides = [1, 1, 1]} : vector<1x8x256xbf16> to vector<1x8x128xbf16>
    %46 = vector.extract_strided_slice %26 {offsets = [0, 0, 128], sizes = [1, 8, 128], strides = [1, 1, 1]} : vector<1x8x256xbf16> to vector<1x8x128xbf16>
    "tpu.trace_start"() <{level = 10 : i32, message = "bqd,bkd->bqk"}> : () -> ()
    %cst_22 = arith.constant dense<0.000000e+00> : vector<1x8x8xf32>
    %47 = tpu.matmul %45, %46, %cst_22 {dimension_numbers = #tpu.dot_dimension_numbers<[2], [2], [1], [1], [0, 0, 0, 1, 1, 1], [0], [0]>} : vector<1x8x128xbf16>, vector<1x8x128xbf16>, vector<1x8x8xf32> -> vector<1x8x8xf32>
    "tpu.trace_stop"() : () -> ()
    %48 = arith.addf %47, %8 : vector<1x8x8xf32>
    %cst_23 = arith.constant dense<0xFF800000> : vector<1x8xf32>
    %49 = vector.multi_reduction <maximumf>, %48, %cst_23 [2] : vector<1x8x8xf32> to vector<1x8xf32>
    %50 = vector.shape_cast %49 : vector<1x8xf32> to vector<1x8x1xf32>
    %51 = vector.broadcast %50 : vector<1x8x1xf32> to vector<1x8x8xf32>
    %52 = arith.subf %48, %51 : vector<1x8x8xf32>
    %53 = math.exp %52 : vector<1x8x8xf32>
    %cst_24 = arith.constant dense<0.000000e+00> : vector<1x8xf32>
    %54 = vector.multi_reduction <add>, %53, %cst_24 [2] : vector<1x8x8xf32> to vector<1x8xf32>
    %55 = vector.shape_cast %54 : vector<1x8xf32> to vector<1x8x1xf32>
    %56 = tpu.reciprocal %55 {approx = true} : vector<1x8x1xf32> -> vector<1x8x1xf32>
    %57 = vector.broadcast %56 : vector<1x8x1xf32> to vector<1x8x8xf32>
    %58 = arith.mulf %53, %57 : vector<1x8x8xf32>
    %59 = arith.truncf %58 : vector<1x8x8xf32> to vector<1x8x8xbf16>
    %60 = vector.extract_strided_slice %27 {offsets = [0, 0, 128], sizes = [1, 8, 128], strides = [1, 1, 1]} : vector<1x8x256xbf16> to vector<1x8x128xbf16>
    "tpu.trace_start"() <{level = 10 : i32, message = "bqk,bkd->bqd"}> : () -> ()
    %cst_25 = arith.constant dense<0.000000e+00> : vector<1x8x128xf32>
    %61 = tpu.matmul %59, %60, %cst_25 {dimension_numbers = #tpu.dot_dimension_numbers<[2], [1], [1], [2], [0, 0, 0, 1, 1, 2], [0], [0]>} : vector<1x8x8xbf16>, vector<1x8x128xbf16>, vector<1x8x128xf32> -> vector<1x8x128xf32>
    "tpu.trace_stop"() : () -> ()
    %62 = tpu.concatenate %44, %61 in 2 : vector<1x8x128xf32>, vector<1x8x128xf32> -> vector<1x8x256xf32>
    %63 = vector.shape_cast %62 : vector<1x8x256xf32> to vector<8x256xf32>
    %c0_26 = arith.constant 0 : index
    %c0_27 = arith.constant 0 : index
    %c0_28 = arith.constant 0 : index
    %64 = vector.load %arg8[%c0_26, %c0_27, %c0_28] : memref<1x256x256xbf16, #tpu.memory_space<vmem>>, vector<1x256x256xbf16>
    %65 = vector.shape_cast %64 : vector<1x256x256xbf16> to vector<256x256xbf16>
    %66 = arith.truncf %63 : vector<8x256xf32> to vector<8x256xbf16>
    %cst_29 = arith.constant dense<0.000000e+00> : vector<8x256xf32>
    %67 = tpu.matmul %66, %65, %cst_29 {dimension_numbers = #tpu.dot_dimension_numbers<[1], [0], [0], [1], [0, 0, 1, 1], [], []>} : vector<8x256xbf16>, vector<256x256xbf16>, vector<8x256xf32> -> vector<8x256xf32>
    %c0_30 = arith.constant 0 : index
    %c0_31 = arith.constant 0 : index
    %c0_32 = arith.constant 0 : index
    %68 = vector.load %arg9[%c0_30, %c0_31, %c0_32] : memref<1x1x256xf32, #tpu.memory_space<vmem>>, vector<1x1x256xf32>
    %69 = vector.shape_cast %68 : vector<1x1x256xf32> to vector<1x256xf32>
    %70 = vector.broadcast %69 : vector<1x256xf32> to vector<8x256xf32>
    %71 = arith.addf %67, %70 : vector<8x256xf32>
    %72 = arith.addf %4, %71 : vector<8x256xf32>
    %c0_33 = arith.constant 0 : index
    %c0_34 = arith.constant 0 : index
    %c0_35 = arith.constant 0 : index
    %73 = vector.load %arg20[%c0_33, %c0_34, %c0_35] : memref<1x1x256xf32, #tpu.memory_space<vmem>>, vector<1x1x256xf32>
    %74 = vector.shape_cast %73 : vector<1x1x256xf32> to vector<1x256xf32>
    %c0_36 = arith.constant 0 : index
    %c0_37 = arith.constant 0 : index
    %c0_38 = arith.constant 0 : index
    %75 = vector.load %arg21[%c0_36, %c0_37, %c0_38] : memref<1x1x256xf32, #tpu.memory_space<vmem>>, vector<1x1x256xf32>
    %76 = vector.shape_cast %75 : vector<1x1x256xf32> to vector<1x256xf32>
    %cst_39 = arith.constant dense<0.000000e+00> : vector<8xf32>
    %77 = vector.multi_reduction <add>, %72, %cst_39 [1] : vector<8x256xf32> to vector<8xf32>
    %78 = vector.shape_cast %77 : vector<8xf32> to vector<8x1xf32>
    %cst_40 = arith.constant 2.560000e+02 : f32
    %79 = vector.broadcast %cst_40 : f32 to vector<8x1xf32>
    %80 = arith.divf %78, %79 : vector<8x1xf32>
    %81 = vector.broadcast %80 : vector<8x1xf32> to vector<8x256xf32>
    %82 = arith.subf %72, %81 : vector<8x256xf32>
    %83 = arith.mulf %82, %82 : vector<8x256xf32>
    %cst_41 = arith.constant dense<0.000000e+00> : vector<8xf32>
    %84 = vector.multi_reduction <add>, %83, %cst_41 [1] : vector<8x256xf32> to vector<8xf32>
    %85 = vector.shape_cast %84 : vector<8xf32> to vector<8x1xf32>
    %cst_42 = arith.constant 2.560000e+02 : f32
    %86 = vector.broadcast %cst_42 : f32 to vector<8x1xf32>
    %87 = arith.divf %85, %86 : vector<8x1xf32>
    %88 = vector.broadcast %80 : vector<8x1xf32> to vector<8x256xf32>
    %89 = arith.subf %72, %88 : vector<8x256xf32>
    %cst_43 = arith.constant 9.99999974E-6 : f32
    %90 = vector.broadcast %cst_43 : f32 to vector<8x1xf32>
    %91 = arith.addf %87, %90 : vector<8x1xf32>
    %92 = math.rsqrt %91 : vector<8x1xf32>
    %93 = vector.broadcast %92 : vector<8x1xf32> to vector<8x256xf32>
    %94 = arith.mulf %89, %93 : vector<8x256xf32>
    %95 = vector.broadcast %74 : vector<1x256xf32> to vector<8x256xf32>
    %96 = arith.mulf %94, %95 : vector<8x256xf32>
    %97 = vector.broadcast %76 : vector<1x256xf32> to vector<8x256xf32>
    %98 = arith.addf %96, %97 : vector<8x256xf32>
    %c0_44 = arith.constant 0 : index
    %c0_45 = arith.constant 0 : index
    %c0_46 = arith.constant 0 : index
    %99 = vector.load %arg10[%c0_44, %c0_45, %c0_46] : memref<1x256x256xbf16, #tpu.memory_space<vmem>>, vector<1x256x256xbf16>
    %100 = vector.shape_cast %99 : vector<1x256x256xbf16> to vector<256x256xbf16>
    %101 = arith.truncf %98 : vector<8x256xf32> to vector<8x256xbf16>
    %cst_47 = arith.constant dense<0.000000e+00> : vector<8x256xf32>
    %102 = tpu.matmul %101, %100, %cst_47 {dimension_numbers = #tpu.dot_dimension_numbers<[1], [0], [0], [1], [0, 0, 1, 1], [], []>} : vector<8x256xbf16>, vector<256x256xbf16>, vector<8x256xf32> -> vector<8x256xf32>
    %c0_48 = arith.constant 0 : index
    %c0_49 = arith.constant 0 : index
    %c0_50 = arith.constant 0 : index
    %103 = vector.load %arg11[%c0_48, %c0_49, %c0_50] : memref<1x1x256xf32, #tpu.memory_space<vmem>>, vector<1x1x256xf32>
    %104 = vector.shape_cast %103 : vector<1x1x256xf32> to vector<1x256xf32>
    %105 = vector.broadcast %104 : vector<1x256xf32> to vector<8x256xf32>
    %106 = arith.addf %102, %105 : vector<8x256xf32>
    %107 = vector.shape_cast %106 : vector<8x256xf32> to vector<1x8x256xf32>
    %c0_51 = arith.constant 0 : index
    %c0_52 = arith.constant 0 : index
    %c0_53 = arith.constant 0 : index
    %108 = vector.load %arg12[%c0_51, %c0_52, %c0_53] : memref<1x256x512xbf16, #tpu.memory_space<vmem>>, vector<1x256x512xbf16>
    %109 = vector.shape_cast %108 : vector<1x256x512xbf16> to vector<256x512xbf16>
    %cst_54 = arith.constant dense<0.000000e+00> : vector<16x512xf32>
    %110 = tpu.matmul %6, %109, %cst_54 {dimension_numbers = #tpu.dot_dimension_numbers<[1], [0], [0], [1], [0, 0, 1, 1], [], []>} : vector<16x256xbf16>, vector<256x512xbf16>, vector<16x512xf32> -> vector<16x512xf32>
    %c0_55 = arith.constant 0 : index
    %c0_56 = arith.constant 0 : index
    %c0_57 = arith.constant 0 : index
    %111 = vector.load %arg13[%c0_55, %c0_56, %c0_57] : memref<1x1x512xf32, #tpu.memory_space<vmem>>, vector<1x1x512xf32>
    %112 = vector.shape_cast %111 : vector<1x1x512xf32> to vector<1x512xf32>
    %113 = vector.broadcast %112 : vector<1x512xf32> to vector<16x512xf32>
    %114 = arith.addf %110, %113 : vector<16x512xf32>
    %115 = vector.extract_strided_slice %114 {offsets = [0, 0], sizes = [16, 256], strides = [1, 1]} : vector<16x512xf32> to vector<16x256xf32>
    %116 = vector.shape_cast %115 : vector<16x256xf32> to vector<1x16x256xf32>
    %117 = vector.extract_strided_slice %114 {offsets = [0, 256], sizes = [16, 256], strides = [1, 1]} : vector<16x512xf32> to vector<16x256xf32>
    %118 = vector.shape_cast %117 : vector<16x256xf32> to vector<1x16x256xf32>
    %119 = arith.truncf %107 : vector<1x8x256xf32> to vector<1x8x256xbf16>
    %120 = arith.truncf %116 : vector<1x16x256xf32> to vector<1x16x256xbf16>
    %121 = arith.truncf %118 : vector<1x16x256xf32> to vector<1x16x256xbf16>
    %122 = vector.extract_strided_slice %119 {offsets = [0, 0, 0], sizes = [1, 8, 128], strides = [1, 1, 1]} : vector<1x8x256xbf16> to vector<1x8x128xbf16>
    %123 = vector.extract_strided_slice %120 {offsets = [0, 0, 0], sizes = [1, 16, 128], strides = [1, 1, 1]} : vector<1x16x256xbf16> to vector<1x16x128xbf16>
    "tpu.trace_start"() <{level = 10 : i32, message = "bqd,bkd->bqk"}> : () -> ()
    %cst_58 = arith.constant dense<0.000000e+00> : vector<1x8x16xf32>
    %124 = tpu.matmul %122, %123, %cst_58 {dimension_numbers = #tpu.dot_dimension_numbers<[2], [2], [1], [1], [0, 0, 0, 1, 1, 1], [0], [0]>} : vector<1x8x128xbf16>, vector<1x16x128xbf16>, vector<1x8x16xf32> -> vector<1x8x16xf32>
    "tpu.trace_stop"() : () -> ()
    %125 = vector.broadcast %10 : vector<1x1x16xf32> to vector<1x8x16xf32>
    %126 = arith.addf %124, %125 : vector<1x8x16xf32>
    %cst_59 = arith.constant dense<0xFF800000> : vector<1x8xf32>
    %127 = vector.multi_reduction <maximumf>, %126, %cst_59 [2] : vector<1x8x16xf32> to vector<1x8xf32>
    %128 = vector.shape_cast %127 : vector<1x8xf32> to vector<1x8x1xf32>
    %129 = vector.broadcast %128 : vector<1x8x1xf32> to vector<1x8x16xf32>
    %130 = arith.subf %126, %129 : vector<1x8x16xf32>
    %131 = math.exp %130 : vector<1x8x16xf32>
    %cst_60 = arith.constant dense<0.000000e+00> : vector<1x8xf32>
    %132 = vector.multi_reduction <add>, %131, %cst_60 [2] : vector<1x8x16xf32> to vector<1x8xf32>
    %133 = vector.shape_cast %132 : vector<1x8xf32> to vector<1x8x1xf32>
    %134 = tpu.reciprocal %133 {approx = true} : vector<1x8x1xf32> -> vector<1x8x1xf32>
    %135 = vector.broadcast %134 : vector<1x8x1xf32> to vector<1x8x16xf32>
    %136 = arith.mulf %131, %135 : vector<1x8x16xf32>
    %137 = arith.truncf %136 : vector<1x8x16xf32> to vector<1x8x16xbf16>
    %138 = vector.extract_strided_slice %121 {offsets = [0, 0, 0], sizes = [1, 16, 128], strides = [1, 1, 1]} : vector<1x16x256xbf16> to vector<1x16x128xbf16>
    "tpu.trace_start"() <{level = 10 : i32, message = "bqk,bkd->bqd"}> : () -> ()
    %cst_61 = arith.constant dense<0.000000e+00> : vector<1x8x128xf32>
    %139 = tpu.matmul %137, %138, %cst_61 {dimension_numbers = #tpu.dot_dimension_numbers<[2], [1], [1], [2], [0, 0, 0, 1, 1, 2], [0], [0]>} : vector<1x8x16xbf16>, vector<1x16x128xbf16>, vector<1x8x128xf32> -> vector<1x8x128xf32>
    "tpu.trace_stop"() : () -> ()
    %140 = vector.extract_strided_slice %119 {offsets = [0, 0, 128], sizes = [1, 8, 128], strides = [1, 1, 1]} : vector<1x8x256xbf16> to vector<1x8x128xbf16>
    %141 = vector.extract_strided_slice %120 {offsets = [0, 0, 128], sizes = [1, 16, 128], strides = [1, 1, 1]} : vector<1x16x256xbf16> to vector<1x16x128xbf16>
    "tpu.trace_start"() <{level = 10 : i32, message = "bqd,bkd->bqk"}> : () -> ()
    %cst_62 = arith.constant dense<0.000000e+00> : vector<1x8x16xf32>
    %142 = tpu.matmul %140, %141, %cst_62 {dimension_numbers = #tpu.dot_dimension_numbers<[2], [2], [1], [1], [0, 0, 0, 1, 1, 1], [0], [0]>} : vector<1x8x128xbf16>, vector<1x16x128xbf16>, vector<1x8x16xf32> -> vector<1x8x16xf32>
    "tpu.trace_stop"() : () -> ()
    %143 = vector.broadcast %10 : vector<1x1x16xf32> to vector<1x8x16xf32>
    %144 = arith.addf %142, %143 : vector<1x8x16xf32>
    %cst_63 = arith.constant dense<0xFF800000> : vector<1x8xf32>
    %145 = vector.multi_reduction <maximumf>, %144, %cst_63 [2] : vector<1x8x16xf32> to vector<1x8xf32>
    %146 = vector.shape_cast %145 : vector<1x8xf32> to vector<1x8x1xf32>
    %147 = vector.broadcast %146 : vector<1x8x1xf32> to vector<1x8x16xf32>
    %148 = arith.subf %144, %147 : vector<1x8x16xf32>
    %149 = math.exp %148 : vector<1x8x16xf32>
    %cst_64 = arith.constant dense<0.000000e+00> : vector<1x8xf32>
    %150 = vector.multi_reduction <add>, %149, %cst_64 [2] : vector<1x8x16xf32> to vector<1x8xf32>
    %151 = vector.shape_cast %150 : vector<1x8xf32> to vector<1x8x1xf32>
    %152 = tpu.reciprocal %151 {approx = true} : vector<1x8x1xf32> -> vector<1x8x1xf32>
    %153 = vector.broadcast %152 : vector<1x8x1xf32> to vector<1x8x16xf32>
    %154 = arith.mulf %149, %153 : vector<1x8x16xf32>
    %155 = arith.truncf %154 : vector<1x8x16xf32> to vector<1x8x16xbf16>
    %156 = vector.extract_strided_slice %121 {offsets = [0, 0, 128], sizes = [1, 16, 128], strides = [1, 1, 1]} : vector<1x16x256xbf16> to vector<1x16x128xbf16>
    "tpu.trace_start"() <{level = 10 : i32, message = "bqk,bkd->bqd"}> : () -> ()
    %cst_65 = arith.constant dense<0.000000e+00> : vector<1x8x128xf32>
    %157 = tpu.matmul %155, %156, %cst_65 {dimension_numbers = #tpu.dot_dimension_numbers<[2], [1], [1], [2], [0, 0, 0, 1, 1, 2], [0], [0]>} : vector<1x8x16xbf16>, vector<1x16x128xbf16>, vector<1x8x128xf32> -> vector<1x8x128xf32>
    "tpu.trace_stop"() : () -> ()
    %158 = tpu.concatenate %139, %157 in 2 : vector<1x8x128xf32>, vector<1x8x128xf32> -> vector<1x8x256xf32>
    %159 = vector.shape_cast %158 : vector<1x8x256xf32> to vector<8x256xf32>
    %c0_66 = arith.constant 0 : index
    %c0_67 = arith.constant 0 : index
    %c0_68 = arith.constant 0 : index
    %160 = vector.load %arg14[%c0_66, %c0_67, %c0_68] : memref<1x256x256xbf16, #tpu.memory_space<vmem>>, vector<1x256x256xbf16>
    %161 = vector.shape_cast %160 : vector<1x256x256xbf16> to vector<256x256xbf16>
    %162 = arith.truncf %159 : vector<8x256xf32> to vector<8x256xbf16>
    %cst_69 = arith.constant dense<0.000000e+00> : vector<8x256xf32>
    %163 = tpu.matmul %162, %161, %cst_69 {dimension_numbers = #tpu.dot_dimension_numbers<[1], [0], [0], [1], [0, 0, 1, 1], [], []>} : vector<8x256xbf16>, vector<256x256xbf16>, vector<8x256xf32> -> vector<8x256xf32>
    %c0_70 = arith.constant 0 : index
    %c0_71 = arith.constant 0 : index
    %c0_72 = arith.constant 0 : index
    %164 = vector.load %arg15[%c0_70, %c0_71, %c0_72] : memref<1x1x256xf32, #tpu.memory_space<vmem>>, vector<1x1x256xf32>
    %165 = vector.shape_cast %164 : vector<1x1x256xf32> to vector<1x256xf32>
    %166 = vector.broadcast %165 : vector<1x256xf32> to vector<8x256xf32>
    %167 = arith.addf %163, %166 : vector<8x256xf32>
    %168 = arith.addf %98, %167 : vector<8x256xf32>
    %c0_73 = arith.constant 0 : index
    %c0_74 = arith.constant 0 : index
    %c0_75 = arith.constant 0 : index
    %169 = vector.load %arg22[%c0_73, %c0_74, %c0_75] : memref<1x1x256xf32, #tpu.memory_space<vmem>>, vector<1x1x256xf32>
    %170 = vector.shape_cast %169 : vector<1x1x256xf32> to vector<1x256xf32>
    %c0_76 = arith.constant 0 : index
    %c0_77 = arith.constant 0 : index
    %c0_78 = arith.constant 0 : index
    %171 = vector.load %arg23[%c0_76, %c0_77, %c0_78] : memref<1x1x256xf32, #tpu.memory_space<vmem>>, vector<1x1x256xf32>
    %172 = vector.shape_cast %171 : vector<1x1x256xf32> to vector<1x256xf32>
    %cst_79 = arith.constant dense<0.000000e+00> : vector<8xf32>
    %173 = vector.multi_reduction <add>, %168, %cst_79 [1] : vector<8x256xf32> to vector<8xf32>
    %174 = vector.shape_cast %173 : vector<8xf32> to vector<8x1xf32>
    %cst_80 = arith.constant 2.560000e+02 : f32
    %175 = vector.broadcast %cst_80 : f32 to vector<8x1xf32>
    %176 = arith.divf %174, %175 : vector<8x1xf32>
    %177 = vector.broadcast %176 : vector<8x1xf32> to vector<8x256xf32>
    %178 = arith.subf %168, %177 : vector<8x256xf32>
    %179 = arith.mulf %178, %178 : vector<8x256xf32>
    %cst_81 = arith.constant dense<0.000000e+00> : vector<8xf32>
    %180 = vector.multi_reduction <add>, %179, %cst_81 [1] : vector<8x256xf32> to vector<8xf32>
    %181 = vector.shape_cast %180 : vector<8xf32> to vector<8x1xf32>
    %cst_82 = arith.constant 2.560000e+02 : f32
    %182 = vector.broadcast %cst_82 : f32 to vector<8x1xf32>
    %183 = arith.divf %181, %182 : vector<8x1xf32>
    %184 = vector.broadcast %176 : vector<8x1xf32> to vector<8x256xf32>
    %185 = arith.subf %168, %184 : vector<8x256xf32>
    %cst_83 = arith.constant 9.99999974E-6 : f32
    %186 = vector.broadcast %cst_83 : f32 to vector<8x1xf32>
    %187 = arith.addf %183, %186 : vector<8x1xf32>
    %188 = math.rsqrt %187 : vector<8x1xf32>
    %189 = vector.broadcast %188 : vector<8x1xf32> to vector<8x256xf32>
    %190 = arith.mulf %185, %189 : vector<8x256xf32>
    %191 = vector.broadcast %170 : vector<1x256xf32> to vector<8x256xf32>
    %192 = arith.mulf %190, %191 : vector<8x256xf32>
    %193 = vector.broadcast %172 : vector<1x256xf32> to vector<8x256xf32>
    %194 = arith.addf %192, %193 : vector<8x256xf32>
    %c0_84 = arith.constant 0 : index
    %c0_85 = arith.constant 0 : index
    %c0_86 = arith.constant 0 : index
    %195 = vector.load %arg16[%c0_84, %c0_85, %c0_86] : memref<1x256x512xbf16, #tpu.memory_space<vmem>>, vector<1x256x512xbf16>
    %196 = vector.shape_cast %195 : vector<1x256x512xbf16> to vector<256x512xbf16>
    %197 = arith.truncf %194 : vector<8x256xf32> to vector<8x256xbf16>
    %cst_87 = arith.constant dense<0.000000e+00> : vector<8x512xf32>
    %198 = tpu.matmul %197, %196, %cst_87 {dimension_numbers = #tpu.dot_dimension_numbers<[1], [0], [0], [1], [0, 0, 1, 1], [], []>} : vector<8x256xbf16>, vector<256x512xbf16>, vector<8x512xf32> -> vector<8x512xf32>
    %c0_88 = arith.constant 0 : index
    %c0_89 = arith.constant 0 : index
    %c0_90 = arith.constant 0 : index
    %199 = vector.load %arg17[%c0_88, %c0_89, %c0_90] : memref<1x1x512xf32, #tpu.memory_space<vmem>>, vector<1x1x512xf32>
    %200 = vector.shape_cast %199 : vector<1x1x512xf32> to vector<1x512xf32>
    %201 = vector.broadcast %200 : vector<1x512xf32> to vector<8x512xf32>
    %202 = arith.addf %198, %201 : vector<8x512xf32>
    %cst_91 = arith.constant 0.000000e+00 : f32
    %203 = vector.broadcast %cst_91 : f32 to vector<8x512xf32>
    %204 = arith.maximumf %202, %203 : vector<8x512xf32>
    %c0_92 = arith.constant 0 : index
    %c0_93 = arith.constant 0 : index
    %c0_94 = arith.constant 0 : index
    %205 = vector.load %arg18[%c0_92, %c0_93, %c0_94] : memref<1x512x256xbf16, #tpu.memory_space<vmem>>, vector<1x512x256xbf16>
    %206 = vector.shape_cast %205 : vector<1x512x256xbf16> to vector<512x256xbf16>
    %207 = arith.truncf %204 : vector<8x512xf32> to vector<8x512xbf16>
    %cst_95 = arith.constant dense<0.000000e+00> : vector<8x256xf32>
    %208 = tpu.matmul %207, %206, %cst_95 {dimension_numbers = #tpu.dot_dimension_numbers<[1], [0], [0], [1], [0, 0, 1, 1], [], []>} : vector<8x512xbf16>, vector<512x256xbf16>, vector<8x256xf32> -> vector<8x256xf32>
    %c0_96 = arith.constant 0 : index
    %c0_97 = arith.constant 0 : index
    %c0_98 = arith.constant 0 : index
    %209 = vector.load %arg19[%c0_96, %c0_97, %c0_98] : memref<1x1x256xf32, #tpu.memory_space<vmem>>, vector<1x1x256xf32>
    %210 = vector.shape_cast %209 : vector<1x1x256xf32> to vector<1x256xf32>
    %211 = vector.broadcast %210 : vector<1x256xf32> to vector<8x256xf32>
    %212 = arith.addf %208, %211 : vector<8x256xf32>
    %213 = arith.addf %194, %212 : vector<8x256xf32>
    %c0_99 = arith.constant 0 : index
    %c0_100 = arith.constant 0 : index
    %c0_101 = arith.constant 0 : index
    %214 = vector.load %arg24[%c0_99, %c0_100, %c0_101] : memref<1x1x256xf32, #tpu.memory_space<vmem>>, vector<1x1x256xf32>
    %215 = vector.shape_cast %214 : vector<1x1x256xf32> to vector<1x256xf32>
    %c0_102 = arith.constant 0 : index
    %c0_103 = arith.constant 0 : index
    %c0_104 = arith.constant 0 : index
    %216 = vector.load %arg25[%c0_102, %c0_103, %c0_104] : memref<1x1x256xf32, #tpu.memory_space<vmem>>, vector<1x1x256xf32>
    %217 = vector.shape_cast %216 : vector<1x1x256xf32> to vector<1x256xf32>
    %cst_105 = arith.constant dense<0.000000e+00> : vector<8xf32>
    %218 = vector.multi_reduction <add>, %213, %cst_105 [1] : vector<8x256xf32> to vector<8xf32>
    %219 = vector.shape_cast %218 : vector<8xf32> to vector<8x1xf32>
    %cst_106 = arith.constant 2.560000e+02 : f32
    %220 = vector.broadcast %cst_106 : f32 to vector<8x1xf32>
    %221 = arith.divf %219, %220 : vector<8x1xf32>
    %222 = vector.broadcast %221 : vector<8x1xf32> to vector<8x256xf32>
    %223 = arith.subf %213, %222 : vector<8x256xf32>
    %224 = arith.mulf %223, %223 : vector<8x256xf32>
    %cst_107 = arith.constant dense<0.000000e+00> : vector<8xf32>
    %225 = vector.multi_reduction <add>, %224, %cst_107 [1] : vector<8x256xf32> to vector<8xf32>
    %226 = vector.shape_cast %225 : vector<8xf32> to vector<8x1xf32>
    %cst_108 = arith.constant 2.560000e+02 : f32
    %227 = vector.broadcast %cst_108 : f32 to vector<8x1xf32>
    %228 = arith.divf %226, %227 : vector<8x1xf32>
    %229 = vector.broadcast %221 : vector<8x1xf32> to vector<8x256xf32>
    %230 = arith.subf %213, %229 : vector<8x256xf32>
    %cst_109 = arith.constant 9.99999974E-6 : f32
    %231 = vector.broadcast %cst_109 : f32 to vector<8x1xf32>
    %232 = arith.addf %228, %231 : vector<8x1xf32>
    %233 = math.rsqrt %232 : vector<8x1xf32>
    %234 = vector.broadcast %233 : vector<8x1xf32> to vector<8x256xf32>
    %235 = arith.mulf %230, %234 : vector<8x256xf32>
    %236 = vector.broadcast %215 : vector<1x256xf32> to vector<8x256xf32>
    %237 = arith.mulf %235, %236 : vector<8x256xf32>
    %238 = vector.broadcast %217 : vector<1x256xf32> to vector<8x256xf32>
    %239 = arith.addf %237, %238 : vector<8x256xf32>
    %240 = vector.shape_cast %239 : vector<8x256xf32> to vector<1x8x256xf32>
    %c0_110 = arith.constant 0 : index
    %c0_111 = arith.constant 0 : index
    %c0_112 = arith.constant 0 : index
    %241 = vector.load %arg26[%c0_110, %c0_111, %c0_112] : memref<1x8x256xf32, #tpu.memory_space<vmem>>, vector<1x8x256xf32>
    tpu.vector_store %arg26[%c0_110, %c0_111, %c0_112], %240 {strides = array<i32>} : memref<1x8x256xf32, #tpu.memory_space<vmem>>, vector<1x8x256xf32>,
    return
  }
  func.func @transform_0(%arg0: i32, %arg1: i32) -> (i32, i32, i32) {
    %c0_i32 = arith.constant 0 : i32
    %c0_i32_0 = arith.constant 0 : i32
    %c0_i32_1 = arith.constant 0 : i32
    return %arg0, %c0_i32, %c0_i32_0 : i32, i32, i32
  }
  func.func @transform_1(%arg0: i32, %arg1: i32) -> (i32, i32, i32) {
    %c0_i32 = arith.constant 0 : i32
    %c0_i32_0 = arith.constant 0 : i32
    %c0_i32_1 = arith.constant 0 : i32
    return %arg0, %c0_i32, %c0_i32_0 : i32, i32, i32
  }
  func.func @transform_2(%arg0: i32, %arg1: i32) -> (i32, i32, i32) {
    %c0_i32 = arith.constant 0 : i32
    %c0_i32_0 = arith.constant 0 : i32
    %c0_i32_1 = arith.constant 0 : i32
    return %arg0, %c0_i32, %c0_i32_0 : i32, i32, i32
  }
  func.func @transform_3(%arg0: i32, %arg1: i32) -> (i32, i32, i32) {
    %c0_i32 = arith.constant 0 : i32
    %c0_i32_0 = arith.constant 0 : i32
    %c0_i32_1 = arith.constant 0 : i32
    return %arg0, %c0_i32, %c0_i32_0 : i32, i32, i32
  }
  func.func @transform_4(%arg0: i32, %arg1: i32) -> (i32, i32, i32) {
    %c0_i32 = arith.constant 0 : i32
    %c0_i32_0 = arith.constant 0 : i32
    %c0_i32_1 = arith.constant 0 : i32
    return %arg1, %c0_i32, %c0_i32_0 : i32, i32, i32
  }
  func.func @transform_5(%arg0: i32, %arg1: i32) -> (i32, i32, i32) {
    %c0_i32 = arith.constant 0 : i32
    %c0_i32_0 = arith.constant 0 : i32
    %c0_i32_1 = arith.constant 0 : i32
    return %arg1, %c0_i32, %c0_i32_0 : i32, i32, i32
  }
  func.func @transform_6(%arg0: i32, %arg1: i32) -> (i32, i32, i32) {
    %c0_i32 = arith.constant 0 : i32
    %c0_i32_0 = arith.constant 0 : i32
    %c0_i32_1 = arith.constant 0 : i32
    return %arg1, %c0_i32, %c0_i32_0 : i32, i32, i32
  }
  func.func @transform_7(%arg0: i32, %arg1: i32) -> (i32, i32, i32) {
    %c0_i32 = arith.constant 0 : i32
    %c0_i32_0 = arith.constant 0 : i32
    %c0_i32_1 = arith.constant 0 : i32
    return %arg1, %c0_i32, %c0_i32_0 : i32, i32, i32
  }
  func.func @transform_8(%arg0: i32, %arg1: i32) -> (i32, i32, i32) {
    %c0_i32 = arith.constant 0 : i32
    %c0_i32_0 = arith.constant 0 : i32
    %c0_i32_1 = arith.constant 0 : i32
    return %arg1, %c0_i32, %c0_i32_0 : i32, i32, i32
  }
  func.func @transform_9(%arg0: i32, %arg1: i32) -> (i32, i32, i32) {
    %c0_i32 = arith.constant 0 : i32
    %c0_i32_0 = arith.constant 0 : i32
    %c0_i32_1 = arith.constant 0 : i32
    return %arg1, %c0_i32, %c0_i32_0 : i32, i32, i32
  }
  func.func @transform_10(%arg0: i32, %arg1: i32) -> (i32, i32, i32) {
    %c0_i32 = arith.constant 0 : i32
    %c0_i32_0 = arith.constant 0 : i32
    %c0_i32_1 = arith.constant 0 : i32
    return %arg1, %c0_i32, %c0_i32_0 : i32, i32, i32
  }
  func.func @transform_11(%arg0: i32, %arg1: i32) -> (i32, i32, i32) {
    %c0_i32 = arith.constant 0 : i32
    %c0_i32_0 = arith.constant 0 : i32
    %c0_i32_1 = arith.constant 0 : i32
    return %arg1, %c0_i32, %c0_i32_0 : i32, i32, i32
  }
  func.func @transform_12(%arg0: i32, %arg1: i32) -> (i32, i32, i32) {
    %c0_i32 = arith.constant 0 : i32
    %c0_i32_0 = arith.constant 0 : i32
    %c0_i32_1 = arith.constant 0 : i32
    return %arg1, %c0_i32, %c0_i32_0 : i32, i32, i32
  }
  func.func @transform_13(%arg0: i32, %arg1: i32) -> (i32, i32, i32) {
    %c0_i32 = arith.constant 0 : i32
    %c0_i32_0 = arith.constant 0 : i32
    %c0_i32_1 = arith.constant 0 : i32
    return %arg1, %c0_i32, %c0_i32_0 : i32, i32, i32
  }
  func.func @transform_14(%arg0: i32, %arg1: i32) -> (i32, i32, i32) {
    %c0_i32 = arith.constant 0 : i32
    %c0_i32_0 = arith.constant 0 : i32
    %c0_i32_1 = arith.constant 0 : i32
    return %arg1, %c0_i32, %c0_i32_0 : i32, i32, i32
  }
  func.func @transform_15(%arg0: i32, %arg1: i32) -> (i32, i32, i32) {
    %c0_i32 = arith.constant 0 : i32
    %c0_i32_0 = arith.constant 0 : i32
    %c0_i32_1 = arith.constant 0 : i32
    return %arg1, %c0_i32, %c0_i32_0 : i32, i32, i32
  }
  func.func @transform_16(%arg0: i32, %arg1: i32) -> (i32, i32, i32) {
    %c0_i32 = arith.constant 0 : i32
    %c0_i32_0 = arith.constant 0 : i32
    %c0_i32_1 = arith.constant 0 : i32
    return %arg1, %c0_i32, %c0_i32_0 : i32, i32, i32
  }
  func.func @transform_17(%arg0: i32, %arg1: i32) -> (i32, i32, i32) {
    %c0_i32 = arith.constant 0 : i32
    %c0_i32_0 = arith.constant 0 : i32
    %c0_i32_1 = arith.constant 0 : i32
    return %arg1, %c0_i32, %c0_i32_0 : i32, i32, i32
  }
  func.func @transform_18(%arg0: i32, %arg1: i32) -> (i32, i32, i32) {
    %c0_i32 = arith.constant 0 : i32
    %c0_i32_0 = arith.constant 0 : i32
    %c0_i32_1 = arith.constant 0 : i32
    return %arg1, %c0_i32, %c0_i32_0 : i32, i32, i32
  }
  func.func @transform_19(%arg0: i32, %arg1: i32) -> (i32, i32, i32) {
    %c0_i32 = arith.constant 0 : i32
    %c0_i32_0 = arith.constant 0 : i32
    %c0_i32_1 = arith.constant 0 : i32
    return %arg1, %c0_i32, %c0_i32_0 : i32, i32, i32
  }
  func.func @transform_20(%arg0: i32, %arg1: i32) -> (i32, i32, i32) {
    %c0_i32 = arith.constant 0 : i32
    %c0_i32_0 = arith.constant 0 : i32
    %c0_i32_1 = arith.constant 0 : i32
    return %arg1, %c0_i32, %c0_i32_0 : i32, i32, i32
  }
  func.func @transform_21(%arg0: i32, %arg1: i32) -> (i32, i32, i32) {
    %c0_i32 = arith.constant 0 : i32
    %c0_i32_0 = arith.constant 0 : i32
    %c0_i32_1 = arith.constant 0 : i32
    return %arg1, %c0_i32, %c0_i32_0 : i32, i32, i32
  }
  func.func @transform_22(%arg0: i32, %arg1: i32) -> (i32, i32, i32) {
    %c0_i32 = arith.constant 0 : i32
    %c0_i32_0 = arith.constant 0 : i32
    %c0_i32_1 = arith.constant 0 : i32
    return %arg1, %c0_i32, %c0_i32_0 : i32, i32, i32
  }
  func.func @transform_23(%arg0: i32, %arg1: i32) -> (i32, i32, i32) {
    %c0_i32 = arith.constant 0 : i32
    %c0_i32_0 = arith.constant 0 : i32
    %c0_i32_1 = arith.constant 0 : i32
    return %arg1, %c0_i32, %c0_i32_0 : i32, i32, i32
  }
  func.func @transform_24(%arg0: i32, %arg1: i32) -> (i32, i32, i32) {
    %c0_i32 = arith.constant 0 : i32
    %c0_i32_0 = arith.constant 0 : i32
    %c0_i32_1 = arith.constant 0 : i32
    return %arg0, %c0_i32, %c0_i32_0 : i32, i32, i32
  }
}

</mosaic_0001>

<llo_original>
// kernel: tpu_custom_call.1
$region0: #{tpu_custom_call.1}
  #allocation0 [shape = 'u32[]', space=smem, size = 0x4, offset = 0x4, fixed_abs, tag = 'smem constant byte address 0x4 - core index']
  #allocation1 [shape = 'u32[144,128]{1,0:T(1,128)}', space=vmem, size = 0x12000, scoped, tag = 'internal scratch']
  %s0 = inlined_call_operand.hbm [shape: f32[2,8,256], index: 0, kind: input, shape index: {}]
  %s1 = inlined_call_operand.hbm [shape: bf16[2,16,256], index: 1, kind: input, shape index: {}]
  %s2 = inlined_call_operand.hbm [shape: bf16[2,8,8], index: 2, kind: input, shape index: {}]
  %s3 = inlined_call_operand.vmem [shape: bf16[2,1,16], index: 3, kind: input, shape index: {}]
  %s4 = inlined_call_operand.hbm [shape: bf16[2,256,768], index: 4, kind: input, shape index: {}]
  %s5 = inlined_call_operand.vmem [shape: f32[2,1,768], index: 5, kind: input, shape index: {}]
  %s6 = inlined_call_operand.hbm [shape: bf16[2,256,256], index: 6, kind: input, shape index: {}]
  %s7 = inlined_call_operand.hbm [shape: f32[2,1,256], index: 7, kind: input, shape index: {}]
  %s8 = inlined_call_operand.hbm [shape: bf16[2,256,256], index: 8, kind: input, shape index: {}]
  %s9 = inlined_call_operand.hbm [shape: f32[2,1,256], index: 9, kind: input, shape index: {}]
  %s10 = inlined_call_operand.hbm [shape: bf16[2,256,512], index: 10, kind: input, shape index: {}]
  %s11 = inlined_call_operand.vmem [shape: f32[2,1,512], index: 11, kind: input, shape index: {}]
  %s12 = inlined_call_operand.hbm [shape: bf16[2,256,256], index: 12, kind: input, shape index: {}]
  %s13 = inlined_call_operand.hbm [shape: f32[2,1,256], index: 13, kind: input, shape index: {}]
  %s14 = inlined_call_operand.hbm [shape: bf16[2,256,512], index: 14, kind: input, shape index: {}]
  %s15 = inlined_call_operand.vmem [shape: f32[2,1,512], index: 15, kind: input, shape index: {}]
  %s16 = inlined_call_operand.hbm [shape: bf16[2,512,256], index: 16, kind: input, shape index: {}]
  %s17 = inlined_call_operand.vmem [shape: f32[2,1,256], index: 17, kind: input, shape index: {}]
  %s18 = inlined_call_operand.hbm [shape: f32[2,1,256], index: 18, kind: input, shape index: {}]
  %s19 = inlined_call_operand.vmem [shape: f32[2,1,256], index: 19, kind: input, shape index: {}]
  %s20 = inlined_call_operand.hbm [shape: f32[2,1,256], index: 20, kind: input, shape index: {}]
  %s21 = inlined_call_operand.vmem [shape: f32[2,1,256], index: 21, kind: input, shape index: {}]
  %s22 = inlined_call_operand.hbm [shape: f32[2,1,256], index: 22, kind: input, shape index: {}]
  %s23 = inlined_call_operand.vmem [shape: f32[2,1,256], index: 23, kind: input, shape index: {}]
  %s24 = inlined_call_operand.hbm [shape: f32[2,8,256], index: 24, kind: output, shape index: {}]
  %s25 = sld [smem:[#allocation0]]
  $region197: #{tpu_custom_call.1} parent=0
    _
  %s27 = ssub.s32 1, %s25
  %s28 = scalar_select 0, %s27, %s25
  $region1: #{tpu_custom_call.1} parent=0
    #allocation2 [shape = 'u8[16384]{0}', space=vmem, size = 0x4000, scoped, tag = 'input window, operand 0']
    #allocation3 [shape = 's32[2]{0}', space=sflag, size = 0x8, scoped, tag = 'scoped memory for tpu_custom_call.1']
    #allocation4 [shape = 's32[2]{0}', space=sflag, size = 0x8, scoped, tag = 'scoped memory for tpu_custom_call.1']
    #allocation5 [shape = 'u8[16384]{0}', space=vmem, size = 0x4000, scoped, tag = 'input window, operand 1']
    #allocation6 [shape = 's32[2]{0}', space=sflag, size = 0x8, scoped, tag = 'scoped memory for tpu_custom_call.1']
    #allocation7 [shape = 'u8[4096]{0}', space=vmem, size = 0x1000, scoped, tag = 'input window, operand 2']
    #allocation8 [shape = 'u8[786432]{0}', space=vmem, size = 0xc0000, scoped, tag = 'input window, operand 4']
    #allocation9 [shape = 's32[2]{0}', space=sflag, size = 0x8, scoped, tag = 'scoped memory for tpu_custom_call.1']
    #allocation10 [shape = 'u8[262144]{0}', space=vmem, size = 0x40000, scoped, tag = 'input window, operand 6']
    #allocation11 [shape = 'u8[2048]{0}', space=vmem, size = 0x800, scoped, tag = 'input window, operand 7']
    #allocation12 [shape = 's32[2]{0}', space=sflag, size = 0x8, scoped, tag = 'scoped memory for tpu_custom_call.1']
    #allocation13 [shape = 'u8[262144]{0}', space=vmem, size = 0x40000, scoped, tag = 'input window, operand 8']
    #allocation14 [shape = 'u8[2048]{0}', space=vmem, size = 0x800, scoped, tag = 'input window, operand 9']
    #allocation15 [shape = 's32[2]{0}', space=sflag, size = 0x8, scoped, tag = 'scoped memory for tpu_custom_call.1']
    #allocation16 [shape = 'u8[524288]{0}', space=vmem, size = 0x80000, scoped, tag = 'input window, operand 10']
    #allocation17 [shape = 'u8[262144]{0}', space=vmem, size = 0x40000, scoped, tag = 'input window, operand 12']
    #allocation18 [shape = 's32[2]{0}', space=sflag, size = 0x8, scoped, tag = 'scoped memory for tpu_custom_call.1']
    #allocation19 [shape = 'u8[2048]{0}', space=vmem, size = 0x800, scoped, tag = 'input window, operand 13']
    #allocation20 [shape = 'u8[524288]{0}', space=vmem, size = 0x80000, scoped, tag = 'input window, operand 14']
    #allocation21 [shape = 's32[2]{0}', space=sflag, size = 0x8, scoped, tag = 'scoped memory for tpu_custom_call.1']
    #allocation22 [shape = 'u8[524288]{0}', space=vmem, size = 0x80000, scoped, tag = 'input window, operand 16']
    #allocation23 [shape = 'u8[2048]{0}', space=vmem, size = 0x800, scoped, tag = 'input window, operand 18']
    #allocation24 [shape = 's32[2]{0}', space=sflag, size = 0x8, scoped, tag = 'scoped memory for tpu_custom_call.1']
    #allocation25 [shape = 'u8[2048]{0}', space=vmem, size = 0x800, scoped, tag = 'input window, operand 20']
    #allocation26 [shape = 'u8[2048]{0}', space=vmem, size = 0x800, scoped, tag = 'input window, operand 22']
    #allocation27 [shape = 's32[2]{0}', space=sflag, size = 0x8, scoped, tag = 'scoped memory for tpu_custom_call.1']
    #allocation28 [shape = 'u8[16384]{0}', space=vmem, size = 0x4000, scoped, tag = 'output window, operand 0']
    %29 = vsyncpa [#allocation3], 0
    %s30 = scalar_lea.sflag [#allocation3], 1
    %31 = vsyncpa %s30, 0
    %32 = vsyncpa [#allocation6], 0
    %s33 = scalar_lea.sflag [#allocation6], 1
    %34 = vsyncpa %s33, 0
    %35 = vsyncpa [#allocation9], 0
    %s36 = scalar_lea.sflag [#allocation9], 1
    %37 = vsyncpa %s36, 0
    %38 = vsyncpa [#allocation12], 0
    %s39 = scalar_lea.sflag [#allocation12], 1
    %40 = vsyncpa %s39, 0
    %41 = vsyncpa [#allocation15], 0
    %s42 = scalar_lea.sflag [#allocation15], 1
    %43 = vsyncpa %s42, 0
    %44 = vsyncpa [#allocation18], 0
    %s45 = scalar_lea.sflag [#allocation18], 1
    %46 = vsyncpa %s45, 0
    %47 = vsyncpa [#allocation21], 0
    %s48 = scalar_lea.sflag [#allocation21], 1
    %49 = vsyncpa %s48, 0
    %50 = vsyncpa [#allocation24], 0
    %s51 = scalar_lea.sflag [#allocation24], 1
    %52 = vsyncpa %s51, 0
    %53 = vsyncpa [#allocation27], 0
    %s54 = scalar_lea.sflag [#allocation27], 1
    %55 = vsyncpa %s54, 0
    %56 = vsyncpa [#allocation4], 0
    %s57 = scalar_lea.sflag [#allocation4], 1
    %58 = vsyncpa %s57, 0
    loop: start=0, step=1, limit=6
    $region2: #{tpu_custom_call.1} parent=1 // loop_pre_header
      _
    $region3: #{tpu_custom_call.1} parent=1 // loop_header
      %s60 = sphi 0, %s64
      %p61 = scmp.ge.s32.totalorder %s60, 6
      %s67 = sphi 0, %s79
      %s68 = sphi 0, %s75
      %s69 = sphi 0, %s67
      %s70 = sphi 0, %s68
      %s71 = sphi 0, %s69
      %s72 = sphi 0, %s70
      %s82 = sphi 0, %s84
      %s85 = sphi 0, %s82
      %s86 = sphi 0, %s85
      %s102 = sphi 0, %s86
      %s108 = sphi 0, %s110
      %s111 = sphi 0, %s108
      %s112 = sphi 0, %s111
      %s128 = sphi 0, %s112
      %s134 = sphi 0, %s136
      %s137 = sphi 0, %s134
      %s138 = sphi 0, %s137
      %s154 = sphi 0, %s138
      %s160 = sphi 0, %s162
      %s163 = sphi 0, %s160
      %s164 = sphi 0, %s163
      %s180 = sphi 0, %s164
      %s186 = sphi 0, %s188
      %s189 = sphi 0, %s186
      %s190 = sphi 0, %s189
      %s206 = sphi 0, %s190
      %s212 = sphi 0, %s214
      %s215 = sphi 0, %s212
      %s216 = sphi 0, %s215
      %s232 = sphi 0, %s216
      %s238 = sphi 0, %s240
      %s241 = sphi 0, %s238
      %s242 = sphi 0, %s241
      %s258 = sphi 0, %s242
      %s264 = sphi 0, %s266
      %s267 = sphi 0, %s264
      %s268 = sphi 0, %s267
      %s284 = sphi 0, %s268
      %s290 = sphi 0, %s292
      %s293 = sphi 0, %s290
      %s294 = sphi 0, %s293
      %s310 = sphi 0, %s294
      %s316 = sphi 0, %s318
      %s319 = sphi 0, %s316
      %s320 = sphi 0, %s319
      %s336 = sphi 0, %s320
      %s342 = sphi 0, %s344
      %s345 = sphi 0, %s342
      %s346 = sphi 0, %s345
      %s362 = sphi 0, %s346
      %s368 = sphi 0, %s370
      %s371 = sphi 0, %s368
      %s372 = sphi 0, %s371
      %s388 = sphi 0, %s372
      %s394 = sphi 0, %s396
      %s397 = sphi 0, %s394
      %s398 = sphi 0, %s397
      %s414 = sphi 0, %s398
      %s420 = sphi 0, %s422
      %s423 = sphi 0, %s420
      %s424 = sphi 0, %s423
      %s440 = sphi 0, %s424
      %s446 = sphi 0, %s448
      %s449 = sphi 0, %s446
      %s450 = sphi 0, %s449
      %s466 = sphi 0, %s450
      %s472 = sphi 0, %s474
      %s475 = sphi 0, %s472
      %s476 = sphi 0, %s475
      %s492 = sphi 0, %s476
      %s498 = sphi 0, %s500
      %s501 = sphi 0, %s498
      %s502 = sphi 0, %s501
      %s518 = sphi 0, %s502
      %s524 = sphi 0, %s526
      %s527 = sphi 0, %s524
      %s528 = sphi 0, %s527
      %s544 = sphi 0, %s528
      %s550 = sphi 0, %s552
      %s553 = sphi 0, %s550
      %s554 = sphi 0, %s553
      %s570 = sphi 0, %s554
      %s576 = sphi 0, %s578
      %s579 = sphi 0, %s576
      %s580 = sphi 0, %s579
      %s596 = sphi 0, %s580
      %s602 = sphi 0, %s604
      %s605 = sphi 0, %s602
      %s606 = sphi 0, %s605
      %s622 = sphi 0, %s606
      %s628 = sphi 0, %s630
      %s631 = sphi 0, %s628
      %s632 = sphi 0, %s631
      %s648 = sphi 0, %s632
      %s654 = sphi 0, %s656
      %s657 = sphi 0, %s654
      %s658 = sphi 0, %s657
      %s674 = sphi 0, %s658
      %s680 = sphi 0, %s682
      %s683 = sphi 0, %s680
      %s684 = sphi 0, %s683
      %s700 = sphi 0, %s684
      %s706 = sphi 0, %s708
      %s709 = sphi 0, %s706
      %s710 = sphi 0, %s709
      %s726 = sphi 0, %s710
    $region4: #{tpu_custom_call.1} parent=1 // loop_header_branch
      %63 = sbr.rel (%p61) target = $region8
    $region5: #{tpu_custom_call.1} parent=1 // loop_body
      %s65 = ssub.s32 %s60, 1
      %s66 = ssub.s32 %s60, 2
      %s73 = sadd.s32 1, %s68
      %p74 = scmp.ge.s32.totalorder %s73, 2
      %s75 = scalar_select %p74, 0, %s73
      %s76 = sadd.s32 1, %s67
      %s77 = scalar_select %p74, %s76, %s67
      %p78 = scmp.ge.s32.totalorder %s77, 2
      %s79 = scalar_select %p78, 0, %s77
      %s80 = ssub.s32 %s67, %s79
      %p81 = scmp.eq.s32.totalorder %s80, 0
      %s83 = sadd.s32 %s82, 1
      %s84 = scalar_select %p81, %s82, %s83
      %p87 = pneg %p81
      %p88 = scmp.eq.s32.totalorder %s60, 3
      %p89 = por %p87, %p88
      %p90 = scmp.ne.s32.totalorder %s82, %s85
      %p91 = scmp.eq.s32.totalorder %s60, 0
      %p92 = por %p90, %p91
      %p93 = scmp.ne.s32.totalorder %s82, %s85
      %p94 = scmp.eq.s32.totalorder %s65, 3
      %p95 = por %p93, %p94
      %p96 = scmp.ne.s32.totalorder %s85, %s86
      %p97 = scmp.eq.s32.totalorder %s65, 0
      %p98 = por %p96, %p97
      %p99 = scmp.ne.s32.totalorder %s85, %s86
      %p100 = scmp.eq.s32.totalorder %s66, 3
      %p101 = por %p99, %p100
      %p103 = scmp.ne.s32.totalorder %s86, %s102
      %p104 = scmp.eq.s32.totalorder %s66, 0
      %p105 = por %p103, %p104
      %s106 = ssub.s32 %s67, %s79
      %p107 = scmp.eq.s32.totalorder %s106, 0
      %s109 = sadd.s32 %s108, 1
      %s110 = scalar_select %p107, %s108, %s109
      %p113 = pneg %p107
      %p114 = scmp.eq.s32.totalorder %s60, 3
      %p115 = por %p113, %p114
      %p116 = scmp.ne.s32.totalorder %s108, %s111
      %p117 = scmp.eq.s32.totalorder %s60, 0
      %p118 = por %p116, %p117
      %p119 = scmp.ne.s32.totalorder %s108, %s111
      %p120 = scmp.eq.s32.totalorder %s65, 3
      %p121 = por %p119, %p120
      %p122 = scmp.ne.s32.totalorder %s111, %s112
      %p123 = scmp.eq.s32.totalorder %s65, 0
      %p124 = por %p122, %p123
      %p125 = scmp.ne.s32.totalorder %s111, %s112
      %p126 = scmp.eq.s32.totalorder %s66, 3
      %p127 = por %p125, %p126
      %p129 = scmp.ne.s32.totalorder %s112, %s128
      %p130 = scmp.eq.s32.totalorder %s66, 0
      %p131 = por %p129, %p130
      %s132 = ssub.s32 %s67, %s79
      %p133 = scmp.eq.s32.totalorder %s132, 0
      %s135 = sadd.s32 %s134, 1
      %s136 = scalar_select %p133, %s134, %s135
      %p139 = pneg %p133
      %p140 = scmp.eq.s32.totalorder %s60, 3
      %p141 = por %p139, %p140
      %p142 = scmp.ne.s32.totalorder %s134, %s137
      %p143 = scmp.eq.s32.totalorder %s60, 0
      %p144 = por %p142, %p143
      %p145 = scmp.ne.s32.totalorder %s134, %s137
      %p146 = scmp.eq.s32.totalorder %s65, 3
      %p147 = por %p145, %p146
      %p148 = scmp.ne.s32.totalorder %s137, %s138
      %p149 = scmp.eq.s32.totalorder %s65, 0
      %p150 = por %p148, %p149
      %p151 = scmp.ne.s32.totalorder %s137, %s138
      %p152 = scmp.eq.s32.totalorder %s66, 3
      %p153 = por %p151, %p152
      %p155 = scmp.ne.s32.totalorder %s138, %s154
      %p156 = scmp.eq.s32.totalorder %s66, 0
      %p157 = por %p155, %p156
      %s158 = ssub.s32 %s67, %s79
      %p159 = scmp.eq.s32.totalorder %s158, 0
      %s161 = sadd.s32 %s160, 1
      %s162 = scalar_select %p159, %s160, %s161
      %p165 = pneg %p159
      %p166 = scmp.eq.s32.totalorder %s60, 3
      %p167 = por %p165, %p166
      %p168 = scmp.ne.s32.totalorder %s160, %s163
      %p169 = scmp.eq.s32.totalorder %s60, 0
      %p170 = por %p168, %p169
      %p171 = scmp.ne.s32.totalorder %s160, %s163
      %p172 = scmp.eq.s32.totalorder %s65, 3
      %p173 = por %p171, %p172
      %p174 = scmp.ne.s32.totalorder %s163, %s164
      %p175 = scmp.eq.s32.totalorder %s65, 0
      %p176 = por %p174, %p175
      %p177 = scmp.ne.s32.totalorder %s163, %s164
      %p178 = scmp.eq.s32.totalorder %s66, 3
      %p179 = por %p177, %p178
      %p181 = scmp.ne.s32.totalorder %s164, %s180
      %p182 = scmp.eq.s32.totalorder %s66, 0
      %p183 = por %p181, %p182
      %s184 = ssub.s32 %s68, %s75
      %p185 = scmp.eq.s32.totalorder %s184, 0
      %s187 = sadd.s32 %s186, 1
      %s188 = scalar_select %p185, %s186, %s187
      %p191 = pneg %p185
      %p192 = scmp.eq.s32.totalorder %s60, 3
      %p193 = por %p191, %p192
      %p194 = scmp.ne.s32.totalorder %s186, %s189
      %p195 = scmp.eq.s32.totalorder %s60, 0
      %p196 = por %p194, %p195
      %p197 = scmp.ne.s32.totalorder %s186, %s189
      %p198 = scmp.eq.s32.totalorder %s65, 3
      %p199 = por %p197, %p198
      %p200 = scmp.ne.s32.totalorder %s189, %s190
      %p201 = scmp.eq.s32.totalorder %s65, 0
      %p202 = por %p200, %p201
      %p203 = scmp.ne.s32.totalorder %s189, %s190
      %p204 = scmp.eq.s32.totalorder %s66, 3
      %p205 = por %p203, %p204
      %p207 = scmp.ne.s32.totalorder %s190, %s206
      %p208 = scmp.eq.s32.totalorder %s66, 0
      %p209 = por %p207, %p208
      %s210 = ssub.s32 %s68, %s75
      %p211 = scmp.eq.s32.totalorder %s210, 0
      %s213 = sadd.s32 %s212, 1
      %s214 = scalar_select %p211, %s212, %s213
      %p217 = pneg %p211
      %p218 = scmp.eq.s32.totalorder %s60, 3
      %p219 = por %p217, %p218
      %p220 = scmp.ne.s32.totalorder %s212, %s215
      %p221 = scmp.eq.s32.totalorder %s60, 0
      %p222 = por %p220, %p221
      %p223 = scmp.ne.s32.totalorder %s212, %s215
      %p224 = scmp.eq.s32.totalorder %s65, 3
      %p225 = por %p223, %p224
      %p226 = scmp.ne.s32.totalorder %s215, %s216
      %p227 = scmp.eq.s32.totalorder %s65, 0
      %p228 = por %p226, %p227
      %p229 = scmp.ne.s32.totalorder %s215, %s216
      %p230 = scmp.eq.s32.totalorder %s66, 3
      %p231 = por %p229, %p230
      %p233 = scmp.ne.s32.totalorder %s216, %s232
      %p234 = scmp.eq.s32.totalorder %s66, 0
      %p235 = por %p233, %p234
      %s236 = ssub.s32 %s68, %s75
      %p237 = scmp.eq.s32.totalorder %s236, 0
      %s239 = sadd.s32 %s238, 1
      %s240 = scalar_select %p237, %s238, %s239
      %p243 = pneg %p237
      %p244 = scmp.eq.s32.totalorder %s60, 3
      %p245 = por %p243, %p244
      %p246 = scmp.ne.s32.totalorder %s238, %s241
      %p247 = scmp.eq.s32.totalorder %s60, 0
      %p248 = por %p246, %p247
      %p249 = scmp.ne.s32.totalorder %s238, %s241
      %p250 = scmp.eq.s32.totalorder %s65, 3
      %p251 = por %p249, %p250
      %p252 = scmp.ne.s32.totalorder %s241, %s242
      %p253 = scmp.eq.s32.totalorder %s65, 0
      %p254 = por %p252, %p253
      %p255 = scmp.ne.s32.totalorder %s241, %s242
      %p256 = scmp.eq.s32.totalorder %s66, 3
      %p257 = por %p255, %p256
      %p259 = scmp.ne.s32.totalorder %s242, %s258
      %p260 = scmp.eq.s32.totalorder %s66, 0
      %p261 = por %p259, %p260
      %s262 = ssub.s32 %s68, %s75
      %p263 = scmp.eq.s32.totalorder %s262, 0
      %s265 = sadd.s32 %s264, 1
      %s266 = scalar_select %p263, %s264, %s265
      %p269 = pneg %p263
      %p270 = scmp.eq.s32.totalorder %s60, 3
      %p271 = por %p269, %p270
      %p272 = scmp.ne.s32.totalorder %s264, %s267
      %p273 = scmp.eq.s32.totalorder %s60, 0
      %p274 = por %p272, %p273
      %p275 = scmp.ne.s32.totalorder %s264, %s267
      %p276 = scmp.eq.s32.totalorder %s65, 3
      %p277 = por %p275, %p276
      %p278 = scmp.ne.s32.totalorder %s267, %s268
      %p279 = scmp.eq.s32.totalorder %s65, 0
      %p280 = por %p278, %p279
      %p281 = scmp.ne.s32.totalorder %s267, %s268
      %p282 = scmp.eq.s32.totalorder %s66, 3
      %p283 = por %p281, %p282
      %p285 = scmp.ne.s32.totalorder %s268, %s284
      %p286 = scmp.eq.s32.totalorder %s66, 0
      %p287 = por %p285, %p286
      %s288 = ssub.s32 %s68, %s75
      %p289 = scmp.eq.s32.totalorder %s288, 0
      %s291 = sadd.s32 %s290, 1
      %s292 = scalar_select %p289, %s290, %s291
      %p295 = pneg %p289
      %p296 = scmp.eq.s32.totalorder %s60, 3
      %p297 = por %p295, %p296
      %p298 = scmp.ne.s32.totalorder %s290, %s293
      %p299 = scmp.eq.s32.totalorder %s60, 0
      %p300 = por %p298, %p299
      %p301 = scmp.ne.s32.totalorder %s290, %s293
      %p302 = scmp.eq.s32.totalorder %s65, 3
      %p303 = por %p301, %p302
      %p304 = scmp.ne.s32.totalorder %s293, %s294
      %p305 = scmp.eq.s32.totalorder %s65, 0
      %p306 = por %p304, %p305
      %p307 = scmp.ne.s32.totalorder %s293, %s294
      %p308 = scmp.eq.s32.totalorder %s66, 3
      %p309 = por %p307, %p308
      %p311 = scmp.ne.s32.totalorder %s294, %s310
      %p312 = scmp.eq.s32.totalorder %s66, 0
      %p313 = por %p311, %p312
      %s314 = ssub.s32 %s68, %s75
      %p315 = scmp.eq.s32.totalorder %s314, 0
      %s317 = sadd.s32 %s316, 1
      %s318 = scalar_select %p315, %s316, %s317
      %p321 = pneg %p315
      %p322 = scmp.eq.s32.totalorder %s60, 3
      %p323 = por %p321, %p322
      %p324 = scmp.ne.s32.totalorder %s316, %s319
      %p325 = scmp.eq.s32.totalorder %s60, 0
      %p326 = por %p324, %p325
      %p327 = scmp.ne.s32.totalorder %s316, %s319
      %p328 = scmp.eq.s32.totalorder %s65, 3
      %p329 = por %p327, %p328
      %p330 = scmp.ne.s32.totalorder %s319, %s320
      %p331 = scmp.eq.s32.totalorder %s65, 0
      %p332 = por %p330, %p331
      %p333 = scmp.ne.s32.totalorder %s319, %s320
      %p334 = scmp.eq.s32.totalorder %s66, 3
      %p335 = por %p333, %p334
      %p337 = scmp.ne.s32.totalorder %s320, %s336
      %p338 = scmp.eq.s32.totalorder %s66, 0
      %p339 = por %p337, %p338
      %s340 = ssub.s32 %s68, %s75
      %p341 = scmp.eq.s32.totalorder %s340, 0
      %s343 = sadd.s32 %s342, 1
      %s344 = scalar_select %p341, %s342, %s343
      %p347 = pneg %p341
      %p348 = scmp.eq.s32.totalorder %s60, 3
      %p349 = por %p347, %p348
      %p350 = scmp.ne.s32.totalorder %s342, %s345
      %p351 = scmp.eq.s32.totalorder %s60, 0
      %p352 = por %p350, %p351
      %p353 = scmp.ne.s32.totalorder %s342, %s345
      %p354 = scmp.eq.s32.totalorder %s65, 3
      %p355 = por %p353, %p354
      %p356 = scmp.ne.s32.totalorder %s345, %s346
      %p357 = scmp.eq.s32.totalorder %s65, 0
      %p358 = por %p356, %p357
      %p359 = scmp.ne.s32.totalorder %s345, %s346
      %p360 = scmp.eq.s32.totalorder %s66, 3
      %p361 = por %p359, %p360
      %p363 = scmp.ne.s32.totalorder %s346, %s362
      %p364 = scmp.eq.s32.totalorder %s66, 0
      %p365 = por %p363, %p364
      %s366 = ssub.s32 %s68, %s75
      %p367 = scmp.eq.s32.totalorder %s366, 0
      %s369 = sadd.s32 %s368, 1
      %s370 = scalar_select %p367, %s368, %s369
      %p373 = pneg %p367
      %p374 = scmp.eq.s32.totalorder %s60, 3
      %p375 = por %p373, %p374
      %p376 = scmp.ne.s32.totalorder %s368, %s371
      %p377 = scmp.eq.s32.totalorder %s60, 0
      %p378 = por %p376, %p377
      %p379 = scmp.ne.s32.totalorder %s368, %s371
      %p380 = scmp.eq.s32.totalorder %s65, 3
      %p381 = por %p379, %p380
      %p382 = scmp.ne.s32.totalorder %s371, %s372
      %p383 = scmp.eq.s32.totalorder %s65, 0
      %p384 = por %p382, %p383
      %p385 = scmp.ne.s32.totalorder %s371, %s372
      %p386 = scmp.eq.s32.totalorder %s66, 3
      %p387 = por %p385, %p386
      %p389 = scmp.ne.s32.totalorder %s372, %s388
      %p390 = scmp.eq.s32.totalorder %s66, 0
      %p391 = por %p389, %p390
      %s392 = ssub.s32 %s68, %s75
      %p393 = scmp.eq.s32.totalorder %s392, 0
      %s395 = sadd.s32 %s394, 1
      %s396 = scalar_select %p393, %s394, %s395
      %p399 = pneg %p393
      %p400 = scmp.eq.s32.totalorder %s60, 3
      %p401 = por %p399, %p400
      %p402 = scmp.ne.s32.totalorder %s394, %s397
      %p403 = scmp.eq.s32.totalorder %s60, 0
      %p404 = por %p402, %p403
      %p405 = scmp.ne.s32.totalorder %s394, %s397
      %p406 = scmp.eq.s32.totalorder %s65, 3
      %p407 = por %p405, %p406
      %p408 = scmp.ne.s32.totalorder %s397, %s398
      %p409 = scmp.eq.s32.totalorder %s65, 0
      %p410 = por %p408, %p409
      %p411 = scmp.ne.s32.totalorder %s397, %s398
      %p412 = scmp.eq.s32.totalorder %s66, 3
      %p413 = por %p411, %p412
      %p415 = scmp.ne.s32.totalorder %s398, %s414
      %p416 = scmp.eq.s32.totalorder %s66, 0
      %p417 = por %p415, %p416
      %s418 = ssub.s32 %s68, %s75
      %p419 = scmp.eq.s32.totalorder %s418, 0
      %s421 = sadd.s32 %s420, 1
      %s422 = scalar_select %p419, %s420, %s421
      %p425 = pneg %p419
      %p426 = scmp.eq.s32.totalorder %s60, 3
      %p427 = por %p425, %p426
      %p428 = scmp.ne.s32.totalorder %s420, %s423
      %p429 = scmp.eq.s32.totalorder %s60, 0
      %p430 = por %p428, %p429
      %p431 = scmp.ne.s32.totalorder %s420, %s423
      %p432 = scmp.eq.s32.totalorder %s65, 3
      %p433 = por %p431, %p432
      %p434 = scmp.ne.s32.totalorder %s423, %s424
      %p435 = scmp.eq.s32.totalorder %s65, 0
      %p436 = por %p434, %p435
      %p437 = scmp.ne.s32.totalorder %s423, %s424
      %p438 = scmp.eq.s32.totalorder %s66, 3
      %p439 = por %p437, %p438
      %p441 = scmp.ne.s32.totalorder %s424, %s440
      %p442 = scmp.eq.s32.totalorder %s66, 0
      %p443 = por %p441, %p442
      %s444 = ssub.s32 %s68, %s75
      %p445 = scmp.eq.s32.totalorder %s444, 0
      %s447 = sadd.s32 %s446, 1
      %s448 = scalar_select %p445, %s446, %s447
      %p451 = pneg %p445
      %p452 = scmp.eq.s32.totalorder %s60, 3
      %p453 = por %p451, %p452
      %p454 = scmp.ne.s32.totalorder %s446, %s449
      %p455 = scmp.eq.s32.totalorder %s60, 0
      %p456 = por %p454, %p455
      %p457 = scmp.ne.s32.totalorder %s446, %s449
      %p458 = scmp.eq.s32.totalorder %s65, 3
      %p459 = por %p457, %p458
      %p460 = scmp.ne.s32.totalorder %s449, %s450
      %p461 = scmp.eq.s32.totalorder %s65, 0
      %p462 = por %p460, %p461
      %p463 = scmp.ne.s32.totalorder %s449, %s450
      %p464 = scmp.eq.s32.totalorder %s66, 3
      %p465 = por %p463, %p464
      %p467 = scmp.ne.s32.totalorder %s450, %s466
      %p468 = scmp.eq.s32.totalorder %s66, 0
      %p469 = por %p467, %p468
      %s470 = ssub.s32 %s68, %s75
      %p471 = scmp.eq.s32.totalorder %s470, 0
      %s473 = sadd.s32 %s472, 1
      %s474 = scalar_select %p471, %s472, %s473
      %p477 = pneg %p471
      %p478 = scmp.eq.s32.totalorder %s60, 3
      %p479 = por %p477, %p478
      %p480 = scmp.ne.s32.totalorder %s472, %s475
      %p481 = scmp.eq.s32.totalorder %s60, 0
      %p482 = por %p480, %p481
      %p483 = scmp.ne.s32.totalorder %s472, %s475
      %p484 = scmp.eq.s32.totalorder %s65, 3
      %p485 = por %p483, %p484
      %p486 = scmp.ne.s32.totalorder %s475, %s476
      %p487 = scmp.eq.s32.totalorder %s65, 0
      %p488 = por %p486, %p487
      %p489 = scmp.ne.s32.totalorder %s475, %s476
      %p490 = scmp.eq.s32.totalorder %s66, 3
      %p491 = por %p489, %p490
      %p493 = scmp.ne.s32.totalorder %s476, %s492
      %p494 = scmp.eq.s32.totalorder %s66, 0
      %p495 = por %p493, %p494
      %s496 = ssub.s32 %s68, %s75
      %p497 = scmp.eq.s32.totalorder %s496, 0
      %s499 = sadd.s32 %s498, 1
      %s500 = scalar_select %p497, %s498, %s499
      %p503 = pneg %p497
      %p504 = scmp.eq.s32.totalorder %s60, 3
      %p505 = por %p503, %p504
      %p506 = scmp.ne.s32.totalorder %s498, %s501
      %p507 = scmp.eq.s32.totalorder %s60, 0
      %p508 = por %p506, %p507
      %p509 = scmp.ne.s32.totalorder %s498, %s501
      %p510 = scmp.eq.s32.totalorder %s65, 3
      %p511 = por %p509, %p510
      %p512 = scmp.ne.s32.totalorder %s501, %s502
      %p513 = scmp.eq.s32.totalorder %s65, 0
      %p514 = por %p512, %p513
      %p515 = scmp.ne.s32.totalorder %s501, %s502
      %p516 = scmp.eq.s32.totalorder %s66, 3
      %p517 = por %p515, %p516
      %p519 = scmp.ne.s32.totalorder %s502, %s518
      %p520 = scmp.eq.s32.totalorder %s66, 0
      %p521 = por %p519, %p520
      %s522 = ssub.s32 %s68, %s75
      %p523 = scmp.eq.s32.totalorder %s522, 0
      %s525 = sadd.s32 %s524, 1
      %s526 = scalar_select %p523, %s524, %s525
      %p529 = pneg %p523
      %p530 = scmp.eq.s32.totalorder %s60, 3
      %p531 = por %p529, %p530
      %p532 = scmp.ne.s32.totalorder %s524, %s527
      %p533 = scmp.eq.s32.totalorder %s60, 0
      %p534 = por %p532, %p533
      %p535 = scmp.ne.s32.totalorder %s524, %s527
      %p536 = scmp.eq.s32.totalorder %s65, 3
      %p537 = por %p535, %p536
      %p538 = scmp.ne.s32.totalorder %s527, %s528
      %p539 = scmp.eq.s32.totalorder %s65, 0
      %p540 = por %p538, %p539
      %p541 = scmp.ne.s32.totalorder %s527, %s528
      %p542 = scmp.eq.s32.totalorder %s66, 3
      %p543 = por %p541, %p542
      %p545 = scmp.ne.s32.totalorder %s528, %s544
      %p546 = scmp.eq.s32.totalorder %s66, 0
      %p547 = por %p545, %p546
      %s548 = ssub.s32 %s68, %s75
      %p549 = scmp.eq.s32.totalorder %s548, 0
      %s551 = sadd.s32 %s550, 1
      %s552 = scalar_select %p549, %s550, %s551
      %p555 = pneg %p549
      %p556 = scmp.eq.s32.totalorder %s60, 3
      %p557 = por %p555, %p556
      %p558 = scmp.ne.s32.totalorder %s550, %s553
      %p559 = scmp.eq.s32.totalorder %s60, 0
      %p560 = por %p558, %p559
      %p561 = scmp.ne.s32.totalorder %s550, %s553
      %p562 = scmp.eq.s32.totalorder %s65, 3
      %p563 = por %p561, %p562
      %p564 = scmp.ne.s32.totalorder %s553, %s554
      %p565 = scmp.eq.s32.totalorder %s65, 0
      %p566 = por %p564, %p565
      %p567 = scmp.ne.s32.totalorder %s553, %s554
      %p568 = scmp.eq.s32.totalorder %s66, 3
      %p569 = por %p567, %p568
      %p571 = scmp.ne.s32.totalorder %s554, %s570
      %p572 = scmp.eq.s32.totalorder %s66, 0
      %p573 = por %p571, %p572
      %s574 = ssub.s32 %s68, %s75
      %p575 = scmp.eq.s32.totalorder %s574, 0
      %s577 = sadd.s32 %s576, 1
      %s578 = scalar_select %p575, %s576, %s577
      %p581 = pneg %p575
      %p582 = scmp.eq.s32.totalorder %s60, 3
      %p583 = por %p581, %p582
      %p584 = scmp.ne.s32.totalorder %s576, %s579
      %p585 = scmp.eq.s32.totalorder %s60, 0
      %p586 = por %p584, %p585
      %p587 = scmp.ne.s32.totalorder %s576, %s579
      %p588 = scmp.eq.s32.totalorder %s65, 3
      %p589 = por %p587, %p588
      %p590 = scmp.ne.s32.totalorder %s579, %s580
      %p591 = scmp.eq.s32.totalorder %s65, 0
      %p592 = por %p590, %p591
      %p593 = scmp.ne.s32.totalorder %s579, %s580
      %p594 = scmp.eq.s32.totalorder %s66, 3
      %p595 = por %p593, %p594
      %p597 = scmp.ne.s32.totalorder %s580, %s596
      %p598 = scmp.eq.s32.totalorder %s66, 0
      %p599 = por %p597, %p598
      %s600 = ssub.s32 %s68, %s75
      %p601 = scmp.eq.s32.totalorder %s600, 0
      %s603 = sadd.s32 %s602, 1
      %s604 = scalar_select %p601, %s602, %s603
      %p607 = pneg %p601
      %p608 = scmp.eq.s32.totalorder %s60, 3
      %p609 = por %p607, %p608
      %p610 = scmp.ne.s32.totalorder %s602, %s605
      %p611 = scmp.eq.s32.totalorder %s60, 0
      %p612 = por %p610, %p611
      %p613 = scmp.ne.s32.totalorder %s602, %s605
      %p614 = scmp.eq.s32.totalorder %s65, 3
      %p615 = por %p613, %p614
      %p616 = scmp.ne.s32.totalorder %s605, %s606
      %p617 = scmp.eq.s32.totalorder %s65, 0
      %p618 = por %p616, %p617
      %p619 = scmp.ne.s32.totalorder %s605, %s606
      %p620 = scmp.eq.s32.totalorder %s66, 3
      %p621 = por %p619, %p620
      %p623 = scmp.ne.s32.totalorder %s606, %s622
      %p624 = scmp.eq.s32.totalorder %s66, 0
      %p625 = por %p623, %p624
      %s626 = ssub.s32 %s68, %s75
      %p627 = scmp.eq.s32.totalorder %s626, 0
      %s629 = sadd.s32 %s628, 1
      %s630 = scalar_select %p627, %s628, %s629
      %p633 = pneg %p627
      %p634 = scmp.eq.s32.totalorder %s60, 3
      %p635 = por %p633, %p634
      %p636 = scmp.ne.s32.totalorder %s628, %s631
      %p637 = scmp.eq.s32.totalorder %s60, 0
      %p638 = por %p636, %p637
      %p639 = scmp.ne.s32.totalorder %s628, %s631
      %p640 = scmp.eq.s32.totalorder %s65, 3
      %p641 = por %p639, %p640
      %p642 = scmp.ne.s32.totalorder %s631, %s632
      %p643 = scmp.eq.s32.totalorder %s65, 0
      %p644 = por %p642, %p643
      %p645 = scmp.ne.s32.totalorder %s631, %s632
      %p646 = scmp.eq.s32.totalorder %s66, 3
      %p647 = por %p645, %p646
      %p649 = scmp.ne.s32.totalorder %s632, %s648
      %p650 = scmp.eq.s32.totalorder %s66, 0
      %p651 = por %p649, %p650
      %s652 = ssub.s32 %s68, %s75
      %p653 = scmp.eq.s32.totalorder %s652, 0
      %s655 = sadd.s32 %s654, 1
      %s656 = scalar_select %p653, %s654, %s655
      %p659 = pneg %p653
      %p660 = scmp.eq.s32.totalorder %s60, 3
      %p661 = por %p659, %p660
      %p662 = scmp.ne.s32.totalorder %s654, %s657
      %p663 = scmp.eq.s32.totalorder %s60, 0
      %p664 = por %p662, %p663
      %p665 = scmp.ne.s32.totalorder %s654, %s657
      %p666 = scmp.eq.s32.totalorder %s65, 3
      %p667 = por %p665, %p666
      %p668 = scmp.ne.s32.totalorder %s657, %s658
      %p669 = scmp.eq.s32.totalorder %s65, 0
      %p670 = por %p668, %p669
      %p671 = scmp.ne.s32.totalorder %s657, %s658
      %p672 = scmp.eq.s32.totalorder %s66, 3
      %p673 = por %p671, %p672
      %p675 = scmp.ne.s32.totalorder %s658, %s674
      %p676 = scmp.eq.s32.totalorder %s66, 0
      %p677 = por %p675, %p676
      %s678 = ssub.s32 %s68, %s75
      %p679 = scmp.eq.s32.totalorder %s678, 0
      %s681 = sadd.s32 %s680, 1
      %s682 = scalar_select %p679, %s680, %s681
      %p685 = pneg %p679
      %p686 = scmp.eq.s32.totalorder %s60, 3
      %p687 = por %p685, %p686
      %p688 = scmp.ne.s32.totalorder %s680, %s683
      %p689 = scmp.eq.s32.totalorder %s60, 0
      %p690 = por %p688, %p689
      %p691 = scmp.ne.s32.totalorder %s680, %s683
      %p692 = scmp.eq.s32.totalorder %s65, 3
      %p693 = por %p691, %p692
      %p694 = scmp.ne.s32.totalorder %s683, %s684
      %p695 = scmp.eq.s32.totalorder %s65, 0
      %p696 = por %p694, %p695
      %p697 = scmp.ne.s32.totalorder %s683, %s684
      %p698 = scmp.eq.s32.totalorder %s66, 3
      %p699 = por %p697, %p698
      %p701 = scmp.ne.s32.totalorder %s684, %s700
      %p702 = scmp.eq.s32.totalorder %s66, 0
      %p703 = por %p701, %p702
      %s704 = ssub.s32 %s67, %s79
      %p705 = scmp.eq.s32.totalorder %s704, 0
      %s707 = sadd.s32 %s706, 1
      %s708 = scalar_select %p705, %s706, %s707
      %p711 = pneg %p705
      %p712 = scmp.eq.s32.totalorder %s60, 3
      %p713 = por %p711, %p712
      %p714 = scmp.ne.s32.totalorder %s706, %s709
      %p715 = scmp.eq.s32.totalorder %s60, 0
      %p716 = por %p714, %p715
      %p717 = scmp.ne.s32.totalorder %s706, %s709
      %p718 = scmp.eq.s32.totalorder %s65, 3
      %p719 = por %p717, %p718
      %p720 = scmp.ne.s32.totalorder %s709, %s710
      %p721 = scmp.eq.s32.totalorder %s65, 0
      %p722 = por %p720, %p721
      %p723 = scmp.ne.s32.totalorder %s709, %s710
      %p724 = scmp.eq.s32.totalorder %s66, 3
      %p725 = por %p723, %p724
      %p727 = scmp.ne.s32.totalorder %s710, %s726
      %p728 = scmp.eq.s32.totalorder %s66, 0
      %p729 = por %p727, %p728
      %p730 = scmp.le.s32.totalorder 1, %s60
      %p731 = scmp.lt.s32.totalorder %s60, 5
      %p732 = pnand %p730, %p731
      %p733 = pneg %p732
      // Predicated region
      $region9: #{tpu_custom_call.1} parent=5 // pred_check
        _
      $region10: #{tpu_custom_call.1} parent=5 // pred_check_branch
        %735 = sbr.rel (%p732) target = $region12
      $region11: #{tpu_custom_call.1} parent=5 // pred_region
        %s736 = ssub.s32 %s60, 1
      $region12: #{tpu_custom_call.1} parent=5 // pred_fallthru
        _
      %p737 = scmp.lt.s32.totalorder %s60, 4
      // Predicated region
      $region13: #{tpu_custom_call.1} parent=5 // pred_check
        %p738 = pneg %p737
      $region14: #{tpu_custom_call.1} parent=5 // pred_check_branch
        %740 = sbr.rel (%p738) target = $region16
      $region15: #{tpu_custom_call.1} parent=5 // pred_region
        // Predicated region
        $region17: #{tpu_custom_call.1} parent=15 // pred_check
          %p741 = pneg %p92
        $region18: #{tpu_custom_call.1} parent=15 // pred_check_branch
          %743 = sbr.rel (%p741) target = $region20
        $region19: #{tpu_custom_call.1} parent=15 // pred_region
          %s744 = sand.u32 %s82, 1
          %s745 = scalar_lea.sflag [#allocation3], %s744
          %s746 = sand.u32 %s82, 1
          %s747 = smul.addr %s746, 16
          %s748 = scalar_lea.vmem [#allocation2], %s747
          %s750 = ssub.s32 256, 256
          %751 = vsyncadd %s745, %s750
          %s752 = smul.addr %s67, 2
          %s753 = smul.addr %s752, 128
          %s754 = scalar_lea.hbm %s0, %s753
          %s756 = sshll.u32 %s748, 4
          %s757 = int_to_ptr.vmem [resolvable:$true] %s756
          %759 = dma.hbm_to_vmem [thread:$0]  %s754, 256, %s757, %s745
        $region20: #{tpu_custom_call.1} parent=15 // pred_fallthru
          _
        // Predicated region
        $region21: #{tpu_custom_call.1} parent=15 // pred_check
          %p760 = pneg %p118
        $region22: #{tpu_custom_call.1} parent=15 // pred_check_branch
          %762 = sbr.rel (%p760) target = $region24
        $region23: #{tpu_custom_call.1} parent=15 // pred_region
          %s763 = sand.u32 %s60, 1
          %s764 = scalar_lea.sflag [#allocation6], %s763
          %s765 = sand.u32 %s108, 1
          %s766 = smul.addr %s765, 16
          %s767 = scalar_lea.vmem [#allocation5], %s766
          %s769 = ssub.s32 256, 256
          %770 = vsyncadd %s764, %s769
          %s771 = smul.addr %s67, 4
          %s772 = smul.addr %s771, 64
          %s773 = scalar_lea.hbm %s1, %s772
          %s774 = sshll.u32 %s767, 4
          %s775 = int_to_ptr.vmem [resolvable:$true] %s774
          %780 = dma.hbm_to_vmem [thread:$0]  %s773, 256, %s775, %s764, 128, 128, 8
        $region24: #{tpu_custom_call.1} parent=15 // pred_fallthru
          _
        // Predicated region
        $region25: #{tpu_custom_call.1} parent=15 // pred_check
          %p781 = pneg %p144
        $region26: #{tpu_custom_call.1} parent=15 // pred_check_branch
          %783 = sbr.rel (%p781) target = $region28
        $region27: #{tpu_custom_call.1} parent=15 // pred_region
          %s784 = sand.u32 %s60, 1
          %s785 = scalar_lea.sflag [#allocation6], %s784
          %s786 = sand.u32 %s134, 1
          %s787 = smul.addr %s786, 4
          %s788 = scalar_lea.vmem [#allocation7], %s787
          %s790 = ssub.s32 64, 64
          %791 = vsyncadd %s785, %s790
          %s792 = smul.addr %s67, 64
          %s793 = scalar_lea.hbm %s2, %s792
          %s795 = sshll.u32 %s788, 4
          %s796 = int_to_ptr.vmem [resolvable:$true] %s795
          %798 = dma.hbm_to_vmem [thread:$0]  %s793, 64, %s796, %s785
        $region28: #{tpu_custom_call.1} parent=15 // pred_fallthru
          _
        // Predicated region
        $region29: #{tpu_custom_call.1} parent=15 // pred_check
          %p799 = pneg %p170
        $region30: #{tpu_custom_call.1} parent=15 // pred_check_branch
          %801 = sbr.rel (%p799) target = $region32
        $region31: #{tpu_custom_call.1} parent=15 // pred_region
          %p802 = scmp.lt.s32.totalorder %s67, 1
          %s803 = scalar_select %p802, %s67, 1
          %s804 = scalar_lea.vmem %s3, %s803
        $region32: #{tpu_custom_call.1} parent=15 // pred_fallthru
          _
        // Predicated region
        $region33: #{tpu_custom_call.1} parent=15 // pred_check
          %p805 = pneg %p196
        $region34: #{tpu_custom_call.1} parent=15 // pred_check_branch
          %807 = sbr.rel (%p805) target = $region36
        $region35: #{tpu_custom_call.1} parent=15 // pred_region
          %s808 = sand.u32 %s60, 1
          %s809 = scalar_lea.sflag [#allocation9], %s808
          %s810 = sand.u32 %s186, 1
          %s811 = smul.addr %s810, 768
          %s812 = scalar_lea.vmem [#allocation8], %s811
          %s814 = ssub.s32 12288, 12288
          %815 = vsyncadd %s809, %s814
          %s816 = smul.addr %s68, 192
          %s817 = smul.addr %s816, 64
          %s818 = scalar_lea.hbm %s4, %s817
          %s819 = sshll.u32 %s812, 4
          %s820 = int_to_ptr.vmem [resolvable:$true] %s819
          %825 = dma.hbm_to_vmem [thread:$0]  %s818, 12288, %s820, %s809, 384, 384, 24
        $region36: #{tpu_custom_call.1} parent=15 // pred_fallthru
          _
        // Predicated region
        $region37: #{tpu_custom_call.1} parent=15 // pred_check
          %p826 = pneg %p222
        $region38: #{tpu_custom_call.1} parent=15 // pred_check_branch
          %828 = sbr.rel (%p826) target = $region40
        $region39: #{tpu_custom_call.1} parent=15 // pred_region
          %p829 = scmp.lt.s32.totalorder %s68, 1
          %s830 = scalar_select %p829, %s68, 1
          %s831 = smul.addr %s830, 6
          %s832 = scalar_lea.vmem %s5, %s831
        $region40: #{tpu_custom_call.1} parent=15 // pred_fallthru
          _
        // Predicated region
        $region41: #{tpu_custom_call.1} parent=15 // pred_check
          %p833 = pneg %p248
        $region42: #{tpu_custom_call.1} parent=15 // pred_check_branch
          %835 = sbr.rel (%p833) target = $region44
        $region43: #{tpu_custom_call.1} parent=15 // pred_region
          %s836 = sand.u32 %s60, 1
          %s837 = scalar_lea.sflag [#allocation9], %s836
          %s838 = sand.u32 %s238, 1
          %s839 = smul.addr %s838, 256
          %s840 = scalar_lea.vmem [#allocation10], %s839
          %s842 = ssub.s32 4096, 4096
          %843 = vsyncadd %s837, %s842
          %s844 = smul.addr %s68, 64
          %s845 = smul.addr %s844, 64
          %s846 = scalar_lea.hbm %s6, %s845
          %s847 = sshll.u32 %s840, 4
          %s848 = int_to_ptr.vmem [resolvable:$true] %s847
          %853 = dma.hbm_to_vmem [thread:$0]  %s846, 4096, %s848, %s837, 128, 128, 8
        $region44: #{tpu_custom_call.1} parent=15 // pred_fallthru
          _
        // Predicated region
        $region45: #{tpu_custom_call.1} parent=15 // pred_check
          %p854 = pneg %p274
        $region46: #{tpu_custom_call.1} parent=15 // pred_check_branch
          %856 = sbr.rel (%p854) target = $region48
        $region47: #{tpu_custom_call.1} parent=15 // pred_region
          %s857 = sand.u32 %s60, 1
          %s858 = scalar_lea.sflag [#allocation12], %s857
          %s859 = sand.u32 %s264, 1
          %s860 = smul.addr %s859, 2
          %s861 = scalar_lea.vmem [#allocation11], %s860
          %s863 = ssub.s32 32, 32
          %864 = vsyncadd %s858, %s863
          %s865 = smul.addr %s68, 2
          %s866 = smul.addr %s865, 16
          %s867 = scalar_lea.hbm %s7, %s866
          %s869 = sshll.u32 %s861, 4
          %s870 = int_to_ptr.vmem [resolvable:$true] %s869
          %872 = dma.hbm_to_vmem [thread:$0]  %s867, 32, %s870, %s858
        $region48: #{tpu_custom_call.1} parent=15 // pred_fallthru
          _
        // Predicated region
        $region49: #{tpu_custom_call.1} parent=15 // pred_check
          %p873 = pneg %p300
        $region50: #{tpu_custom_call.1} parent=15 // pred_check_branch
          %875 = sbr.rel (%p873) target = $region52
        $region51: #{tpu_custom_call.1} parent=15 // pred_region
          %s876 = sand.u32 %s60, 1
          %s877 = scalar_lea.sflag [#allocation12], %s876
          %s878 = sand.u32 %s290, 1
          %s879 = smul.addr %s878, 256
          %s880 = scalar_lea.vmem [#allocation13], %s879
          %s882 = ssub.s32 4096, 4096
          %883 = vsyncadd %s877, %s882
          %s884 = smul.addr %s68, 64
          %s885 = smul.addr %s884, 64
          %s886 = scalar_lea.hbm %s8, %s885
          %s887 = sshll.u32 %s880, 4
          %s888 = int_to_ptr.vmem [resolvable:$true] %s887
          %893 = dma.hbm_to_vmem [thread:$0]  %s886, 4096, %s888, %s877, 128, 128, 8
        $region52: #{tpu_custom_call.1} parent=15 // pred_fallthru
          _
        // Predicated region
        $region53: #{tpu_custom_call.1} parent=15 // pred_check
          %p894 = pneg %p326
        $region54: #{tpu_custom_call.1} parent=15 // pred_check_branch
          %896 = sbr.rel (%p894) target = $region56
        $region55: #{tpu_custom_call.1} parent=15 // pred_region
          %s897 = sand.u32 %s60, 1
          %s898 = scalar_lea.sflag [#allocation15], %s897
          %s899 = sand.u32 %s316, 1
          %s900 = smul.addr %s899, 2
          %s901 = scalar_lea.vmem [#allocation14], %s900
          %s903 = ssub.s32 32, 32
          %904 = vsyncadd %s898, %s903
          %s905 = smul.addr %s68, 2
          %s906 = smul.addr %s905, 16
          %s907 = scalar_lea.hbm %s9, %s906
          %s909 = sshll.u32 %s901, 4
          %s910 = int_to_ptr.vmem [resolvable:$true] %s909
          %912 = dma.hbm_to_vmem [thread:$0]  %s907, 32, %s910, %s898
        $region56: #{tpu_custom_call.1} parent=15 // pred_fallthru
          _
        // Predicated region
        $region57: #{tpu_custom_call.1} parent=15 // pred_check
          %p913 = pneg %p352
        $region58: #{tpu_custom_call.1} parent=15 // pred_check_branch
          %915 = sbr.rel (%p913) target = $region60
        $region59: #{tpu_custom_call.1} parent=15 // pred_region
          %s916 = sand.u32 %s60, 1
          %s917 = scalar_lea.sflag [#allocation15], %s916
          %s918 = sand.u32 %s342, 1
          %s919 = smul.addr %s918, 512
          %s920 = scalar_lea.vmem [#allocation16], %s919
          %s922 = ssub.s32 8192, 8192
          %923 = vsyncadd %s917, %s922
          %s924 = smul.addr %s68, 128
          %s925 = smul.addr %s924, 64
          %s926 = scalar_lea.hbm %s10, %s925
          %s927 = sshll.u32 %s920, 4
          %s928 = int_to_ptr.vmem [resolvable:$true] %s927
          %933 = dma.hbm_to_vmem [thread:$0]  %s926, 8192, %s928, %s917, 256, 256, 16
        $region60: #{tpu_custom_call.1} parent=15 // pred_fallthru
          _
        // Predicated region
        $region61: #{tpu_custom_call.1} parent=15 // pred_check
          %p934 = pneg %p378
        $region62: #{tpu_custom_call.1} parent=15 // pred_check_branch
          %936 = sbr.rel (%p934) target = $region64
        $region63: #{tpu_custom_call.1} parent=15 // pred_region
          %p937 = scmp.lt.s32.totalorder %s68, 1
          %s938 = scalar_select %p937, %s68, 1
          %s939 = smul.addr %s938, 4
          %s940 = scalar_lea.vmem %s11, %s939
        $region64: #{tpu_custom_call.1} parent=15 // pred_fallthru
          _
        // Predicated region
        $region65: #{tpu_custom_call.1} parent=15 // pred_check
          %p941 = pneg %p404
        $region66: #{tpu_custom_call.1} parent=15 // pred_check_branch
          %943 = sbr.rel (%p941) target = $region68
        $region67: #{tpu_custom_call.1} parent=15 // pred_region
          %s944 = sand.u32 %s60, 1
          %s945 = scalar_lea.sflag [#allocation18], %s944
          %s946 = sand.u32 %s394, 1
          %s947 = smul.addr %s946, 256
          %s948 = scalar_lea.vmem [#allocation17], %s947
          %s950 = ssub.s32 4096, 4096
          %951 = vsyncadd %s945, %s950
          %s952 = smul.addr %s68, 64
          %s953 = smul.addr %s952, 64
          %s954 = scalar_lea.hbm %s12, %s953
          %s955 = sshll.u32 %s948, 4
          %s956 = int_to_ptr.vmem [resolvable:$true] %s955
          %961 = dma.hbm_to_vmem [thread:$0]  %s954, 4096, %s956, %s945, 128, 128, 8
        $region68: #{tpu_custom_call.1} parent=15 // pred_fallthru
          _
        // Predicated region
        $region69: #{tpu_custom_call.1} parent=15 // pred_check
          %p962 = pneg %p430
        $region70: #{tpu_custom_call.1} parent=15 // pred_check_branch
          %964 = sbr.rel (%p962) target = $region72
        $region71: #{tpu_custom_call.1} parent=15 // pred_region
          %s965 = sand.u32 %s60, 1
          %s966 = scalar_lea.sflag [#allocation18], %s965
          %s967 = sand.u32 %s420, 1
          %s968 = smul.addr %s967, 2
          %s969 = scalar_lea.vmem [#allocation19], %s968
          %s971 = ssub.s32 32, 32
          %972 = vsyncadd %s966, %s971
          %s973 = smul.addr %s68, 2
          %s974 = smul.addr %s973, 16
          %s975 = scalar_lea.hbm %s13, %s974
          %s977 = sshll.u32 %s969, 4
          %s978 = int_to_ptr.vmem [resolvable:$true] %s977
          %980 = dma.hbm_to_vmem [thread:$0]  %s975, 32, %s978, %s966
        $region72: #{tpu_custom_call.1} parent=15 // pred_fallthru
          _
        // Predicated region
        $region73: #{tpu_custom_call.1} parent=15 // pred_check
          %p981 = pneg %p456
        $region74: #{tpu_custom_call.1} parent=15 // pred_check_branch
          %983 = sbr.rel (%p981) target = $region76
        $region75: #{tpu_custom_call.1} parent=15 // pred_region
          %s984 = sand.u32 %s60, 1
          %s985 = scalar_lea.sflag [#allocation21], %s984
          %s986 = sand.u32 %s446, 1
          %s987 = smul.addr %s986, 512
          %s988 = scalar_lea.vmem [#allocation20], %s987
          %s990 = ssub.s32 8192, 8192
          %991 = vsyncadd %s985, %s990
          %s992 = smul.addr %s68, 128
          %s993 = smul.addr %s992, 64
          %s994 = scalar_lea.hbm %s14, %s993
          %s995 = sshll.u32 %s988, 4
          %s996 = int_to_ptr.vmem [resolvable:$true] %s995
          %1001 = dma.hbm_to_vmem [thread:$0]  %s994, 8192, %s996, %s985, 256, 256, 16
        $region76: #{tpu_custom_call.1} parent=15 // pred_fallthru
          _
        // Predicated region
        $region77: #{tpu_custom_call.1} parent=15 // pred_check
          %p1002 = pneg %p482
        $region78: #{tpu_custom_call.1} parent=15 // pred_check_branch
          %1004 = sbr.rel (%p1002) target = $region80
        $region79: #{tpu_custom_call.1} parent=15 // pred_region
          %p1005 = scmp.lt.s32.totalorder %s68, 1
          %s1006 = scalar_select %p1005, %s68, 1
          %s1007 = smul.addr %s1006, 4
          %s1008 = scalar_lea.vmem %s15, %s1007
        $region80: #{tpu_custom_call.1} parent=15 // pred_fallthru
          _
        // Predicated region
        $region81: #{tpu_custom_call.1} parent=15 // pred_check
          %p1009 = pneg %p508
        $region82: #{tpu_custom_call.1} parent=15 // pred_check_branch
          %1011 = sbr.rel (%p1009) target = $region84
        $region83: #{tpu_custom_call.1} parent=15 // pred_region
          %s1012 = sand.u32 %s60, 1
          %s1013 = scalar_lea.sflag [#allocation21], %s1012
          %s1014 = sand.u32 %s498, 1
          %s1015 = smul.addr %s1014, 512
          %s1016 = scalar_lea.vmem [#allocation22], %s1015
          %s1018 = ssub.s32 8192, 8192
          %1019 = vsyncadd %s1013, %s1018
          %s1020 = smul.addr %s68, 128
          %s1021 = smul.addr %s1020, 64
          %s1022 = scalar_lea.hbm %s16, %s1021
          %s1023 = sshll.u32 %s1016, 4
          %s1024 = int_to_ptr.vmem [resolvable:$true] %s1023
          %1029 = dma.hbm_to_vmem [thread:$0]  %s1022, 8192, %s1024, %s1013, 128, 128, 8
        $region84: #{tpu_custom_call.1} parent=15 // pred_fallthru
          _
        // Predicated region
        $region85: #{tpu_custom_call.1} parent=15 // pred_check
          %p1030 = pneg %p534
        $region86: #{tpu_custom_call.1} parent=15 // pred_check_branch
          %1032 = sbr.rel (%p1030) target = $region88
        $region87: #{tpu_custom_call.1} parent=15 // pred_region
          %p1033 = scmp.lt.s32.totalorder %s68, 1
          %s1034 = scalar_select %p1033, %s68, 1
          %s1035 = smul.addr %s1034, 2
          %s1036 = scalar_lea.vmem %s17, %s1035
        $region88: #{tpu_custom_call.1} parent=15 // pred_fallthru
          _
        // Predicated region
        $region89: #{tpu_custom_call.1} parent=15 // pred_check
          %p1037 = pneg %p560
        $region90: #{tpu_custom_call.1} parent=15 // pred_check_branch
          %1039 = sbr.rel (%p1037) target = $region92
        $region91: #{tpu_custom_call.1} parent=15 // pred_region
          %s1040 = sand.u32 %s60, 1
          %s1041 = scalar_lea.sflag [#allocation24], %s1040
          %s1042 = sand.u32 %s550, 1
          %s1043 = smul.addr %s1042, 2
          %s1044 = scalar_lea.vmem [#allocation23], %s1043
          %s1046 = ssub.s32 32, 32
          %1047 = vsyncadd %s1041, %s1046
          %s1048 = smul.addr %s68, 2
          %s1049 = smul.addr %s1048, 16
          %s1050 = scalar_lea.hbm %s18, %s1049
          %s1052 = sshll.u32 %s1044, 4
          %s1053 = int_to_ptr.vmem [resolvable:$true] %s1052
          %1055 = dma.hbm_to_vmem [thread:$0]  %s1050, 32, %s1053, %s1041
        $region92: #{tpu_custom_call.1} parent=15 // pred_fallthru
          _
        // Predicated region
        $region93: #{tpu_custom_call.1} parent=15 // pred_check
          %p1056 = pneg %p586
        $region94: #{tpu_custom_call.1} parent=15 // pred_check_branch
          %1058 = sbr.rel (%p1056) target = $region96
        $region95: #{tpu_custom_call.1} parent=15 // pred_region
          %p1059 = scmp.lt.s32.totalorder %s68, 1
          %s1060 = scalar_select %p1059, %s68, 1
          %s1061 = smul.addr %s1060, 2
          %s1062 = scalar_lea.vmem %s19, %s1061
        $region96: #{tpu_custom_call.1} parent=15 // pred_fallthru
          _
        // Predicated region
        $region97: #{tpu_custom_call.1} parent=15 // pred_check
          %p1063 = pneg %p612
        $region98: #{tpu_custom_call.1} parent=15 // pred_check_branch
          %1065 = sbr.rel (%p1063) target = $region100
        $region99: #{tpu_custom_call.1} parent=15 // pred_region
          %s1066 = sand.u32 %s60, 1
          %s1067 = scalar_lea.sflag [#allocation24], %s1066
          %s1068 = sand.u32 %s602, 1
          %s1069 = smul.addr %s1068, 2
          %s1070 = scalar_lea.vmem [#allocation25], %s1069
          %s1072 = ssub.s32 32, 32
          %1073 = vsyncadd %s1067, %s1072
          %s1074 = smul.addr %s68, 2
          %s1075 = smul.addr %s1074, 16
          %s1076 = scalar_lea.hbm %s20, %s1075
          %s1078 = sshll.u32 %s1070, 4
          %s1079 = int_to_ptr.vmem [resolvable:$true] %s1078
          %1081 = dma.hbm_to_vmem [thread:$0]  %s1076, 32, %s1079, %s1067
        $region100: #{tpu_custom_call.1} parent=15 // pred_fallthru
          _
        // Predicated region
        $region101: #{tpu_custom_call.1} parent=15 // pred_check
          %p1082 = pneg %p638
        $region102: #{tpu_custom_call.1} parent=15 // pred_check_branch
          %1084 = sbr.rel (%p1082) target = $region104
        $region103: #{tpu_custom_call.1} parent=15 // pred_region
          %p1085 = scmp.lt.s32.totalorder %s68, 1
          %s1086 = scalar_select %p1085, %s68, 1
          %s1087 = smul.addr %s1086, 2
          %s1088 = scalar_lea.vmem %s21, %s1087
        $region104: #{tpu_custom_call.1} parent=15 // pred_fallthru
          _
        // Predicated region
        $region105: #{tpu_custom_call.1} parent=15 // pred_check
          %p1089 = pneg %p664
        $region106: #{tpu_custom_call.1} parent=15 // pred_check_branch
          %1091 = sbr.rel (%p1089) target = $region108
        $region107: #{tpu_custom_call.1} parent=15 // pred_region
          %s1092 = sand.u32 %s654, 1
          %s1093 = scalar_lea.sflag [#allocation27], %s1092
          %s1094 = sand.u32 %s654, 1
          %s1095 = smul.addr %s1094, 2
          %s1096 = scalar_lea.vmem [#allocation26], %s1095
          %s1098 = ssub.s32 32, 32
          %1099 = vsyncadd %s1093, %s1098
          %s1100 = smul.addr %s68, 2
          %s1101 = smul.addr %s1100, 16
          %s1102 = scalar_lea.hbm %s22, %s1101
          %s1104 = sshll.u32 %s1096, 4
          %s1105 = int_to_ptr.vmem [resolvable:$true] %s1104
          %1107 = dma.hbm_to_vmem [thread:$0]  %s1102, 32, %s1105, %s1093
        $region108: #{tpu_custom_call.1} parent=15 // pred_fallthru
          _
        // Predicated region
        $region109: #{tpu_custom_call.1} parent=15 // pred_check
          %p1108 = pneg %p690
        $region110: #{tpu_custom_call.1} parent=15 // pred_check_branch
          %1110 = sbr.rel (%p1108) target = $region112
        $region111: #{tpu_custom_call.1} parent=15 // pred_region
          %p1111 = scmp.lt.s32.totalorder %s68, 1
          %s1112 = scalar_select %p1111, %s68, 1
          %s1113 = smul.addr %s1112, 2
          %s1114 = scalar_lea.vmem %s23, %s1113
        $region112: #{tpu_custom_call.1} parent=15 // pred_fallthru
          _
      $region16: #{tpu_custom_call.1} parent=5 // pred_fallthru
        _
      %p1115 = scmp.le.s32.totalorder 1, %s60
      %p1116 = scmp.lt.s32.totalorder %s60, 5
      %p1117 = pnand %p1115, %p1116
      %p1118 = pneg %p1117
      // Predicated region
      $region113: #{tpu_custom_call.1} parent=5 // pred_check
        _
      $region114: #{tpu_custom_call.1} parent=5 // pred_check_branch
        %1120 = sbr.rel (%p1117) target = $region116
      $region115: #{tpu_custom_call.1} parent=5 // pred_region
        %s1121 = ssub.s32 %s60, 1
        %s1122 = sand.u32 %s85, 1
        %s1123 = scalar_lea.sflag [#allocation3], %s1122
        %s1124 = sand.u32 %s85, 1
        %s1125 = smul.addr %s1124, 16
        %s1126 = scalar_lea.vmem [#allocation2], %s1125
        // Predicated region
        $region117: #{tpu_custom_call.1} parent=115 // pred_check
          %p1127 = pneg %p98
        $region118: #{tpu_custom_call.1} parent=115 // pred_check_branch
          %1129 = sbr.rel (%p1127) target = $region120
        $region119: #{tpu_custom_call.1} parent=115 // pred_region
          %1130 = dma.done %s1123, 256
        $region120: #{tpu_custom_call.1} parent=115 // pred_fallthru
          _
        %s1131 = sand.u32 %s65, 1
        %s1132 = scalar_lea.sflag [#allocation6], %s1131
        %s1133 = sand.u32 %s111, 1
        %s1134 = smul.addr %s1133, 16
        %s1135 = scalar_lea.vmem [#allocation5], %s1134
        // Predicated region
        $region121: #{tpu_custom_call.1} parent=115 // pred_check
          %p1136 = pneg %p124
        $region122: #{tpu_custom_call.1} parent=115 // pred_check_branch
          %1138 = sbr.rel (%p1136) target = $region124
        $region123: #{tpu_custom_call.1} parent=115 // pred_region
          %1139 = dma.done %s1132, 256
        $region124: #{tpu_custom_call.1} parent=115 // pred_fallthru
          _
        %s1140 = sand.u32 %s65, 1
        %s1141 = scalar_lea.sflag [#allocation6], %s1140
        %s1142 = sand.u32 %s137, 1
        %s1143 = smul.addr %s1142, 4
        %s1144 = scalar_lea.vmem [#allocation7], %s1143
        // Predicated region
        $region125: #{tpu_custom_call.1} parent=115 // pred_check
          %p1145 = pneg %p150
        $region126: #{tpu_custom_call.1} parent=115 // pred_check_branch
          %1147 = sbr.rel (%p1145) target = $region128
        $region127: #{tpu_custom_call.1} parent=115 // pred_region
          %1148 = dma.done %s1141, 64
        $region128: #{tpu_custom_call.1} parent=115 // pred_fallthru
          _
        %s1149 = sand.u32 %s65, 1
        %s1150 = scalar_lea.sflag [#allocation9], %s1149
        %s1151 = sand.u32 %s189, 1
        %s1152 = smul.addr %s1151, 768
        %s1153 = scalar_lea.vmem [#allocation8], %s1152
        // Predicated region
        $region129: #{tpu_custom_call.1} parent=115 // pred_check
          %p1154 = pneg %p202
        $region130: #{tpu_custom_call.1} parent=115 // pred_check_branch
          %1156 = sbr.rel (%p1154) target = $region132
        $region131: #{tpu_custom_call.1} parent=115 // pred_region
          %1157 = dma.done %s1150, 12288
        $region132: #{tpu_custom_call.1} parent=115 // pred_fallthru
          _
        %s1158 = sand.u32 %s65, 1
        %s1159 = scalar_lea.sflag [#allocation9], %s1158
        %s1160 = sand.u32 %s241, 1
        %s1161 = smul.addr %s1160, 256
        %s1162 = scalar_lea.vmem [#allocation10], %s1161
        // Predicated region
        $region133: #{tpu_custom_call.1} parent=115 // pred_check
          %p1163 = pneg %p254
        $region134: #{tpu_custom_call.1} parent=115 // pred_check_branch
          %1165 = sbr.rel (%p1163) target = $region136
        $region135: #{tpu_custom_call.1} parent=115 // pred_region
          %1166 = dma.done %s1159, 4096
        $region136: #{tpu_custom_call.1} parent=115 // pred_fallthru
          _
        %s1167 = sand.u32 %s65, 1
        %s1168 = scalar_lea.sflag [#allocation12], %s1167
        %s1169 = sand.u32 %s267, 1
        %s1170 = smul.addr %s1169, 2
        %s1171 = scalar_lea.vmem [#allocation11], %s1170
        // Predicated region
        $region137: #{tpu_custom_call.1} parent=115 // pred_check
          %p1172 = pneg %p280
        $region138: #{tpu_custom_call.1} parent=115 // pred_check_branch
          %1174 = sbr.rel (%p1172) target = $region140
        $region139: #{tpu_custom_call.1} parent=115 // pred_region
          %1175 = dma.done %s1168, 32
        $region140: #{tpu_custom_call.1} parent=115 // pred_fallthru
          _
        %s1176 = sand.u32 %s65, 1
        %s1177 = scalar_lea.sflag [#allocation12], %s1176
        %s1178 = sand.u32 %s293, 1
        %s1179 = smul.addr %s1178, 256
        %s1180 = scalar_lea.vmem [#allocation13], %s1179
        // Predicated region
        $region141: #{tpu_custom_call.1} parent=115 // pred_check
          %p1181 = pneg %p306
        $region142: #{tpu_custom_call.1} parent=115 // pred_check_branch
          %1183 = sbr.rel (%p1181) target = $region144
        $region143: #{tpu_custom_call.1} parent=115 // pred_region
          %1184 = dma.done %s1177, 4096
        $region144: #{tpu_custom_call.1} parent=115 // pred_fallthru
          _
        %s1185 = sand.u32 %s65, 1
        %s1186 = scalar_lea.sflag [#allocation15], %s1185
        %s1187 = sand.u32 %s319, 1
        %s1188 = smul.addr %s1187, 2
        %s1189 = scalar_lea.vmem [#allocation14], %s1188
        // Predicated region
        $region145: #{tpu_custom_call.1} parent=115 // pred_check
          %p1190 = pneg %p332
        $region146: #{tpu_custom_call.1} parent=115 // pred_check_branch
          %1192 = sbr.rel (%p1190) target = $region148
        $region147: #{tpu_custom_call.1} parent=115 // pred_region
          %1193 = dma.done %s1186, 32
        $region148: #{tpu_custom_call.1} parent=115 // pred_fallthru
          _
        %s1194 = sand.u32 %s65, 1
        %s1195 = scalar_lea.sflag [#allocation15], %s1194
        %s1196 = sand.u32 %s345, 1
        %s1197 = smul.addr %s1196, 512
        %s1198 = scalar_lea.vmem [#allocation16], %s1197
        // Predicated region
        $region149: #{tpu_custom_call.1} parent=115 // pred_check
          %p1199 = pneg %p358
        $region150: #{tpu_custom_call.1} parent=115 // pred_check_branch
          %1201 = sbr.rel (%p1199) target = $region152
        $region151: #{tpu_custom_call.1} parent=115 // pred_region
          %1202 = dma.done %s1195, 8192
        $region152: #{tpu_custom_call.1} parent=115 // pred_fallthru
          _
        %s1203 = sand.u32 %s65, 1
        %s1204 = scalar_lea.sflag [#allocation18], %s1203
        %s1205 = sand.u32 %s397, 1
        %s1206 = smul.addr %s1205, 256
        %s1207 = scalar_lea.vmem [#allocation17], %s1206
        // Predicated region
        $region153: #{tpu_custom_call.1} parent=115 // pred_check
          %p1208 = pneg %p410
        $region154: #{tpu_custom_call.1} parent=115 // pred_check_branch
          %1210 = sbr.rel (%p1208) target = $region156
        $region155: #{tpu_custom_call.1} parent=115 // pred_region
          %1211 = dma.done %s1204, 4096
        $region156: #{tpu_custom_call.1} parent=115 // pred_fallthru
          _
        %s1212 = sand.u32 %s65, 1
        %s1213 = scalar_lea.sflag [#allocation18], %s1212
        %s1214 = sand.u32 %s423, 1
        %s1215 = smul.addr %s1214, 2
        %s1216 = scalar_lea.vmem [#allocation19], %s1215
        // Predicated region
        $region157: #{tpu_custom_call.1} parent=115 // pred_check
          %p1217 = pneg %p436
        $region158: #{tpu_custom_call.1} parent=115 // pred_check_branch
          %1219 = sbr.rel (%p1217) target = $region160
        $region159: #{tpu_custom_call.1} parent=115 // pred_region
          %1220 = dma.done %s1213, 32
        $region160: #{tpu_custom_call.1} parent=115 // pred_fallthru
          _
        %s1221 = sand.u32 %s65, 1
        %s1222 = scalar_lea.sflag [#allocation21], %s1221
        %s1223 = sand.u32 %s449, 1
        %s1224 = smul.addr %s1223, 512
        %s1225 = scalar_lea.vmem [#allocation20], %s1224
        // Predicated region
        $region161: #{tpu_custom_call.1} parent=115 // pred_check
          %p1226 = pneg %p462
        $region162: #{tpu_custom_call.1} parent=115 // pred_check_branch
          %1228 = sbr.rel (%p1226) target = $region164
        $region163: #{tpu_custom_call.1} parent=115 // pred_region
          %1229 = dma.done %s1222, 8192
        $region164: #{tpu_custom_call.1} parent=115 // pred_fallthru
          _
        %s1230 = sand.u32 %s65, 1
        %s1231 = scalar_lea.sflag [#allocation21], %s1230
        %s1232 = sand.u32 %s501, 1
        %s1233 = smul.addr %s1232, 512
        %s1234 = scalar_lea.vmem [#allocation22], %s1233
        // Predicated region
        $region165: #{tpu_custom_call.1} parent=115 // pred_check
          %p1235 = pneg %p514
        $region166: #{tpu_custom_call.1} parent=115 // pred_check_branch
          %1237 = sbr.rel (%p1235) target = $region168
        $region167: #{tpu_custom_call.1} parent=115 // pred_region
          %1238 = dma.done %s1231, 8192
        $region168: #{tpu_custom_call.1} parent=115 // pred_fallthru
          _
        %s1239 = sand.u32 %s65, 1
        %s1240 = scalar_lea.sflag [#allocation24], %s1239
        %s1241 = sand.u32 %s553, 1
        %s1242 = smul.addr %s1241, 2
        %s1243 = scalar_lea.vmem [#allocation23], %s1242
        // Predicated region
        $region169: #{tpu_custom_call.1} parent=115 // pred_check
          %p1244 = pneg %p566
        $region170: #{tpu_custom_call.1} parent=115 // pred_check_branch
          %1246 = sbr.rel (%p1244) target = $region172
        $region171: #{tpu_custom_call.1} parent=115 // pred_region
          %1247 = dma.done %s1240, 32
        $region172: #{tpu_custom_call.1} parent=115 // pred_fallthru
          _
        %s1248 = sand.u32 %s65, 1
        %s1249 = scalar_lea.sflag [#allocation24], %s1248
        %s1250 = sand.u32 %s605, 1
        %s1251 = smul.addr %s1250, 2
        %s1252 = scalar_lea.vmem [#allocation25], %s1251
        // Predicated region
        $region173: #{tpu_custom_call.1} parent=115 // pred_check
          %p1253 = pneg %p618
        $region174: #{tpu_custom_call.1} parent=115 // pred_check_branch
          %1255 = sbr.rel (%p1253) target = $region176
        $region175: #{tpu_custom_call.1} parent=115 // pred_region
          %1256 = dma.done %s1249, 32
        $region176: #{tpu_custom_call.1} parent=115 // pred_fallthru
          _
        %s1257 = sand.u32 %s657, 1
        %s1258 = scalar_lea.sflag [#allocation27], %s1257
        %s1259 = sand.u32 %s657, 1
        %s1260 = smul.addr %s1259, 2
        %s1261 = scalar_lea.vmem [#allocation26], %s1260
        // Predicated region
        $region177: #{tpu_custom_call.1} parent=115 // pred_check
          %p1262 = pneg %p670
        $region178: #{tpu_custom_call.1} parent=115 // pred_check_branch
          %1264 = sbr.rel (%p1262) target = $region180
        $region179: #{tpu_custom_call.1} parent=115 // pred_region
          %1265 = dma.done %s1258, 32
        $region180: #{tpu_custom_call.1} parent=115 // pred_fallthru
          _
        %s1266 = sand.u32 %s85, 1
        %s1267 = scalar_lea.sflag [#allocation3], %s1266
        %s1268 = sand.u32 %s85, 1
        %s1269 = smul.addr %s1268, 16
        %s1270 = scalar_lea.vmem [#allocation2], %s1269
        %p1271 = pneg %p98
        %p1272 = pneg %p95
        %s1273 = sand.u32 %s65, 1
        %s1274 = scalar_lea.sflag [#allocation6], %s1273
        %s1275 = sand.u32 %s111, 1
        %s1276 = smul.addr %s1275, 16
        %s1277 = scalar_lea.vmem [#allocation5], %s1276
        %p1278 = pneg %p124
        %p1279 = pneg %p121
        %s1280 = sand.u32 %s65, 1
        %s1281 = scalar_lea.sflag [#allocation6], %s1280
        %s1282 = sand.u32 %s137, 1
        %s1283 = smul.addr %s1282, 4
        %s1284 = scalar_lea.vmem [#allocation7], %s1283
        %p1285 = pneg %p150
        %p1286 = pneg %p147
        %p1287 = scmp.lt.s32.totalorder %s69, 1
        %s1288 = scalar_select %p1287, %s69, 1
        %s1289 = scalar_lea.vmem %s3, %s1288
        %p1290 = pneg %p176
        %p1291 = pneg %p173
        %s1292 = sand.u32 %s65, 1
        %s1293 = scalar_lea.sflag [#allocation9], %s1292
        %s1294 = sand.u32 %s189, 1
        %s1295 = smul.addr %s1294, 768
        %s1296 = scalar_lea.vmem [#allocation8], %s1295
        %p1297 = pneg %p202
        %p1298 = pneg %p199
        %p1299 = scmp.lt.s32.totalorder %s70, 1
        %s1300 = scalar_select %p1299, %s70, 1
        %s1301 = smul.addr %s1300, 6
        %s1302 = scalar_lea.vmem %s5, %s1301
        %p1303 = pneg %p228
        %p1304 = pneg %p225
        %s1305 = sand.u32 %s65, 1
        %s1306 = scalar_lea.sflag [#allocation9], %s1305
        %s1307 = sand.u32 %s241, 1
        %s1308 = smul.addr %s1307, 256
        %s1309 = scalar_lea.vmem [#allocation10], %s1308
        %p1310 = pneg %p254
        %p1311 = pneg %p251
        %s1312 = sand.u32 %s65, 1
        %s1313 = scalar_lea.sflag [#allocation12], %s1312
        %s1314 = sand.u32 %s267, 1
        %s1315 = smul.addr %s1314, 2
        %s1316 = scalar_lea.vmem [#allocation11], %s1315
        %p1317 = pneg %p280
        %p1318 = pneg %p277
        %s1319 = sand.u32 %s65, 1
        %s1320 = scalar_lea.sflag [#allocation12], %s1319
        %s1321 = sand.u32 %s293, 1
        %s1322 = smul.addr %s1321, 256
        %s1323 = scalar_lea.vmem [#allocation13], %s1322
        %p1324 = pneg %p306
        %p1325 = pneg %p303
        %s1326 = sand.u32 %s65, 1
        %s1327 = scalar_lea.sflag [#allocation15], %s1326
        %s1328 = sand.u32 %s319, 1
        %s1329 = smul.addr %s1328, 2
        %s1330 = scalar_lea.vmem [#allocation14], %s1329
        %p1331 = pneg %p332
        %p1332 = pneg %p329
        %s1333 = sand.u32 %s65, 1
        %s1334 = scalar_lea.sflag [#allocation15], %s1333
        %s1335 = sand.u32 %s345, 1
        %s1336 = smul.addr %s1335, 512
        %s1337 = scalar_lea.vmem [#allocation16], %s1336
        %p1338 = pneg %p358
        %p1339 = pneg %p355
        %p1340 = scmp.lt.s32.totalorder %s70, 1
        %s1341 = scalar_select %p1340, %s70, 1
        %s1342 = smul.addr %s1341, 4
        %s1343 = scalar_lea.vmem %s11, %s1342
        %p1344 = pneg %p384
        %p1345 = pneg %p381
        %s1346 = sand.u32 %s65, 1
        %s1347 = scalar_lea.sflag [#allocation18], %s1346
        %s1348 = sand.u32 %s397, 1
        %s1349 = smul.addr %s1348, 256
        %s1350 = scalar_lea.vmem [#allocation17], %s1349
        %p1351 = pneg %p410
        %p1352 = pneg %p407
        %s1353 = sand.u32 %s65, 1
        %s1354 = scalar_lea.sflag [#allocation18], %s1353
        %s1355 = sand.u32 %s423, 1
        %s1356 = smul.addr %s1355, 2
        %s1357 = scalar_lea.vmem [#allocation19], %s1356
        %p1358 = pneg %p436
        %p1359 = pneg %p433
        %s1360 = sand.u32 %s65, 1
        %s1361 = scalar_lea.sflag [#allocation21], %s1360
        %s1362 = sand.u32 %s449, 1
        %s1363 = smul.addr %s1362, 512
        %s1364 = scalar_lea.vmem [#allocation20], %s1363
        %p1365 = pneg %p462
        %p1366 = pneg %p459
        %p1367 = scmp.lt.s32.totalorder %s70, 1
        %s1368 = scalar_select %p1367, %s70, 1
        %s1369 = smul.addr %s1368, 4
        %s1370 = scalar_lea.vmem %s15, %s1369
        %p1371 = pneg %p488
        %p1372 = pneg %p485
        %s1373 = sand.u32 %s65, 1
        %s1374 = scalar_lea.sflag [#allocation21], %s1373
        %s1375 = sand.u32 %s501, 1
        %s1376 = smul.addr %s1375, 512
        %s1377 = scalar_lea.vmem [#allocation22], %s1376
        %p1378 = pneg %p514
        %p1379 = pneg %p511
        %p1380 = scmp.lt.s32.totalorder %s70, 1
        %s1381 = scalar_select %p1380, %s70, 1
        %s1382 = smul.addr %s1381, 2
        %s1383 = scalar_lea.vmem %s17, %s1382
        %p1384 = pneg %p540
        %p1385 = pneg %p537
        %s1386 = sand.u32 %s65, 1
        %s1387 = scalar_lea.sflag [#allocation24], %s1386
        %s1388 = sand.u32 %s553, 1
        %s1389 = smul.addr %s1388, 2
        %s1390 = scalar_lea.vmem [#allocation23], %s1389
        %p1391 = pneg %p566
        %p1392 = pneg %p563
        %p1393 = scmp.lt.s32.totalorder %s70, 1
        %s1394 = scalar_select %p1393, %s70, 1
        %s1395 = smul.addr %s1394, 2
        %s1396 = scalar_lea.vmem %s19, %s1395
        %p1397 = pneg %p592
        %p1398 = pneg %p589
        %s1399 = sand.u32 %s65, 1
        %s1400 = scalar_lea.sflag [#allocation24], %s1399
        %s1401 = sand.u32 %s605, 1
        %s1402 = smul.addr %s1401, 2
        %s1403 = scalar_lea.vmem [#allocation25], %s1402
        %p1404 = pneg %p618
        %p1405 = pneg %p615
        %p1406 = scmp.lt.s32.totalorder %s70, 1
        %s1407 = scalar_select %p1406, %s70, 1
        %s1408 = smul.addr %s1407, 2
        %s1409 = scalar_lea.vmem %s21, %s1408
        %p1410 = pneg %p644
        %p1411 = pneg %p641
        %s1412 = sand.u32 %s657, 1
        %s1413 = scalar_lea.sflag [#allocation27], %s1412
        %s1414 = sand.u32 %s657, 1
        %s1415 = smul.addr %s1414, 2
        %s1416 = scalar_lea.vmem [#allocation26], %s1415
        %p1417 = pneg %p670
        %p1418 = pneg %p667
        %p1419 = scmp.lt.s32.totalorder %s70, 1
        %s1420 = scalar_select %p1419, %s70, 1
        %s1421 = smul.addr %s1420, 2
        %s1422 = scalar_lea.vmem %s23, %s1421
        %p1423 = pneg %p696
        %p1424 = pneg %p693
        %p1425 = pneg %p722
        %p1426 = pneg %p719
        %s1427 = sand.u32 %s709, 1
        %s1428 = scalar_lea.sflag [#allocation4], %s1427
        %s1429 = sand.u32 %s709, 1
        %s1430 = smul.addr %s1429, 16
        %s1431 = scalar_lea.vmem [#allocation28], %s1430
        %p1432 = scmp.lt.s32.totalorder %s69, 1
        %s1433 = scalar_select %p1432, %s69, 1
        %s1434 = scalar_lea.vmem %s3, %s1433
        %p1435 = scmp.lt.s32.totalorder %s70, 1
        %s1436 = scalar_select %p1435, %s70, 1
        %s1437 = smul.addr %s1436, 6
        %s1438 = scalar_lea.vmem %s5, %s1437
        %p1439 = scmp.lt.s32.totalorder %s70, 1
        %s1440 = scalar_select %p1439, %s70, 1
        %s1441 = smul.addr %s1440, 4
        %s1442 = scalar_lea.vmem %s11, %s1441
        %p1443 = scmp.lt.s32.totalorder %s70, 1
        %s1444 = scalar_select %p1443, %s70, 1
        %s1445 = smul.addr %s1444, 4
        %s1446 = scalar_lea.vmem %s15, %s1445
        %p1447 = scmp.lt.s32.totalorder %s70, 1
        %s1448 = scalar_select %p1447, %s70, 1
        %s1449 = smul.addr %s1448, 2
        %s1450 = scalar_lea.vmem %s17, %s1449
        %p1451 = scmp.lt.s32.totalorder %s70, 1
        %s1452 = scalar_select %p1451, %s70, 1
        %s1453 = smul.addr %s1452, 2
        %s1454 = scalar_lea.vmem %s19, %s1453
        %p1455 = scmp.lt.s32.totalorder %s70, 1
        %s1456 = scalar_select %p1455, %s70, 1
        %s1457 = smul.addr %s1456, 2
        %s1458 = scalar_lea.vmem %s21, %s1457
        %p1459 = scmp.lt.s32.totalorder %s70, 1
        %s1460 = scalar_select %p1459, %s70, 1
        %s1461 = smul.addr %s1460, 2
        %s1462 = scalar_lea.vmem %s23, %s1461
        %p1464 = scmp.eq.s32.totalorder %s70, 0
        // Predicated region
        $region181: #{tpu_custom_call.1} parent=115 // pred_check
          %p1465 = pneg %p1464
        $region182: #{tpu_custom_call.1} parent=115 // pred_check_branch
          %1467 = sbr.rel (%p1465) target = $region184
        $region183: #{tpu_custom_call.1} parent=115 // pred_region
          %v1468 = vld [vmem:[%s1126] sm:$0xff]
          %v1469 = vld [vmem:[%s1126 + $0x8] sm:$0xff]
          %1470 = vst [vmem:[%s1431] sm:$0xff] %v1468
          %1471 = vst [vmem:[%s1431 + $0x8] sm:$0xff] %v1469
        $region184: #{tpu_custom_call.1} parent=115 // pred_fallthru
          _
        %v1472 = vld [vmem:[%s1431] sm:$0xff]
        %v1473 = vld [vmem:[%s1431 + $0x8] sm:$0xff]
        %v1474 = vld [vmem:[%s1135] sm:$0xff]
        %v1475 = vld [vmem:[%s1135 + $0x8] sm:$0xff]
        %v1476 = vld [vmem:[%s1144] sm:$0xf]
        %v1477 = vunpack.c.l.bf16 %v1476
        %v1478 = vld [vmem:[%s1434] sm:$0x1]
        %v1479 = vunpack.c.l.bf16 %v1478
        %v1480 = vld [vmem:[%s1153] sm:$0xff]
        %v1481 = vld [vmem:[%s1153 + $0x8] sm:$0xff]
        %v1482 = vld [vmem:[%s1153 + $0x10] sm:$0xff]
        %v1483 = vld [vmem:[%s1153 + $0x18] sm:$0xff]
        %v1484 = vld [vmem:[%s1153 + $0x20] sm:$0xff]
        %v1485 = vld [vmem:[%s1153 + $0x28] sm:$0xff]
        %v1486 = vld [vmem:[%s1153 + $0x30] sm:$0xff]
        %v1487 = vld [vmem:[%s1153 + $0x38] sm:$0xff]
        %v1488 = vld [vmem:[%s1153 + $0x40] sm:$0xff]
        %v1489 = vld [vmem:[%s1153 + $0x48] sm:$0xff]
        %v1490 = vld [vmem:[%s1153 + $0x50] sm:$0xff]
        %v1491 = vld [vmem:[%s1153 + $0x58] sm:$0xff]
        %v1492 = vld [vmem:[%s1153 + $0x60] sm:$0xff]
        %v1493 = vld [vmem:[%s1153 + $0x68] sm:$0xff]
        %v1494 = vld [vmem:[%s1153 + $0x70] sm:$0xff]
        %v1495 = vld [vmem:[%s1153 + $0x78] sm:$0xff]
        %v1496 = vld [vmem:[%s1153 + $0x80] sm:$0xff]
        %v1497 = vld [vmem:[%s1153 + $0x88] sm:$0xff]
        %v1498 = vld [vmem:[%s1153 + $0x90] sm:$0xff]
        %v1499 = vld [vmem:[%s1153 + $0x98] sm:$0xff]
        %v1500 = vld [vmem:[%s1153 + $0xa0] sm:$0xff]
        %v1501 = vld [vmem:[%s1153 + $0xa8] sm:$0xff]
        %v1502 = vld [vmem:[%s1153 + $0xb0] sm:$0xff]
        %v1503 = vld [vmem:[%s1153 + $0xb8] sm:$0xff]
        %v1504 = vld [vmem:[%s1153 + $0xc0] sm:$0xff]
        %v1505 = vld [vmem:[%s1153 + $0xc8] sm:$0xff]
        %v1506 = vld [vmem:[%s1153 + $0xd0] sm:$0xff]
        %v1507 = vld [vmem:[%s1153 + $0xd8] sm:$0xff]
        %v1508 = vld [vmem:[%s1153 + $0xe0] sm:$0xff]
        %v1509 = vld [vmem:[%s1153 + $0xe8] sm:$0xff]
        %v1510 = vld [vmem:[%s1153 + $0xf0] sm:$0xff]
        %v1511 = vld [vmem:[%s1153 + $0xf8] sm:$0xff]
        %v1512 = vld [vmem:[%s1153 + $0x100] sm:$0xff]
        %v1513 = vld [vmem:[%s1153 + $0x108] sm:$0xff]
        %v1514 = vld [vmem:[%s1153 + $0x110] sm:$0xff]
        %v1515 = vld [vmem:[%s1153 + $0x118] sm:$0xff]
        %v1516 = vld [vmem:[%s1153 + $0x120] sm:$0xff]
        %v1517 = vld [vmem:[%s1153 + $0x128] sm:$0xff]
        %v1518 = vld [vmem:[%s1153 + $0x130] sm:$0xff]
        %v1519 = vld [vmem:[%s1153 + $0x138] sm:$0xff]
        %v1520 = vld [vmem:[%s1153 + $0x140] sm:$0xff]
        %v1521 = vld [vmem:[%s1153 + $0x148] sm:$0xff]
        %v1522 = vld [vmem:[%s1153 + $0x150] sm:$0xff]
        %v1523 = vld [vmem:[%s1153 + $0x158] sm:$0xff]
        %v1524 = vld [vmem:[%s1153 + $0x160] sm:$0xff]
        %v1525 = vld [vmem:[%s1153 + $0x168] sm:$0xff]
        %v1526 = vld [vmem:[%s1153 + $0x170] sm:$0xff]
        %v1527 = vld [vmem:[%s1153 + $0x178] sm:$0xff]
        %v1528 = vld [vmem:[%s1153 + $0x180] sm:$0xff]
        %v1529 = vld [vmem:[%s1153 + $0x188] sm:$0xff]
        %v1530 = vld [vmem:[%s1153 + $0x190] sm:$0xff]
        %v1531 = vld [vmem:[%s1153 + $0x198] sm:$0xff]
        %v1532 = vld [vmem:[%s1153 + $0x1a0] sm:$0xff]
        %v1533 = vld [vmem:[%s1153 + $0x1a8] sm:$0xff]
        %v1534 = vld [vmem:[%s1153 + $0x1b0] sm:$0xff]
        %v1535 = vld [vmem:[%s1153 + $0x1b8] sm:$0xff]
        %v1536 = vld [vmem:[%s1153 + $0x1c0] sm:$0xff]
        %v1537 = vld [vmem:[%s1153 + $0x1c8] sm:$0xff]
        %v1538 = vld [vmem:[%s1153 + $0x1d0] sm:$0xff]
        %v1539 = vld [vmem:[%s1153 + $0x1d8] sm:$0xff]
        %v1540 = vld [vmem:[%s1153 + $0x1e0] sm:$0xff]
        %v1541 = vld [vmem:[%s1153 + $0x1e8] sm:$0xff]
        %v1542 = vld [vmem:[%s1153 + $0x1f0] sm:$0xff]
        %v1543 = vld [vmem:[%s1153 + $0x1f8] sm:$0xff]
        %v1544 = vld [vmem:[%s1153 + $0x200] sm:$0xff]
        %v1545 = vld [vmem:[%s1153 + $0x208] sm:$0xff]
        %v1546 = vld [vmem:[%s1153 + $0x210] sm:$0xff]
        %v1547 = vld [vmem:[%s1153 + $0x218] sm:$0xff]
        %v1548 = vld [vmem:[%s1153 + $0x220] sm:$0xff]
        %v1549 = vld [vmem:[%s1153 + $0x228] sm:$0xff]
        %v1550 = vld [vmem:[%s1153 + $0x230] sm:$0xff]
        %v1551 = vld [vmem:[%s1153 + $0x238] sm:$0xff]
        %v1552 = vld [vmem:[%s1153 + $0x240] sm:$0xff]
        %v1553 = vld [vmem:[%s1153 + $0x248] sm:$0xff]
        %v1554 = vld [vmem:[%s1153 + $0x250] sm:$0xff]
        %v1555 = vld [vmem:[%s1153 + $0x258] sm:$0xff]
        %v1556 = vld [vmem:[%s1153 + $0x260] sm:$0xff]
        %v1557 = vld [vmem:[%s1153 + $0x268] sm:$0xff]
        %v1558 = vld [vmem:[%s1153 + $0x270] sm:$0xff]
        %v1559 = vld [vmem:[%s1153 + $0x278] sm:$0xff]
        %v1560 = vld [vmem:[%s1153 + $0x280] sm:$0xff]
        %v1561 = vld [vmem:[%s1153 + $0x288] sm:$0xff]
        %v1562 = vld [vmem:[%s1153 + $0x290] sm:$0xff]
        %v1563 = vld [vmem:[%s1153 + $0x298] sm:$0xff]
        %v1564 = vld [vmem:[%s1153 + $0x2a0] sm:$0xff]
        %v1565 = vld [vmem:[%s1153 + $0x2a8] sm:$0xff]
        %v1566 = vld [vmem:[%s1153 + $0x2b0] sm:$0xff]
        %v1567 = vld [vmem:[%s1153 + $0x2b8] sm:$0xff]
        %v1568 = vld [vmem:[%s1153 + $0x2c0] sm:$0xff]
        %v1569 = vld [vmem:[%s1153 + $0x2c8] sm:$0xff]
        %v1570 = vld [vmem:[%s1153 + $0x2d0] sm:$0xff]
        %v1571 = vld [vmem:[%s1153 + $0x2d8] sm:$0xff]
        %v1572 = vld [vmem:[%s1153 + $0x2e0] sm:$0xff]
        %v1573 = vld [vmem:[%s1153 + $0x2e8] sm:$0xff]
        %v1574 = vld [vmem:[%s1153 + $0x2f0] sm:$0xff]
        %v1575 = vld [vmem:[%s1153 + $0x2f8] sm:$0xff]
        %v1576 = vpack.c.bf16 %v1472, %v1472
        %v1577 = vpack.c.bf16 %v1473, %v1473
        %v1578 = vld [vmem:[%s1438] sm:$0x3f]
        %v1580 = vlaneseq
        %v1581 = vshrl.u32 %v1580, 7
        %v1582 = vsub.s32 0, %v1581
        %v1583 = vrot.slane %v1578, %v1582
        %v1584 = vlaneseq
        %v1585 = vshrl.u32 %v1584, 7
        %v1586 = vsub.s32 1, %v1585
        %v1587 = vrot.slane %v1578, %v1586
        %v1588 = vlaneseq
        %v1589 = vshrl.u32 %v1588, 7
        %v1590 = vsub.s32 2, %v1589
        %v1591 = vrot.slane %v1578, %v1590
        %v1592 = vlaneseq
        %v1593 = vshrl.u32 %v1592, 7
        %v1594 = vsub.s32 3, %v1593
        %v1595 = vrot.slane %v1578, %v1594
        %v1596 = vlaneseq
        %v1597 = vshrl.u32 %v1596, 7
        %v1598 = vsub.s32 4, %v1597
        %v1599 = vrot.slane %v1578, %v1598
        %v1600 = vlaneseq
        %v1601 = vshrl.u32 %v1600, 7
        %v1602 = vsub.s32 5, %v1601
        %v1603 = vrot.slane %v1578, %v1602
        %v1706 = vunpack.c.l.b16 %v1480
        %v1707 = vunpack.c.h.b16 %v1480
        %v1708 = vunpack.c.l.b16 %v1481
        %v1709 = vunpack.c.h.b16 %v1481
        %v1710 = vunpack.c.l.b16 %v1482
        %v1711 = vunpack.c.h.b16 %v1482
        %v1712 = vunpack.c.l.b16 %v1483
        %v1713 = vunpack.c.h.b16 %v1483
        %v1714 = vunpack.c.l.b16 %v1484
        %v1715 = vunpack.c.h.b16 %v1484
        %v1716 = vunpack.c.l.b16 %v1485
        %v1717 = vunpack.c.h.b16 %v1485
        %v1718 = vunpack.c.l.b16 %v1486
        %v1719 = vunpack.c.h.b16 %v1486
        %v1720 = vunpack.c.l.b16 %v1487
        %v1721 = vunpack.c.h.b16 %v1487
        %v1722 = vunpack.c.l.b16 %v1488
        %v1723 = vunpack.c.h.b16 %v1488
        %v1724 = vunpack.c.l.b16 %v1489
        %v1725 = vunpack.c.h.b16 %v1489
        %v1726 = vunpack.c.l.b16 %v1490
        %v1727 = vunpack.c.h.b16 %v1490
        %v1728 = vunpack.c.l.b16 %v1491
        %v1729 = vunpack.c.h.b16 %v1491
        %v1730 = vunpack.c.l.b16 %v1492
        %v1731 = vunpack.c.h.b16 %v1492
        %v1732 = vunpack.c.l.b16 %v1493
        %v1733 = vunpack.c.h.b16 %v1493
        %v1734 = vunpack.c.l.b16 %v1494
        %v1735 = vunpack.c.h.b16 %v1494
        %v1736 = vunpack.c.l.b16 %v1495
        %v1737 = vunpack.c.h.b16 %v1495
        %v1738 = vunpack.c.l.b16 %v1496
        %v1739 = vunpack.c.h.b16 %v1496
        %v1740 = vunpack.c.l.b16 %v1497
        %v1741 = vunpack.c.h.b16 %v1497
        %v1742 = vunpack.c.l.b16 %v1498
        %v1743 = vunpack.c.h.b16 %v1498
        %v1744 = vunpack.c.l.b16 %v1499
        %v1745 = vunpack.c.h.b16 %v1499
        %v1746 = vunpack.c.l.b16 %v1500
        %v1747 = vunpack.c.h.b16 %v1500
        %v1748 = vunpack.c.l.b16 %v1501
        %v1749 = vunpack.c.h.b16 %v1501
        %v1750 = vunpack.c.l.b16 %v1502
        %v1751 = vunpack.c.h.b16 %v1502
        %v1752 = vunpack.c.l.b16 %v1503
        %v1753 = vunpack.c.h.b16 %v1503
        %v1754 = vunpack.c.l.b16 %v1504
        %v1755 = vunpack.c.h.b16 %v1504
        %v1756 = vunpack.c.l.b16 %v1505
        %v1757 = vunpack.c.h.b16 %v1505
        %v1758 = vunpack.c.l.b16 %v1506
        %v1759 = vunpack.c.h.b16 %v1506
        %v1760 = vunpack.c.l.b16 %v1507
        %v1761 = vunpack.c.h.b16 %v1507
        %v1762 = vunpack.c.l.b16 %v1508
        %v1763 = vunpack.c.h.b16 %v1508
        %v1764 = vunpack.c.l.b16 %v1509
        %v1765 = vunpack.c.h.b16 %v1509
        %v1766 = vunpack.c.l.b16 %v1510
        %v1767 = vunpack.c.h.b16 %v1510
        %v1768 = vunpack.c.l.b16 %v1511
        %v1769 = vunpack.c.h.b16 %v1511
        %v1770 = vunpack.c.l.b16 %v1512
        %v1771 = vunpack.c.h.b16 %v1512
        %v1772 = vunpack.c.l.b16 %v1513
        %v1773 = vunpack.c.h.b16 %v1513
        %v1774 = vunpack.c.l.b16 %v1514
        %v1775 = vunpack.c.h.b16 %v1514
        %v1776 = vunpack.c.l.b16 %v1515
        %v1777 = vunpack.c.h.b16 %v1515
        %v1778 = vunpack.c.l.b16 %v1516
        %v1779 = vunpack.c.h.b16 %v1516
        %v1780 = vunpack.c.l.b16 %v1517
        %v1781 = vunpack.c.h.b16 %v1517
        %v1782 = vunpack.c.l.b16 %v1518
        %v1783 = vunpack.c.h.b16 %v1518
        %v1784 = vunpack.c.l.b16 %v1519
        %v1785 = vunpack.c.h.b16 %v1519
        %v1786 = vunpack.c.l.b16 %v1520
        %v1787 = vunpack.c.h.b16 %v1520
        %v1788 = vunpack.c.l.b16 %v1521
        %v1789 = vunpack.c.h.b16 %v1521
        %v1790 = vunpack.c.l.b16 %v1522
        %v1791 = vunpack.c.h.b16 %v1522
        %v1792 = vunpack.c.l.b16 %v1523
        %v1793 = vunpack.c.h.b16 %v1523
        %v1794 = vunpack.c.l.b16 %v1524
        %v1795 = vunpack.c.h.b16 %v1524
        %v1796 = vunpack.c.l.b16 %v1525
        %v1797 = vunpack.c.h.b16 %v1525
        %v1798 = vunpack.c.l.b16 %v1526
        %v1799 = vunpack.c.h.b16 %v1526
        %v1800 = vunpack.c.l.b16 %v1527
        %v1801 = vunpack.c.h.b16 %v1527
        %v1802 = vunpack.c.l.b16 %v1528
        %v1803 = vunpack.c.h.b16 %v1528
        %v1804 = vunpack.c.l.b16 %v1529
        %v1805 = vunpack.c.h.b16 %v1529
        %v1806 = vunpack.c.l.b16 %v1530
        %v1807 = vunpack.c.h.b16 %v1530
        %v1808 = vunpack.c.l.b16 %v1531
        %v1809 = vunpack.c.h.b16 %v1531
        %v1810 = vunpack.c.l.b16 %v1532
        %v1811 = vunpack.c.h.b16 %v1532
        %v1812 = vunpack.c.l.b16 %v1533
        %v1813 = vunpack.c.h.b16 %v1533
        %v1814 = vunpack.c.l.b16 %v1534
        %v1815 = vunpack.c.h.b16 %v1534
        %v1816 = vunpack.c.l.b16 %v1535
        %v1817 = vunpack.c.h.b16 %v1535
        %v1818 = vunpack.c.l.b16 %v1536
        %v1819 = vunpack.c.h.b16 %v1536
        %v1820 = vunpack.c.l.b16 %v1537
        %v1821 = vunpack.c.h.b16 %v1537
        %v1822 = vunpack.c.l.b16 %v1538
        %v1823 = vunpack.c.h.b16 %v1538
        %v1824 = vunpack.c.l.b16 %v1539
        %v1825 = vunpack.c.h.b16 %v1539
        %v1826 = vunpack.c.l.b16 %v1540
        %v1827 = vunpack.c.h.b16 %v1540
        %v1828 = vunpack.c.l.b16 %v1541
        %v1829 = vunpack.c.h.b16 %v1541
        %v1830 = vunpack.c.l.b16 %v1542
        %v1831 = vunpack.c.h.b16 %v1542
        %v1832 = vunpack.c.l.b16 %v1543
        %v1833 = vunpack.c.h.b16 %v1543
        %v1834 = vunpack.c.l.b16 %v1544
        %v1835 = vunpack.c.h.b16 %v1544
        %v1836 = vunpack.c.l.b16 %v1545
        %v1837 = vunpack.c.h.b16 %v1545
        %v1838 = vunpack.c.l.b16 %v1546
        %v1839 = vunpack.c.h.b16 %v1546
        %v1840 = vunpack.c.l.b16 %v1547
        %v1841 = vunpack.c.h.b16 %v1547
        %v1842 = vunpack.c.l.b16 %v1548
        %v1843 = vunpack.c.h.b16 %v1548
        %v1844 = vunpack.c.l.b16 %v1549
        %v1845 = vunpack.c.h.b16 %v1549
        %v1846 = vunpack.c.l.b16 %v1550
        %v1847 = vunpack.c.h.b16 %v1550
        %v1848 = vunpack.c.l.b16 %v1551
        %v1849 = vunpack.c.h.b16 %v1551
        %v1850 = vunpack.c.l.b16 %v1552
        %v1851 = vunpack.c.h.b16 %v1552
        %v1852 = vunpack.c.l.b16 %v1553
        %v1853 = vunpack.c.h.b16 %v1553
        %v1854 = vunpack.c.l.b16 %v1554
        %v1855 = vunpack.c.h.b16 %v1554
        %v1856 = vunpack.c.l.b16 %v1555
        %v1857 = vunpack.c.h.b16 %v1555
        %v1858 = vunpack.c.l.b16 %v1556
        %v1859 = vunpack.c.h.b16 %v1556
        %v1860 = vunpack.c.l.b16 %v1557
        %v1861 = vunpack.c.h.b16 %v1557
        %v1862 = vunpack.c.l.b16 %v1558
        %v1863 = vunpack.c.h.b16 %v1558
        %v1864 = vunpack.c.l.b16 %v1559
        %v1865 = vunpack.c.h.b16 %v1559
        %v1866 = vunpack.c.l.b16 %v1560
        %v1867 = vunpack.c.h.b16 %v1560
        %v1868 = vunpack.c.l.b16 %v1561
        %v1869 = vunpack.c.h.b16 %v1561
        %v1870 = vunpack.c.l.b16 %v1562
        %v1871 = vunpack.c.h.b16 %v1562
        %v1872 = vunpack.c.l.b16 %v1563
        %v1873 = vunpack.c.h.b16 %v1563
        %v1874 = vunpack.c.l.b16 %v1564
        %v1875 = vunpack.c.h.b16 %v1564
        %v1876 = vunpack.c.l.b16 %v1565
        %v1877 = vunpack.c.h.b16 %v1565
        %v1878 = vunpack.c.l.b16 %v1566
        %v1879 = vunpack.c.h.b16 %v1566
        %v1880 = vunpack.c.l.b16 %v1567
        %v1881 = vunpack.c.h.b16 %v1567
        %v1882 = vunpack.c.l.b16 %v1568
        %v1883 = vunpack.c.h.b16 %v1568
        %v1884 = vunpack.c.l.b16 %v1569
        %v1885 = vunpack.c.h.b16 %v1569
        %v1886 = vunpack.c.l.b16 %v1570
        %v1887 = vunpack.c.h.b16 %v1570
        %v1888 = vunpack.c.l.b16 %v1571
        %v1889 = vunpack.c.h.b16 %v1571
        %v1890 = vunpack.c.l.b16 %v1572
        %v1891 = vunpack.c.h.b16 %v1572
        %v1892 = vunpack.c.l.b16 %v1573
        %v1893 = vunpack.c.h.b16 %v1573
        %v1894 = vunpack.c.l.b16 %v1574
        %v1895 = vunpack.c.h.b16 %v1574
        %v1896 = vunpack.c.l.b16 %v1575
        %v1897 = vunpack.c.h.b16 %v1575
        %v1898 = vpack.c.b16 %v1712, %v1706
        %v1899 = vpack.c.b16 %v1713, %v1707
        %v1900 = vpack.c.b16 %v1714, %v1708
        %v1901 = vpack.c.b16 %v1715, %v1709
        %v1902 = vpack.c.b16 %v1716, %v1710
        %v1903 = vpack.c.b16 %v1717, %v1711
        %v1904 = vpack.c.b16 %v1724, %v1718
        %v1905 = vpack.c.b16 %v1725, %v1719
        %v1906 = vpack.c.b16 %v1726, %v1720
        %v1907 = vpack.c.b16 %v1727, %v1721
        %v1908 = vpack.c.b16 %v1728, %v1722
        %v1909 = vpack.c.b16 %v1729, %v1723
        %v1910 = vpack.c.b16 %v1736, %v1730
        %v1911 = vpack.c.b16 %v1737, %v1731
        %v1912 = vpack.c.b16 %v1738, %v1732
        %v1913 = vpack.c.b16 %v1739, %v1733
        %v1914 = vpack.c.b16 %v1740, %v1734
        %v1915 = vpack.c.b16 %v1741, %v1735
        %v1916 = vpack.c.b16 %v1748, %v1742
        %v1917 = vpack.c.b16 %v1749, %v1743
        %v1918 = vpack.c.b16 %v1750, %v1744
        %v1919 = vpack.c.b16 %v1751, %v1745
        %v1920 = vpack.c.b16 %v1752, %v1746
        %v1921 = vpack.c.b16 %v1753, %v1747
        %v1922 = vpack.c.b16 %v1760, %v1754
        %v1923 = vpack.c.b16 %v1761, %v1755
        %v1924 = vpack.c.b16 %v1762, %v1756
        %v1925 = vpack.c.b16 %v1763, %v1757
        %v1926 = vpack.c.b16 %v1764, %v1758
        %v1927 = vpack.c.b16 %v1765, %v1759
        %v1928 = vpack.c.b16 %v1772, %v1766
        %v1929 = vpack.c.b16 %v1773, %v1767
        %v1930 = vpack.c.b16 %v1774, %v1768
        %v1931 = vpack.c.b16 %v1775, %v1769
        %v1932 = vpack.c.b16 %v1776, %v1770
        %v1933 = vpack.c.b16 %v1777, %v1771
        %v1934 = vpack.c.b16 %v1784, %v1778
        %v1935 = vpack.c.b16 %v1785, %v1779
        %v1936 = vpack.c.b16 %v1786, %v1780
        %v1937 = vpack.c.b16 %v1787, %v1781
        %v1938 = vpack.c.b16 %v1788, %v1782
        %v1939 = vpack.c.b16 %v1789, %v1783
        %v1940 = vpack.c.b16 %v1796, %v1790
        %v1941 = vpack.c.b16 %v1797, %v1791
        %v1942 = vpack.c.b16 %v1798, %v1792
        %v1943 = vpack.c.b16 %v1799, %v1793
        %v1944 = vpack.c.b16 %v1800, %v1794
        %v1945 = vpack.c.b16 %v1801, %v1795
        %v1946 = vpack.c.b16 %v1808, %v1802
        %v1947 = vpack.c.b16 %v1809, %v1803
        %v1948 = vpack.c.b16 %v1810, %v1804
        %v1949 = vpack.c.b16 %v1811, %v1805
        %v1950 = vpack.c.b16 %v1812, %v1806
        %v1951 = vpack.c.b16 %v1813, %v1807
        %v1952 = vpack.c.b16 %v1820, %v1814
        %v1953 = vpack.c.b16 %v1821, %v1815
        %v1954 = vpack.c.b16 %v1822, %v1816
        %v1955 = vpack.c.b16 %v1823, %v1817
        %v1956 = vpack.c.b16 %v1824, %v1818
        %v1957 = vpack.c.b16 %v1825, %v1819
        %v1958 = vpack.c.b16 %v1832, %v1826
        %v1959 = vpack.c.b16 %v1833, %v1827
        %v1960 = vpack.c.b16 %v1834, %v1828
        %v1961 = vpack.c.b16 %v1835, %v1829
        %v1962 = vpack.c.b16 %v1836, %v1830
        %v1963 = vpack.c.b16 %v1837, %v1831
        %v1964 = vpack.c.b16 %v1844, %v1838
        %v1965 = vpack.c.b16 %v1845, %v1839
        %v1966 = vpack.c.b16 %v1846, %v1840
        %v1967 = vpack.c.b16 %v1847, %v1841
        %v1968 = vpack.c.b16 %v1848, %v1842
        %v1969 = vpack.c.b16 %v1849, %v1843
        %v1970 = vpack.c.b16 %v1856, %v1850
        %v1971 = vpack.c.b16 %v1857, %v1851
        %v1972 = vpack.c.b16 %v1858, %v1852
        %v1973 = vpack.c.b16 %v1859, %v1853
        %v1974 = vpack.c.b16 %v1860, %v1854
        %v1975 = vpack.c.b16 %v1861, %v1855
        %v1976 = vpack.c.b16 %v1868, %v1862
        %v1977 = vpack.c.b16 %v1869, %v1863
        %v1978 = vpack.c.b16 %v1870, %v1864
        %v1979 = vpack.c.b16 %v1871, %v1865
        %v1980 = vpack.c.b16 %v1872, %v1866
        %v1981 = vpack.c.b16 %v1873, %v1867
        %v1982 = vpack.c.b16 %v1880, %v1874
        %v1983 = vpack.c.b16 %v1881, %v1875
        %v1984 = vpack.c.b16 %v1882, %v1876
        %v1985 = vpack.c.b16 %v1883, %v1877
        %v1986 = vpack.c.b16 %v1884, %v1878
        %v1987 = vpack.c.b16 %v1885, %v1879
        %v1988 = vpack.c.b16 %v1892, %v1886
        %v1989 = vpack.c.b16 %v1893, %v1887
        %v1990 = vpack.c.b16 %v1894, %v1888
        %v1991 = vpack.c.b16 %v1895, %v1889
        %v1992 = vpack.c.b16 %v1896, %v1890
        %v1993 = vpack.c.b16 %v1897, %v1891
        %2090 = vmatprep.subr.bf16.mxu0 %v1941
        %2091 = vmatpush1.bf16.msra.mxu0 %v1940
        %2092 = vmatprep.subr.bf16.mxu0 %v1935
        %2093 = vmatpush1.bf16.msra.mxu0 %v1934
        %2094 = vmatprep.subr.bf16.mxu0 %v1929
        %2095 = vmatpush1.bf16.msra.mxu0 %v1928
        %2096 = vmatprep.subr.bf16.mxu0 %v1923
        %2097 = vmatpush1.bf16.msra.mxu0 %v1922
        %2098 = vmatprep.subr.bf16.mxu0 %v1917
        %2099 = vmatpush1.bf16.msra.mxu0 %v1916
        %2100 = vmatprep.subr.bf16.mxu0 %v1911
        %2101 = vmatpush1.bf16.msra.mxu0 %v1910
        %2102 = vmatprep.subr.bf16.mxu0 %v1905
        %2103 = vmatpush1.bf16.msra.mxu0 %v1904
        %2104 = vmatprep.subr.bf16.mxu0 %v1899
        %2105 = vmatpush1.bf16.msra.mxu0 %v1898
        %2106 = vmatprep.subr.bf16.mxu0 %v1989
        %2107 = vmatpush2.bf16.msra.mxu0 %v1988
        %2108 = vmatprep.subr.bf16.mxu0 %v1983
        %2109 = vmatpush2.bf16.msra.mxu0 %v1982
        %2110 = vmatprep.subr.bf16.mxu0 %v1977
        %2111 = vmatpush2.bf16.msra.mxu0 %v1976
        %2112 = vmatprep.subr.bf16.mxu0 %v1971
        %2113 = vmatpush2.bf16.msra.mxu0 %v1970
        %2114 = vmatprep.subr.bf16.mxu0 %v1965
        %2115 = vmatpush2.bf16.msra.mxu0 %v1964
        %2116 = vmatprep.subr.bf16.mxu0 %v1959
        %2117 = vmatpush2.bf16.msra.mxu0 %v1958
        %2118 = vmatprep.subr.bf16.mxu0 %v1953
        %2119 = vmatpush2.bf16.msra.mxu0 %v1952
        %2120 = vmatprep.subr.bf16.mxu0 %v1947
        %2121 = vmatpush2.bf16.msra.mxu0 %v1946
        %2122 = vmatprep.mubr.bf16.mxu0 %v1577
        %2123 = vmatmul.mubr.bf16.gmra.mxu0 %v1576
        %v2124 = vpop.f32.mrf.mxu0
        %v2125 = vadd.f32 %v1583, %v2124
        %v2126 = vpop.f32.mrf.mxu0
        %v2127 = vadd.f32 %v1587, %v2126
        %v2128 = vpop.f32.mrf.mxu0
        %v2129 = vpop.f32.mrf.mxu0
        %2130 = vdwg.mxu0
        %2131 = vmatprep.subr.bf16.mxu0 %v1943
        %2132 = vmatpush1.bf16.msra.mxu0 %v1942
        %2133 = vmatprep.subr.bf16.mxu0 %v1937
        %2134 = vmatpush1.bf16.msra.mxu0 %v1936
        %2135 = vmatprep.subr.bf16.mxu0 %v1931
        %2136 = vmatpush1.bf16.msra.mxu0 %v1930
        %2137 = vmatprep.subr.bf16.mxu0 %v1925
        %2138 = vmatpush1.bf16.msra.mxu0 %v1924
        %2139 = vmatprep.subr.bf16.mxu0 %v1919
        %2140 = vmatpush1.bf16.msra.mxu0 %v1918
        %2141 = vmatprep.subr.bf16.mxu0 %v1913
        %2142 = vmatpush1.bf16.msra.mxu0 %v1912
        %2143 = vmatprep.subr.bf16.mxu0 %v1907
        %2144 = vmatpush1.bf16.msra.mxu0 %v1906
        %2145 = vmatprep.subr.bf16.mxu0 %v1901
        %2146 = vmatpush1.bf16.msra.mxu0 %v1900
        %2147 = vmatprep.subr.bf16.mxu0 %v1991
        %2148 = vmatpush2.bf16.msra.mxu0 %v1990
        %2149 = vmatprep.subr.bf16.mxu0 %v1985
        %2150 = vmatpush2.bf16.msra.mxu0 %v1984
        %2151 = vmatprep.subr.bf16.mxu0 %v1979
        %2152 = vmatpush2.bf16.msra.mxu0 %v1978
        %2153 = vmatprep.subr.bf16.mxu0 %v1973
        %2154 = vmatpush2.bf16.msra.mxu0 %v1972
        %2155 = vmatprep.subr.bf16.mxu0 %v1967
        %2156 = vmatpush2.bf16.msra.mxu0 %v1966
        %2157 = vmatprep.subr.bf16.mxu0 %v1961
        %2158 = vmatpush2.bf16.msra.mxu0 %v1960
        %2159 = vmatprep.subr.bf16.mxu0 %v1955
        %2160 = vmatpush2.bf16.msra.mxu0 %v1954
        %2161 = vmatprep.subr.bf16.mxu0 %v1949
        %2162 = vmatpush2.bf16.msra.mxu0 %v1948
        %2163 = vmatprep.mubr.bf16.mxu0 %v1577
        %2164 = vmatmul.mubr.bf16.gmra.mxu0 %v1576
        %v2165 = vpop.f32.mrf.mxu0
        %v2166 = vadd.f32 %v1591, %v2165
        %v2167 = vpop.f32.mrf.mxu0
        %v2168 = vadd.f32 %v1595, %v2167
        %v2169 = vpop.f32.mrf.mxu0
        %v2170 = vpop.f32.mrf.mxu0
        %2171 = vdwg.mxu0
        %2172 = vmatprep.subr.bf16.mxu0 %v1945
        %2173 = vmatpush1.bf16.msra.mxu0 %v1944
        %2174 = vmatprep.subr.bf16.mxu0 %v1939
        %2175 = vmatpush1.bf16.msra.mxu0 %v1938
        %2176 = vmatprep.subr.bf16.mxu0 %v1933
        %2177 = vmatpush1.bf16.msra.mxu0 %v1932
        %2178 = vmatprep.subr.bf16.mxu0 %v1927
        %2179 = vmatpush1.bf16.msra.mxu0 %v1926
        %2180 = vmatprep.subr.bf16.mxu0 %v1921
        %2181 = vmatpush1.bf16.msra.mxu0 %v1920
        %2182 = vmatprep.subr.bf16.mxu0 %v1915
        %2183 = vmatpush1.bf16.msra.mxu0 %v1914
        %2184 = vmatprep.subr.bf16.mxu0 %v1909
        %2185 = vmatpush1.bf16.msra.mxu0 %v1908
        %2186 = vmatprep.subr.bf16.mxu0 %v1903
        %2187 = vmatpush1.bf16.msra.mxu0 %v1902
        %2188 = vmatprep.subr.bf16.mxu0 %v1993
        %2189 = vmatpush2.bf16.msra.mxu0 %v1992
        %2190 = vmatprep.subr.bf16.mxu0 %v1987
        %2191 = vmatpush2.bf16.msra.mxu0 %v1986
        %2192 = vmatprep.subr.bf16.mxu0 %v1981
        %2193 = vmatpush2.bf16.msra.mxu0 %v1980
        %2194 = vmatprep.subr.bf16.mxu0 %v1975
        %2195 = vmatpush2.bf16.msra.mxu0 %v1974
        %2196 = vmatprep.subr.bf16.mxu0 %v1969
        %2197 = vmatpush2.bf16.msra.mxu0 %v1968
        %2198 = vmatprep.subr.bf16.mxu0 %v1963
        %2199 = vmatpush2.bf16.msra.mxu0 %v1962
        %2200 = vmatprep.subr.bf16.mxu0 %v1957
        %2201 = vmatpush2.bf16.msra.mxu0 %v1956
        %2202 = vmatprep.subr.bf16.mxu0 %v1951
        %2203 = vmatpush2.bf16.msra.mxu0 %v1950
        %2204 = vmatprep.mubr.bf16.mxu0 %v1577
        %2205 = vmatmul.mubr.bf16.gmra.mxu0 %v1576
        %v2206 = vpop.f32.mrf.mxu0
        %v2207 = vadd.f32 %v1599, %v2206
        %v2208 = vpop.f32.mrf.mxu0
        %v2209 = vadd.f32 %v1603, %v2208
        %v2210 = vpop.f32.mrf.mxu0
        %v2211 = vpop.f32.mrf.mxu0
        %2212 = vdwg.mxu0
        %v2213 = vpack.c.bf16 %v2125, %v2125
        %v2214 = vpack.c.bf16 %v2127, %v2127
        %v2215 = vpack.c.bf16 %v2166, %v2166
        %v2216 = vpack.c.bf16 %v2168, %v2168
        %v2217 = vpack.c.bf16 %v2207, %v2207
        %v2218 = vpack.c.bf16 %v2209, %v2209
        %2219 = vmatprep.subr.bf16.mxu0 0
        %2220 = vmatpush1.bf16.xpose.msra.mxu0 0
        %2221 = vmatprep.subr.bf16.mxu0 0
        %2222 = vmatpush1.bf16.xpose.msra.mxu0 0
        %2223 = vmatprep.subr.bf16.mxu0 0
        %2224 = vmatpush1.bf16.xpose.msra.mxu0 0
        %2225 = vmatprep.subr.bf16.mxu0 0
        %2226 = vmatpush1.bf16.xpose.msra.mxu0 0
        %2227 = vmatprep.subr.bf16.mxu0 0
        %2228 = vmatpush1.bf16.xpose.msra.mxu0 0
        %2229 = vmatprep.subr.bf16.mxu0 0
        %2230 = vmatpush1.bf16.xpose.msra.mxu0 0
        %2231 = vmatprep.subr.bf16.mxu0 0
        %2232 = vmatpush1.bf16.xpose.msra.mxu0 0
        %2233 = vmatprep.subr.bf16.mxu0 0
        %2234 = vmatpush1.bf16.xpose.msra.mxu0 %v2215
        %2235 = vmatprep.subr.bf16.mxu0 0
        %2236 = vmatpush2.bf16.xpose.msra.mxu0 0
        %2237 = vmatprep.subr.bf16.mxu0 0
        %2238 = vmatpush2.bf16.xpose.msra.mxu0 0
        %2239 = vmatprep.subr.bf16.mxu0 0
        %2240 = vmatpush2.bf16.xpose.msra.mxu0 0
        %2241 = vmatprep.subr.bf16.mxu0 0
        %2242 = vmatpush2.bf16.xpose.msra.mxu0 0
        %2243 = vmatprep.subr.bf16.mxu0 0
        %2244 = vmatpush2.bf16.xpose.msra.mxu0 0
        %2245 = vmatprep.subr.bf16.mxu0 0
        %2246 = vmatpush2.bf16.xpose.msra.mxu0 0
        %2247 = vmatprep.subr.bf16.mxu0 0
        %2248 = vmatpush2.bf16.xpose.msra.mxu0 0
        %2249 = vmatprep.subr.bf16.mxu0 0
        %2250 = vmatpush2.bf16.xpose.msra.mxu0 0
        %2251 = vmatprep.mubr.bf16.mxu0 0
        %2252 = vmatmul.mubr.bf16.gmra.mxu0 %v2213
        %v2253 = vpop.f32.mrf.mxu0
        %v2254 = vadd.f32 %v1477, %v2253
        %v2255 = vpop.f32.mrf.mxu0
        %v2256 = vpop.f32.mrf.mxu0
        %v2257 = vpop.f32.mrf.mxu0
        %2258 = vdwg.mxu0
        %vm2259 = vcmask 64512
        %v2260 = vsel %vm2259, %v2254, -inf
        %2261 = vmax.xlane.f32.xlu0 %v2260
        %v2262 = vpop.xlane.xlu0 %2261
        %v2263 = vsub.f32 %v2254, %v2262
        %v2264 = vmul.f32 %v2263, 1.442695
        %v2265 = vpow.pop %v2264
        %v2266 = vsel %vm2259, %v2265, 0.0
        %2267 = vadd.xlane.f32.xlu0 %v2266
        %v2268 = vpop.xlane.xlu0 %2267
        %v2269 = vrcp.pop %v2268
        %v2270 = vmul.f32 %v2265, %v2269
        %v2271 = vpack.c.bf16 %v2270, %v2270
        %v2273 = vsel %vm2259, %v2271, 0
        %vm2275 = vcmask 1043456
        %v2277 = vsel %vm2275, %v2217, 0
        %2279 = vmatprep.subr.bf16.mxu0 0
        %2280 = vmatpush1.bf16.msra.mxu0 0
        %2281 = vmatprep.subr.bf16.mxu0 0
        %2282 = vmatpush1.bf16.msra.mxu0 0
        %2283 = vmatprep.subr.bf16.mxu0 0
        %2284 = vmatpush1.bf16.msra.mxu0 0
        %2285 = vmatprep.subr.bf16.mxu0 0
        %2286 = vmatpush1.bf16.msra.mxu0 0
        %2287 = vmatprep.subr.bf16.mxu0 0
        %2288 = vmatpush1.bf16.msra.mxu0 0
        %2289 = vmatprep.subr.bf16.mxu0 0
        %2290 = vmatpush1.bf16.msra.mxu0 0
        %2291 = vmatprep.subr.bf16.mxu0 0
        %2292 = vmatpush1.bf16.msra.mxu0 0
        %2293 = vmatprep.subr.bf16.mxu0 0
        %2294 = vmatpush1.bf16.msra.mxu0 %v2277
        %2295 = vmatprep.subr.bf16.mxu0 0
        %2296 = vmatpush2.bf16.msra.mxu0 0
        %2297 = vmatprep.subr.bf16.mxu0 0
        %2298 = vmatpush2.bf16.msra.mxu0 0
        %2299 = vmatprep.subr.bf16.mxu0 0
        %2300 = vmatpush2.bf16.msra.mxu0 0
        %2301 = vmatprep.subr.bf16.mxu0 0
        %2302 = vmatpush2.bf16.msra.mxu0 0
        %2303 = vmatprep.subr.bf16.mxu0 0
        %2304 = vmatpush2.bf16.msra.mxu0 0
        %2305 = vmatprep.subr.bf16.mxu0 0
        %2306 = vmatpush2.bf16.msra.mxu0 0
        %2307 = vmatprep.subr.bf16.mxu0 0
        %2308 = vmatpush2.bf16.msra.mxu0 0
        %2309 = vmatprep.subr.bf16.mxu0 0
        %2310 = vmatpush2.bf16.msra.mxu0 0
        %2311 = vmatprep.mubr.bf16.mxu0 0
        %2312 = vmatmul.mubr.bf16.gmra.mxu0 %v2273
        %v2313 = vpop.f32.mrf.mxu0
        %v2314 = vadd.f32 0.0, %v2313
        %v2315 = vpop.f32.mrf.mxu0
        %v2316 = vpop.f32.mrf.mxu0
        %v2317 = vpop.f32.mrf.mxu0
        %2318 = vdwg.mxu0
        %2319 = vmatprep.subr.bf16.mxu0 0
        %2320 = vmatpush1.bf16.xpose.msra.mxu0 0
        %2321 = vmatprep.subr.bf16.mxu0 0
        %2322 = vmatpush1.bf16.xpose.msra.mxu0 0
        %2323 = vmatprep.subr.bf16.mxu0 0
        %2324 = vmatpush1.bf16.xpose.msra.mxu0 0
        %2325 = vmatprep.subr.bf16.mxu0 0
        %2326 = vmatpush1.bf16.xpose.msra.mxu0 0
        %2327 = vmatprep.subr.bf16.mxu0 0
        %2328 = vmatpush1.bf16.xpose.msra.mxu0 0
        %2329 = vmatprep.subr.bf16.mxu0 0
        %2330 = vmatpush1.bf16.xpose.msra.mxu0 0
        %2331 = vmatprep.subr.bf16.mxu0 0
        %2332 = vmatpush1.bf16.xpose.msra.mxu0 0
        %2333 = vmatprep.subr.bf16.mxu0 0
        %2334 = vmatpush1.bf16.xpose.msra.mxu0 %v2216
        %2335 = vmatprep.subr.bf16.mxu0 0
        %2336 = vmatpush2.bf16.xpose.msra.mxu0 0
        %2337 = vmatprep.subr.bf16.mxu0 0
        %2338 = vmatpush2.bf16.xpose.msra.mxu0 0
        %2339 = vmatprep.subr.bf16.mxu0 0
        %2340 = vmatpush2.bf16.xpose.msra.mxu0 0
        %2341 = vmatprep.subr.bf16.mxu0 0
        %2342 = vmatpush2.bf16.xpose.msra.mxu0 0
        %2343 = vmatprep.subr.bf16.mxu0 0
        %2344 = vmatpush2.bf16.xpose.msra.mxu0 0
        %2345 = vmatprep.subr.bf16.mxu0 0
        %2346 = vmatpush2.bf16.xpose.msra.mxu0 0
        %2347 = vmatprep.subr.bf16.mxu0 0
        %2348 = vmatpush2.bf16.xpose.msra.mxu0 0
        %2349 = vmatprep.subr.bf16.mxu0 0
        %2350 = vmatpush2.bf16.xpose.msra.mxu0 0
        %2351 = vmatprep.mubr.bf16.mxu0 0
        %2352 = vmatmul.mubr.bf16.gmra.mxu0 %v2214
        %v2353 = vpop.f32.mrf.mxu0
        %v2354 = vadd.f32 %v1477, %v2353
        %v2355 = vpop.f32.mrf.mxu0
        %v2356 = vpop.f32.mrf.mxu0
        %v2357 = vpop.f32.mrf.mxu0
        %2358 = vdwg.mxu0
        %v2359 = vsel %vm2259, %v2354, -inf
        %2360 = vmax.xlane.f32.xlu0 %v2359
        %v2361 = vpop.xlane.xlu0 %2360
        %v2362 = vsub.f32 %v2354, %v2361
        %v2363 = vmul.f32 %v2362, 1.442695
        %v2364 = vpow.pop %v2363
        %v2365 = vsel %vm2259, %v2364, 0.0
        %2366 = vadd.xlane.f32.xlu0 %v2365
        %v2367 = vpop.xlane.xlu0 %2366
        %v2368 = vrcp.pop %v2367
        %v2369 = vmul.f32 %v2364, %v2368
        %v2370 = vpack.c.bf16 %v2369, %v2369
        %v2372 = vsel %vm2259, %v2370, 0
        %v2375 = vsel %vm2275, %v2218, 0
        %2377 = vmatprep.subr.bf16.mxu0 0
        %2378 = vmatpush1.bf16.msra.mxu0 0
        %2379 = vmatprep.subr.bf16.mxu0 0
        %2380 = vmatpush1.bf16.msra.mxu0 0
        %2381 = vmatprep.subr.bf16.mxu0 0
        %2382 = vmatpush1.bf16.msra.mxu0 0
        %2383 = vmatprep.subr.bf16.mxu0 0
        %2384 = vmatpush1.bf16.msra.mxu0 0
        %2385 = vmatprep.subr.bf16.mxu0 0
        %2386 = vmatpush1.bf16.msra.mxu0 0
        %2387 = vmatprep.subr.bf16.mxu0 0
        %2388 = vmatpush1.bf16.msra.mxu0 0
        %2389 = vmatprep.subr.bf16.mxu0 0
        %2390 = vmatpush1.bf16.msra.mxu0 0
        %2391 = vmatprep.subr.bf16.mxu0 0
        %2392 = vmatpush1.bf16.msra.mxu0 %v2375
        %2393 = vmatprep.subr.bf16.mxu0 0
        %2394 = vmatpush2.bf16.msra.mxu0 0
        %2395 = vmatprep.subr.bf16.mxu0 0
        %2396 = vmatpush2.bf16.msra.mxu0 0
        %2397 = vmatprep.subr.bf16.mxu0 0
        %2398 = vmatpush2.bf16.msra.mxu0 0
        %2399 = vmatprep.subr.bf16.mxu0 0
        %2400 = vmatpush2.bf16.msra.mxu0 0
        %2401 = vmatprep.subr.bf16.mxu0 0
        %2402 = vmatpush2.bf16.msra.mxu0 0
        %2403 = vmatprep.subr.bf16.mxu0 0
        %2404 = vmatpush2.bf16.msra.mxu0 0
        %2405 = vmatprep.subr.bf16.mxu0 0
        %2406 = vmatpush2.bf16.msra.mxu0 0
        %2407 = vmatprep.subr.bf16.mxu0 0
        %2408 = vmatpush2.bf16.msra.mxu0 0
        %2409 = vmatprep.mubr.bf16.mxu0 0
        %2410 = vmatmul.mubr.bf16.gmra.mxu0 %v2372
        %v2411 = vpop.f32.mrf.mxu0
        %v2412 = vadd.f32 0.0, %v2411
        %v2413 = vpop.f32.mrf.mxu0
        %v2414 = vpop.f32.mrf.mxu0
        %v2415 = vpop.f32.mrf.mxu0
        %2416 = vdwg.mxu0
        %v2417 = vld [vmem:[%s1162] sm:$0xff]
        %v2418 = vld [vmem:[%s1162 + $0x8] sm:$0xff]
        %v2419 = vld [vmem:[%s1162 + $0x10] sm:$0xff]
        %v2420 = vld [vmem:[%s1162 + $0x18] sm:$0xff]
        %v2421 = vld [vmem:[%s1162 + $0x20] sm:$0xff]
        %v2422 = vld [vmem:[%s1162 + $0x28] sm:$0xff]
        %v2423 = vld [vmem:[%s1162 + $0x30] sm:$0xff]
        %v2424 = vld [vmem:[%s1162 + $0x38] sm:$0xff]
        %v2425 = vld [vmem:[%s1162 + $0x40] sm:$0xff]
        %v2426 = vld [vmem:[%s1162 + $0x48] sm:$0xff]
        %v2427 = vld [vmem:[%s1162 + $0x50] sm:$0xff]
        %v2428 = vld [vmem:[%s1162 + $0x58] sm:$0xff]
        %v2429 = vld [vmem:[%s1162 + $0x60] sm:$0xff]
        %v2430 = vld [vmem:[%s1162 + $0x68] sm:$0xff]
        %v2431 = vld [vmem:[%s1162 + $0x70] sm:$0xff]
        %v2432 = vld [vmem:[%s1162 + $0x78] sm:$0xff]
        %v2433 = vld [vmem:[%s1162 + $0x80] sm:$0xff]
        %v2434 = vld [vmem:[%s1162 + $0x88] sm:$0xff]
        %v2435 = vld [vmem:[%s1162 + $0x90] sm:$0xff]
        %v2436 = vld [vmem:[%s1162 + $0x98] sm:$0xff]
        %v2437 = vld [vmem:[%s1162 + $0xa0] sm:$0xff]
        %v2438 = vld [vmem:[%s1162 + $0xa8] sm:$0xff]
        %v2439 = vld [vmem:[%s1162 + $0xb0] sm:$0xff]
        %v2440 = vld [vmem:[%s1162 + $0xb8] sm:$0xff]
        %v2441 = vld [vmem:[%s1162 + $0xc0] sm:$0xff]
        %v2442 = vld [vmem:[%s1162 + $0xc8] sm:$0xff]
        %v2443 = vld [vmem:[%s1162 + $0xd0] sm:$0xff]
        %v2444 = vld [vmem:[%s1162 + $0xd8] sm:$0xff]
        %v2445 = vld [vmem:[%s1162 + $0xe0] sm:$0xff]
        %v2446 = vld [vmem:[%s1162 + $0xe8] sm:$0xff]
        %v2447 = vld [vmem:[%s1162 + $0xf0] sm:$0xff]
        %v2448 = vld [vmem:[%s1162 + $0xf8] sm:$0xff]
        %v2449 = vpack.c.bf16 %v2314, %v2314
        %v2450 = vpack.c.bf16 %v2412, %v2412
        %v2451 = vld [vmem:[%s1171] sm:$0x3]
        %v2453 = vlaneseq
        %v2454 = vshrl.u32 %v2453, 7
        %v2455 = vsub.s32 0, %v2454
        %v2456 = vrot.slane %v2451, %v2455
        %v2457 = vlaneseq
        %v2458 = vshrl.u32 %v2457, 7
        %v2459 = vsub.s32 1, %v2458
        %v2460 = vrot.slane %v2451, %v2459
        %v2495 = vunpack.c.l.b16 %v2417
        %v2496 = vunpack.c.h.b16 %v2417
        %v2497 = vunpack.c.l.b16 %v2418
        %v2498 = vunpack.c.h.b16 %v2418
        %v2499 = vunpack.c.l.b16 %v2419
        %v2500 = vunpack.c.h.b16 %v2419
        %v2501 = vunpack.c.l.b16 %v2420
        %v2502 = vunpack.c.h.b16 %v2420
        %v2503 = vunpack.c.l.b16 %v2421
        %v2504 = vunpack.c.h.b16 %v2421
        %v2505 = vunpack.c.l.b16 %v2422
        %v2506 = vunpack.c.h.b16 %v2422
        %v2507 = vunpack.c.l.b16 %v2423
        %v2508 = vunpack.c.h.b16 %v2423
        %v2509 = vunpack.c.l.b16 %v2424
        %v2510 = vunpack.c.h.b16 %v2424
        %v2511 = vunpack.c.l.b16 %v2425
        %v2512 = vunpack.c.h.b16 %v2425
        %v2513 = vunpack.c.l.b16 %v2426
        %v2514 = vunpack.c.h.b16 %v2426
        %v2515 = vunpack.c.l.b16 %v2427
        %v2516 = vunpack.c.h.b16 %v2427
        %v2517 = vunpack.c.l.b16 %v2428
        %v2518 = vunpack.c.h.b16 %v2428
        %v2519 = vunpack.c.l.b16 %v2429
        %v2520 = vunpack.c.h.b16 %v2429
        %v2521 = vunpack.c.l.b16 %v2430
        %v2522 = vunpack.c.h.b16 %v2430
        %v2523 = vunpack.c.l.b16 %v2431
        %v2524 = vunpack.c.h.b16 %v2431
        %v2525 = vunpack.c.l.b16 %v2432
        %v2526 = vunpack.c.h.b16 %v2432
        %v2527 = vunpack.c.l.b16 %v2433
        %v2528 = vunpack.c.h.b16 %v2433
        %v2529 = vunpack.c.l.b16 %v2434
        %v2530 = vunpack.c.h.b16 %v2434
        %v2531 = vunpack.c.l.b16 %v2435
        %v2532 = vunpack.c.h.b16 %v2435
        %v2533 = vunpack.c.l.b16 %v2436
        %v2534 = vunpack.c.h.b16 %v2436
        %v2535 = vunpack.c.l.b16 %v2437
        %v2536 = vunpack.c.h.b16 %v2437
        %v2537 = vunpack.c.l.b16 %v2438
        %v2538 = vunpack.c.h.b16 %v2438
        %v2539 = vunpack.c.l.b16 %v2439
        %v2540 = vunpack.c.h.b16 %v2439
        %v2541 = vunpack.c.l.b16 %v2440
        %v2542 = vunpack.c.h.b16 %v2440
        %v2543 = vunpack.c.l.b16 %v2441
        %v2544 = vunpack.c.h.b16 %v2441
        %v2545 = vunpack.c.l.b16 %v2442
        %v2546 = vunpack.c.h.b16 %v2442
        %v2547 = vunpack.c.l.b16 %v2443
        %v2548 = vunpack.c.h.b16 %v2443
        %v2549 = vunpack.c.l.b16 %v2444
        %v2550 = vunpack.c.h.b16 %v2444
        %v2551 = vunpack.c.l.b16 %v2445
        %v2552 = vunpack.c.h.b16 %v2445
        %v2553 = vunpack.c.l.b16 %v2446
        %v2554 = vunpack.c.h.b16 %v2446
        %v2555 = vunpack.c.l.b16 %v2447
        %v2556 = vunpack.c.h.b16 %v2447
        %v2557 = vunpack.c.l.b16 %v2448
        %v2558 = vunpack.c.h.b16 %v2448
        %v2559 = vpack.c.b16 %v2497, %v2495
        %v2560 = vpack.c.b16 %v2498, %v2496
        %v2561 = vpack.c.b16 %v2501, %v2499
        %v2562 = vpack.c.b16 %v2502, %v2500
        %v2563 = vpack.c.b16 %v2505, %v2503
        %v2564 = vpack.c.b16 %v2506, %v2504
        %v2565 = vpack.c.b16 %v2509, %v2507
        %v2566 = vpack.c.b16 %v2510, %v2508
        %v2567 = vpack.c.b16 %v2513, %v2511
        %v2568 = vpack.c.b16 %v2514, %v2512
        %v2569 = vpack.c.b16 %v2517, %v2515
        %v2570 = vpack.c.b16 %v2518, %v2516
        %v2571 = vpack.c.b16 %v2521, %v2519
        %v2572 = vpack.c.b16 %v2522, %v2520
        %v2573 = vpack.c.b16 %v2525, %v2523
        %v2574 = vpack.c.b16 %v2526, %v2524
        %v2575 = vpack.c.b16 %v2529, %v2527
        %v2576 = vpack.c.b16 %v2530, %v2528
        %v2577 = vpack.c.b16 %v2533, %v2531
        %v2578 = vpack.c.b16 %v2534, %v2532
        %v2579 = vpack.c.b16 %v2537, %v2535
        %v2580 = vpack.c.b16 %v2538, %v2536
        %v2581 = vpack.c.b16 %v2541, %v2539
        %v2582 = vpack.c.b16 %v2542, %v2540
        %v2583 = vpack.c.b16 %v2545, %v2543
        %v2584 = vpack.c.b16 %v2546, %v2544
        %v2585 = vpack.c.b16 %v2549, %v2547
        %v2586 = vpack.c.b16 %v2550, %v2548
        %v2587 = vpack.c.b16 %v2553, %v2551
        %v2588 = vpack.c.b16 %v2554, %v2552
        %v2589 = vpack.c.b16 %v2557, %v2555
        %v2590 = vpack.c.b16 %v2558, %v2556
        %2623 = vmatprep.subr.bf16.mxu0 %v2574
        %2624 = vmatpush1.bf16.msra.mxu0 %v2573
        %2625 = vmatprep.subr.bf16.mxu0 %v2572
        %2626 = vmatpush1.bf16.msra.mxu0 %v2571
        %2627 = vmatprep.subr.bf16.mxu0 %v2570
        %2628 = vmatpush1.bf16.msra.mxu0 %v2569
        %2629 = vmatprep.subr.bf16.mxu0 %v2568
        %2630 = vmatpush1.bf16.msra.mxu0 %v2567
        %2631 = vmatprep.subr.bf16.mxu0 %v2566
        %2632 = vmatpush1.bf16.msra.mxu0 %v2565
        %2633 = vmatprep.subr.bf16.mxu0 %v2564
        %2634 = vmatpush1.bf16.msra.mxu0 %v2563
        %2635 = vmatprep.subr.bf16.mxu0 %v2562
        %2636 = vmatpush1.bf16.msra.mxu0 %v2561
        %2637 = vmatprep.subr.bf16.mxu0 %v2560
        %2638 = vmatpush1.bf16.msra.mxu0 %v2559
        %2639 = vmatprep.subr.bf16.mxu0 %v2590
        %2640 = vmatpush2.bf16.msra.mxu0 %v2589
        %2641 = vmatprep.subr.bf16.mxu0 %v2588
        %2642 = vmatpush2.bf16.msra.mxu0 %v2587
        %2643 = vmatprep.subr.bf16.mxu0 %v2586
        %2644 = vmatpush2.bf16.msra.mxu0 %v2585
        %2645 = vmatprep.subr.bf16.mxu0 %v2584
        %2646 = vmatpush2.bf16.msra.mxu0 %v2583
        %2647 = vmatprep.subr.bf16.mxu0 %v2582
        %2648 = vmatpush2.bf16.msra.mxu0 %v2581
        %2649 = vmatprep.subr.bf16.mxu0 %v2580
        %2650 = vmatpush2.bf16.msra.mxu0 %v2579
        %2651 = vmatprep.subr.bf16.mxu0 %v2578
        %2652 = vmatpush2.bf16.msra.mxu0 %v2577
        %2653 = vmatprep.subr.bf16.mxu0 %v2576
        %2654 = vmatpush2.bf16.msra.mxu0 %v2575
        %2655 = vmatprep.mubr.bf16.mxu0 %v2450
        %2656 = vmatmul.mubr.bf16.gmra.mxu0 %v2449
        %v2657 = vpop.f32.mrf.mxu0
        %v2658 = vadd.f32 %v2456, %v2657
        %v2659 = vpop.f32.mrf.mxu0
        %v2660 = vadd.f32 %v2460, %v2659
        %v2661 = vpop.f32.mrf.mxu0
        %v2662 = vpop.f32.mrf.mxu0
        %2663 = vdwg.mxu0
        %v2664 = vadd.f32 %v1472, %v2658
        %v2665 = vadd.f32 %v1473, %v2660
        %v2666 = vld [vmem:[%s1243] sm:$0x3]
        %v2667 = vld [vmem:[%s1454] sm:$0x3]
        %v2668 = vadd.f32 %v2664, %v2665
        %2669 = vadd.xlane.f32.xlu0 %v2668
        %v2670 = vpop.xlane.xlu0 %2669
        %v2671 = vrcp.pop 256.0
        %v2672 = vmul.f32 %v2670, %v2671
        %v2673 = vsub.f32 %v2664, %v2672
        %v2674 = vsub.f32 %v2665, %v2672
        %v2675 = vmul.f32 %v2673, %v2673
        %v2676 = vmul.f32 %v2674, %v2674
        %v2677 = vadd.f32 %v2675, %v2676
        %2678 = vadd.xlane.f32.xlu0 %v2677
        %v2679 = vpop.xlane.xlu0 %2678
        %v2680 = vmul.f32 %v2679, %v2671
        %v2681 = vadd.f32 %v2680, 1e-05
        %v2682 = vrsqrt.pop %v2681
        %v2683 = vmul.f32 %v2673, %v2682
        %v2684 = vmul.f32 %v2674, %v2682
        %v2686 = vlaneseq
        %v2687 = vshrl.u32 %v2686, 7
        %v2688 = vsub.s32 0, %v2687
        %v2689 = vrot.slane %v2666, %v2688
        %v2690 = vlaneseq
        %v2691 = vshrl.u32 %v2690, 7
        %v2692 = vsub.s32 1, %v2691
        %v2693 = vrot.slane %v2666, %v2692
        %v2696 = vmul.f32 %v2683, %v2689
        %v2697 = vmul.f32 %v2684, %v2693
        %v2699 = vlaneseq
        %v2700 = vshrl.u32 %v2699, 7
        %v2701 = vsub.s32 0, %v2700
        %v2702 = vrot.slane %v2667, %v2701
        %v2703 = vlaneseq
        %v2704 = vshrl.u32 %v2703, 7
        %v2705 = vsub.s32 1, %v2704
        %v2706 = vrot.slane %v2667, %v2705
        %v2709 = vadd.f32 %v2696, %v2702
        %v2710 = vadd.f32 %v2697, %v2706
        %v2711 = vld [vmem:[%s1180] sm:$0xff]
        %v2712 = vld [vmem:[%s1180 + $0x8] sm:$0xff]
        %v2713 = vld [vmem:[%s1180 + $0x10] sm:$0xff]
        %v2714 = vld [vmem:[%s1180 + $0x18] sm:$0xff]
        %v2715 = vld [vmem:[%s1180 + $0x20] sm:$0xff]
        %v2716 = vld [vmem:[%s1180 + $0x28] sm:$0xff]
        %v2717 = vld [vmem:[%s1180 + $0x30] sm:$0xff]
        %v2718 = vld [vmem:[%s1180 + $0x38] sm:$0xff]
        %v2719 = vld [vmem:[%s1180 + $0x40] sm:$0xff]
        %v2720 = vld [vmem:[%s1180 + $0x48] sm:$0xff]
        %v2721 = vld [vmem:[%s1180 + $0x50] sm:$0xff]
        %v2722 = vld [vmem:[%s1180 + $0x58] sm:$0xff]
        %v2723 = vld [vmem:[%s1180 + $0x60] sm:$0xff]
        %v2724 = vld [vmem:[%s1180 + $0x68] sm:$0xff]
        %v2725 = vld [vmem:[%s1180 + $0x70] sm:$0xff]
        %v2726 = vld [vmem:[%s1180 + $0x78] sm:$0xff]
        %v2727 = vld [vmem:[%s1180 + $0x80] sm:$0xff]
        %v2728 = vld [vmem:[%s1180 + $0x88] sm:$0xff]
        %v2729 = vld [vmem:[%s1180 + $0x90] sm:$0xff]
        %v2730 = vld [vmem:[%s1180 + $0x98] sm:$0xff]
        %v2731 = vld [vmem:[%s1180 + $0xa0] sm:$0xff]
        %v2732 = vld [vmem:[%s1180 + $0xa8] sm:$0xff]
        %v2733 = vld [vmem:[%s1180 + $0xb0] sm:$0xff]
        %v2734 = vld [vmem:[%s1180 + $0xb8] sm:$0xff]
        %v2735 = vld [vmem:[%s1180 + $0xc0] sm:$0xff]
        %v2736 = vld [vmem:[%s1180 + $0xc8] sm:$0xff]
        %v2737 = vld [vmem:[%s1180 + $0xd0] sm:$0xff]
        %v2738 = vld [vmem:[%s1180 + $0xd8] sm:$0xff]
        %v2739 = vld [vmem:[%s1180 + $0xe0] sm:$0xff]
        %v2740 = vld [vmem:[%s1180 + $0xe8] sm:$0xff]
        %v2741 = vld [vmem:[%s1180 + $0xf0] sm:$0xff]
        %v2742 = vld [vmem:[%s1180 + $0xf8] sm:$0xff]
        %v2743 = vpack.c.bf16 %v2709, %v2709
        %v2744 = vpack.c.bf16 %v2710, %v2710
        %v2745 = vld [vmem:[%s1189] sm:$0x3]
        %v2747 = vlaneseq
        %v2748 = vshrl.u32 %v2747, 7
        %v2749 = vsub.s32 0, %v2748
        %v2750 = vrot.slane %v2745, %v2749
        %v2751 = vlaneseq
        %v2752 = vshrl.u32 %v2751, 7
        %v2753 = vsub.s32 1, %v2752
        %v2754 = vrot.slane %v2745, %v2753
        %v2789 = vunpack.c.l.b16 %v2711
        %v2790 = vunpack.c.h.b16 %v2711
        %v2791 = vunpack.c.l.b16 %v2712
        %v2792 = vunpack.c.h.b16 %v2712
        %v2793 = vunpack.c.l.b16 %v2713
        %v2794 = vunpack.c.h.b16 %v2713
        %v2795 = vunpack.c.l.b16 %v2714
        %v2796 = vunpack.c.h.b16 %v2714
        %v2797 = vunpack.c.l.b16 %v2715
        %v2798 = vunpack.c.h.b16 %v2715
        %v2799 = vunpack.c.l.b16 %v2716
        %v2800 = vunpack.c.h.b16 %v2716
        %v2801 = vunpack.c.l.b16 %v2717
        %v2802 = vunpack.c.h.b16 %v2717
        %v2803 = vunpack.c.l.b16 %v2718
        %v2804 = vunpack.c.h.b16 %v2718
        %v2805 = vunpack.c.l.b16 %v2719
        %v2806 = vunpack.c.h.b16 %v2719
        %v2807 = vunpack.c.l.b16 %v2720
        %v2808 = vunpack.c.h.b16 %v2720
        %v2809 = vunpack.c.l.b16 %v2721
        %v2810 = vunpack.c.h.b16 %v2721
        %v2811 = vunpack.c.l.b16 %v2722
        %v2812 = vunpack.c.h.b16 %v2722
        %v2813 = vunpack.c.l.b16 %v2723
        %v2814 = vunpack.c.h.b16 %v2723
        %v2815 = vunpack.c.l.b16 %v2724
        %v2816 = vunpack.c.h.b16 %v2724
        %v2817 = vunpack.c.l.b16 %v2725
        %v2818 = vunpack.c.h.b16 %v2725
        %v2819 = vunpack.c.l.b16 %v2726
        %v2820 = vunpack.c.h.b16 %v2726
        %v2821 = vunpack.c.l.b16 %v2727
        %v2822 = vunpack.c.h.b16 %v2727
        %v2823 = vunpack.c.l.b16 %v2728
        %v2824 = vunpack.c.h.b16 %v2728
        %v2825 = vunpack.c.l.b16 %v2729
        %v2826 = vunpack.c.h.b16 %v2729
        %v2827 = vunpack.c.l.b16 %v2730
        %v2828 = vunpack.c.h.b16 %v2730
        %v2829 = vunpack.c.l.b16 %v2731
        %v2830 = vunpack.c.h.b16 %v2731
        %v2831 = vunpack.c.l.b16 %v2732
        %v2832 = vunpack.c.h.b16 %v2732
        %v2833 = vunpack.c.l.b16 %v2733
        %v2834 = vunpack.c.h.b16 %v2733
        %v2835 = vunpack.c.l.b16 %v2734
        %v2836 = vunpack.c.h.b16 %v2734
        %v2837 = vunpack.c.l.b16 %v2735
        %v2838 = vunpack.c.h.b16 %v2735
        %v2839 = vunpack.c.l.b16 %v2736
        %v2840 = vunpack.c.h.b16 %v2736
        %v2841 = vunpack.c.l.b16 %v2737
        %v2842 = vunpack.c.h.b16 %v2737
        %v2843 = vunpack.c.l.b16 %v2738
        %v2844 = vunpack.c.h.b16 %v2738
        %v2845 = vunpack.c.l.b16 %v2739
        %v2846 = vunpack.c.h.b16 %v2739
        %v2847 = vunpack.c.l.b16 %v2740
        %v2848 = vunpack.c.h.b16 %v2740
        %v2849 = vunpack.c.l.b16 %v2741
        %v2850 = vunpack.c.h.b16 %v2741
        %v2851 = vunpack.c.l.b16 %v2742
        %v2852 = vunpack.c.h.b16 %v2742
        %v2853 = vpack.c.b16 %v2791, %v2789
        %v2854 = vpack.c.b16 %v2792, %v2790
        %v2855 = vpack.c.b16 %v2795, %v2793
        %v2856 = vpack.c.b16 %v2796, %v2794
        %v2857 = vpack.c.b16 %v2799, %v2797
        %v2858 = vpack.c.b16 %v2800, %v2798
        %v2859 = vpack.c.b16 %v2803, %v2801
        %v2860 = vpack.c.b16 %v2804, %v2802
        %v2861 = vpack.c.b16 %v2807, %v2805
        %v2862 = vpack.c.b16 %v2808, %v2806
        %v2863 = vpack.c.b16 %v2811, %v2809
        %v2864 = vpack.c.b16 %v2812, %v2810
        %v2865 = vpack.c.b16 %v2815, %v2813
        %v2866 = vpack.c.b16 %v2816, %v2814
        %v2867 = vpack.c.b16 %v2819, %v2817
        %v2868 = vpack.c.b16 %v2820, %v2818
        %v2869 = vpack.c.b16 %v2823, %v2821
        %v2870 = vpack.c.b16 %v2824, %v2822
        %v2871 = vpack.c.b16 %v2827, %v2825
        %v2872 = vpack.c.b16 %v2828, %v2826
        %v2873 = vpack.c.b16 %v2831, %v2829
        %v2874 = vpack.c.b16 %v2832, %v2830
        %v2875 = vpack.c.b16 %v2835, %v2833
        %v2876 = vpack.c.b16 %v2836, %v2834
        %v2877 = vpack.c.b16 %v2839, %v2837
        %v2878 = vpack.c.b16 %v2840, %v2838
        %v2879 = vpack.c.b16 %v2843, %v2841
        %v2880 = vpack.c.b16 %v2844, %v2842
        %v2881 = vpack.c.b16 %v2847, %v2845
        %v2882 = vpack.c.b16 %v2848, %v2846
        %v2883 = vpack.c.b16 %v2851, %v2849
        %v2884 = vpack.c.b16 %v2852, %v2850
        %2917 = vmatprep.subr.bf16.mxu0 %v2868
        %2918 = vmatpush1.bf16.msra.mxu0 %v2867
        %2919 = vmatprep.subr.bf16.mxu0 %v2866
        %2920 = vmatpush1.bf16.msra.mxu0 %v2865
        %2921 = vmatprep.subr.bf16.mxu0 %v2864
        %2922 = vmatpush1.bf16.msra.mxu0 %v2863
        %2923 = vmatprep.subr.bf16.mxu0 %v2862
        %2924 = vmatpush1.bf16.msra.mxu0 %v2861
        %2925 = vmatprep.subr.bf16.mxu0 %v2860
        %2926 = vmatpush1.bf16.msra.mxu0 %v2859
        %2927 = vmatprep.subr.bf16.mxu0 %v2858
        %2928 = vmatpush1.bf16.msra.mxu0 %v2857
        %2929 = vmatprep.subr.bf16.mxu0 %v2856
        %2930 = vmatpush1.bf16.msra.mxu0 %v2855
        %2931 = vmatprep.subr.bf16.mxu0 %v2854
        %2932 = vmatpush1.bf16.msra.mxu0 %v2853
        %2933 = vmatprep.subr.bf16.mxu0 %v2884
        %2934 = vmatpush2.bf16.msra.mxu0 %v2883
        %2935 = vmatprep.subr.bf16.mxu0 %v2882
        %2936 = vmatpush2.bf16.msra.mxu0 %v2881
        %2937 = vmatprep.subr.bf16.mxu0 %v2880
        %2938 = vmatpush2.bf16.msra.mxu0 %v2879
        %2939 = vmatprep.subr.bf16.mxu0 %v2878
        %2940 = vmatpush2.bf16.msra.mxu0 %v2877
        %2941 = vmatprep.subr.bf16.mxu0 %v2876
        %2942 = vmatpush2.bf16.msra.mxu0 %v2875
        %2943 = vmatprep.subr.bf16.mxu0 %v2874
        %2944 = vmatpush2.bf16.msra.mxu0 %v2873
        %2945 = vmatprep.subr.bf16.mxu0 %v2872
        %2946 = vmatpush2.bf16.msra.mxu0 %v2871
        %2947 = vmatprep.subr.bf16.mxu0 %v2870
        %2948 = vmatpush2.bf16.msra.mxu0 %v2869
        %2949 = vmatprep.mubr.bf16.mxu0 %v2744
        %2950 = vmatmul.mubr.bf16.gmra.mxu0 %v2743
        %v2951 = vpop.f32.mrf.mxu0
        %v2952 = vadd.f32 %v2750, %v2951
        %v2953 = vpop.f32.mrf.mxu0
        %v2954 = vadd.f32 %v2754, %v2953
        %v2955 = vpop.f32.mrf.mxu0
        %v2956 = vpop.f32.mrf.mxu0
        %2957 = vdwg.mxu0
        %v2958 = vld [vmem:[%s1198] sm:$0xff]
        %v2959 = vld [vmem:[%s1198 + $0x8] sm:$0xff]
        %v2960 = vld [vmem:[%s1198 + $0x10] sm:$0xff]
        %v2961 = vld [vmem:[%s1198 + $0x18] sm:$0xff]
        %v2962 = vld [vmem:[%s1198 + $0x20] sm:$0xff]
        %v2963 = vld [vmem:[%s1198 + $0x28] sm:$0xff]
        %v2964 = vld [vmem:[%s1198 + $0x30] sm:$0xff]
        %v2965 = vld [vmem:[%s1198 + $0x38] sm:$0xff]
        %v2966 = vld [vmem:[%s1198 + $0x40] sm:$0xff]
        %v2967 = vld [vmem:[%s1198 + $0x48] sm:$0xff]
        %v2968 = vld [vmem:[%s1198 + $0x50] sm:$0xff]
        %v2969 = vld [vmem:[%s1198 + $0x58] sm:$0xff]
        %v2970 = vld [vmem:[%s1198 + $0x60] sm:$0xff]
        %v2971 = vld [vmem:[%s1198 + $0x68] sm:$0xff]
        %v2972 = vld [vmem:[%s1198 + $0x70] sm:$0xff]
        %v2973 = vld [vmem:[%s1198 + $0x78] sm:$0xff]
        %v2974 = vld [vmem:[%s1198 + $0x80] sm:$0xff]
        %v2975 = vld [vmem:[%s1198 + $0x88] sm:$0xff]
        %v2976 = vld [vmem:[%s1198 + $0x90] sm:$0xff]
        %v2977 = vld [vmem:[%s1198 + $0x98] sm:$0xff]
        %v2978 = vld [vmem:[%s1198 + $0xa0] sm:$0xff]
        %v2979 = vld [vmem:[%s1198 + $0xa8] sm:$0xff]
        %v2980 = vld [vmem:[%s1198 + $0xb0] sm:$0xff]
        %v2981 = vld [vmem:[%s1198 + $0xb8] sm:$0xff]
        %v2982 = vld [vmem:[%s1198 + $0xc0] sm:$0xff]
        %v2983 = vld [vmem:[%s1198 + $0xc8] sm:$0xff]
        %v2984 = vld [vmem:[%s1198 + $0xd0] sm:$0xff]
        %v2985 = vld [vmem:[%s1198 + $0xd8] sm:$0xff]
        %v2986 = vld [vmem:[%s1198 + $0xe0] sm:$0xff]
        %v2987 = vld [vmem:[%s1198 + $0xe8] sm:$0xff]
        %v2988 = vld [vmem:[%s1198 + $0xf0] sm:$0xff]
        %v2989 = vld [vmem:[%s1198 + $0xf8] sm:$0xff]
        %v2990 = vld [vmem:[%s1198 + $0x100] sm:$0xff]
        %v2991 = vld [vmem:[%s1198 + $0x108] sm:$0xff]
        %v2992 = vld [vmem:[%s1198 + $0x110] sm:$0xff]
        %v2993 = vld [vmem:[%s1198 + $0x118] sm:$0xff]
        %v2994 = vld [vmem:[%s1198 + $0x120] sm:$0xff]
        %v2995 = vld [vmem:[%s1198 + $0x128] sm:$0xff]
        %v2996 = vld [vmem:[%s1198 + $0x130] sm:$0xff]
        %v2997 = vld [vmem:[%s1198 + $0x138] sm:$0xff]
        %v2998 = vld [vmem:[%s1198 + $0x140] sm:$0xff]
        %v2999 = vld [vmem:[%s1198 + $0x148] sm:$0xff]
        %v3000 = vld [vmem:[%s1198 + $0x150] sm:$0xff]
        %v3001 = vld [vmem:[%s1198 + $0x158] sm:$0xff]
        %v3002 = vld [vmem:[%s1198 + $0x160] sm:$0xff]
        %v3003 = vld [vmem:[%s1198 + $0x168] sm:$0xff]
        %v3004 = vld [vmem:[%s1198 + $0x170] sm:$0xff]
        %v3005 = vld [vmem:[%s1198 + $0x178] sm:$0xff]
        %v3006 = vld [vmem:[%s1198 + $0x180] sm:$0xff]
        %v3007 = vld [vmem:[%s1198 + $0x188] sm:$0xff]
        %v3008 = vld [vmem:[%s1198 + $0x190] sm:$0xff]
        %v3009 = vld [vmem:[%s1198 + $0x198] sm:$0xff]
        %v3010 = vld [vmem:[%s1198 + $0x1a0] sm:$0xff]
        %v3011 = vld [vmem:[%s1198 + $0x1a8] sm:$0xff]
        %v3012 = vld [vmem:[%s1198 + $0x1b0] sm:$0xff]
        %v3013 = vld [vmem:[%s1198 + $0x1b8] sm:$0xff]
        %v3014 = vld [vmem:[%s1198 + $0x1c0] sm:$0xff]
        %v3015 = vld [vmem:[%s1198 + $0x1c8] sm:$0xff]
        %v3016 = vld [vmem:[%s1198 + $0x1d0] sm:$0xff]
        %v3017 = vld [vmem:[%s1198 + $0x1d8] sm:$0xff]
        %v3018 = vld [vmem:[%s1198 + $0x1e0] sm:$0xff]
        %v3019 = vld [vmem:[%s1198 + $0x1e8] sm:$0xff]
        %v3020 = vld [vmem:[%s1198 + $0x1f0] sm:$0xff]
        %v3021 = vld [vmem:[%s1198 + $0x1f8] sm:$0xff]
        %v3022 = vld [vmem:[%s1442] sm:$0xf]
        %v3024 = vlaneseq
        %v3025 = vshrl.u32 %v3024, 7
        %v3026 = vsub.s32 0, %v3025
        %v3027 = vrot.slane %v3022, %v3026
        %v3028 = vlaneseq
        %v3029 = vshrl.u32 %v3028, 7
        %v3030 = vsub.s32 1, %v3029
        %v3031 = vrot.slane %v3022, %v3030
        %v3032 = vlaneseq
        %v3033 = vshrl.u32 %v3032, 7
        %v3034 = vsub.s32 2, %v3033
        %v3035 = vrot.slane %v3022, %v3034
        %v3036 = vlaneseq
        %v3037 = vshrl.u32 %v3036, 7
        %v3038 = vsub.s32 3, %v3037
        %v3039 = vrot.slane %v3022, %v3038
        %v3046 = vunpack.c.l.b16 %v1474
        %v3047 = vunpack.c.h.b16 %v1474
        %v3048 = vunpack.c.l.b16 %v1475
        %v3049 = vunpack.c.h.b16 %v1475
        %v3050 = vpack.c.b16 %v3048, %v3046
        %v3051 = vpack.c.b16 %v3049, %v3047
        %v3118 = vunpack.c.l.b16 %v2958
        %v3119 = vunpack.c.h.b16 %v2958
        %v3120 = vunpack.c.l.b16 %v2959
        %v3121 = vunpack.c.h.b16 %v2959
        %v3122 = vunpack.c.l.b16 %v2960
        %v3123 = vunpack.c.h.b16 %v2960
        %v3124 = vunpack.c.l.b16 %v2961
        %v3125 = vunpack.c.h.b16 %v2961
        %v3126 = vunpack.c.l.b16 %v2962
        %v3127 = vunpack.c.h.b16 %v2962
        %v3128 = vunpack.c.l.b16 %v2963
        %v3129 = vunpack.c.h.b16 %v2963
        %v3130 = vunpack.c.l.b16 %v2964
        %v3131 = vunpack.c.h.b16 %v2964
        %v3132 = vunpack.c.l.b16 %v2965
        %v3133 = vunpack.c.h.b16 %v2965
        %v3134 = vunpack.c.l.b16 %v2966
        %v3135 = vunpack.c.h.b16 %v2966
        %v3136 = vunpack.c.l.b16 %v2967
        %v3137 = vunpack.c.h.b16 %v2967
        %v3138 = vunpack.c.l.b16 %v2968
        %v3139 = vunpack.c.h.b16 %v2968
        %v3140 = vunpack.c.l.b16 %v2969
        %v3141 = vunpack.c.h.b16 %v2969
        %v3142 = vunpack.c.l.b16 %v2970
        %v3143 = vunpack.c.h.b16 %v2970
        %v3144 = vunpack.c.l.b16 %v2971
        %v3145 = vunpack.c.h.b16 %v2971
        %v3146 = vunpack.c.l.b16 %v2972
        %v3147 = vunpack.c.h.b16 %v2972
        %v3148 = vunpack.c.l.b16 %v2973
        %v3149 = vunpack.c.h.b16 %v2973
        %v3150 = vunpack.c.l.b16 %v2974
        %v3151 = vunpack.c.h.b16 %v2974
        %v3152 = vunpack.c.l.b16 %v2975
        %v3153 = vunpack.c.h.b16 %v2975
        %v3154 = vunpack.c.l.b16 %v2976
        %v3155 = vunpack.c.h.b16 %v2976
        %v3156 = vunpack.c.l.b16 %v2977
        %v3157 = vunpack.c.h.b16 %v2977
        %v3158 = vunpack.c.l.b16 %v2978
        %v3159 = vunpack.c.h.b16 %v2978
        %v3160 = vunpack.c.l.b16 %v2979
        %v3161 = vunpack.c.h.b16 %v2979
        %v3162 = vunpack.c.l.b16 %v2980
        %v3163 = vunpack.c.h.b16 %v2980
        %v3164 = vunpack.c.l.b16 %v2981
        %v3165 = vunpack.c.h.b16 %v2981
        %v3166 = vunpack.c.l.b16 %v2982
        %v3167 = vunpack.c.h.b16 %v2982
        %v3168 = vunpack.c.l.b16 %v2983
        %v3169 = vunpack.c.h.b16 %v2983
        %v3170 = vunpack.c.l.b16 %v2984
        %v3171 = vunpack.c.h.b16 %v2984
        %v3172 = vunpack.c.l.b16 %v2985
        %v3173 = vunpack.c.h.b16 %v2985
        %v3174 = vunpack.c.l.b16 %v2986
        %v3175 = vunpack.c.h.b16 %v2986
        %v3176 = vunpack.c.l.b16 %v2987
        %v3177 = vunpack.c.h.b16 %v2987
        %v3178 = vunpack.c.l.b16 %v2988
        %v3179 = vunpack.c.h.b16 %v2988
        %v3180 = vunpack.c.l.b16 %v2989
        %v3181 = vunpack.c.h.b16 %v2989
        %v3182 = vunpack.c.l.b16 %v2990
        %v3183 = vunpack.c.h.b16 %v2990
        %v3184 = vunpack.c.l.b16 %v2991
        %v3185 = vunpack.c.h.b16 %v2991
        %v3186 = vunpack.c.l.b16 %v2992
        %v3187 = vunpack.c.h.b16 %v2992
        %v3188 = vunpack.c.l.b16 %v2993
        %v3189 = vunpack.c.h.b16 %v2993
        %v3190 = vunpack.c.l.b16 %v2994
        %v3191 = vunpack.c.h.b16 %v2994
        %v3192 = vunpack.c.l.b16 %v2995
        %v3193 = vunpack.c.h.b16 %v2995
        %v3194 = vunpack.c.l.b16 %v2996
        %v3195 = vunpack.c.h.b16 %v2996
        %v3196 = vunpack.c.l.b16 %v2997
        %v3197 = vunpack.c.h.b16 %v2997
        %v3198 = vunpack.c.l.b16 %v2998
        %v3199 = vunpack.c.h.b16 %v2998
        %v3200 = vunpack.c.l.b16 %v2999
        %v3201 = vunpack.c.h.b16 %v2999
        %v3202 = vunpack.c.l.b16 %v3000
        %v3203 = vunpack.c.h.b16 %v3000
        %v3204 = vunpack.c.l.b16 %v3001
        %v3205 = vunpack.c.h.b16 %v3001
        %v3206 = vunpack.c.l.b16 %v3002
        %v3207 = vunpack.c.h.b16 %v3002
        %v3208 = vunpack.c.l.b16 %v3003
        %v3209 = vunpack.c.h.b16 %v3003
        %v3210 = vunpack.c.l.b16 %v3004
        %v3211 = vunpack.c.h.b16 %v3004
        %v3212 = vunpack.c.l.b16 %v3005
        %v3213 = vunpack.c.h.b16 %v3005
        %v3214 = vunpack.c.l.b16 %v3006
        %v3215 = vunpack.c.h.b16 %v3006
        %v3216 = vunpack.c.l.b16 %v3007
        %v3217 = vunpack.c.h.b16 %v3007
        %v3218 = vunpack.c.l.b16 %v3008
        %v3219 = vunpack.c.h.b16 %v3008
        %v3220 = vunpack.c.l.b16 %v3009
        %v3221 = vunpack.c.h.b16 %v3009
        %v3222 = vunpack.c.l.b16 %v3010
        %v3223 = vunpack.c.h.b16 %v3010
        %v3224 = vunpack.c.l.b16 %v3011
        %v3225 = vunpack.c.h.b16 %v3011
        %v3226 = vunpack.c.l.b16 %v3012
        %v3227 = vunpack.c.h.b16 %v3012
        %v3228 = vunpack.c.l.b16 %v3013
        %v3229 = vunpack.c.h.b16 %v3013
        %v3230 = vunpack.c.l.b16 %v3014
        %v3231 = vunpack.c.h.b16 %v3014
        %v3232 = vunpack.c.l.b16 %v3015
        %v3233 = vunpack.c.h.b16 %v3015
        %v3234 = vunpack.c.l.b16 %v3016
        %v3235 = vunpack.c.h.b16 %v3016
        %v3236 = vunpack.c.l.b16 %v3017
        %v3237 = vunpack.c.h.b16 %v3017
        %v3238 = vunpack.c.l.b16 %v3018
        %v3239 = vunpack.c.h.b16 %v3018
        %v3240 = vunpack.c.l.b16 %v3019
        %v3241 = vunpack.c.h.b16 %v3019
        %v3242 = vunpack.c.l.b16 %v3020
        %v3243 = vunpack.c.h.b16 %v3020
        %v3244 = vunpack.c.l.b16 %v3021
        %v3245 = vunpack.c.h.b16 %v3021
        %v3246 = vpack.c.b16 %v3122, %v3118
        %v3247 = vpack.c.b16 %v3123, %v3119
        %v3248 = vpack.c.b16 %v3124, %v3120
        %v3249 = vpack.c.b16 %v3125, %v3121
        %v3250 = vpack.c.b16 %v3130, %v3126
        %v3251 = vpack.c.b16 %v3131, %v3127
        %v3252 = vpack.c.b16 %v3132, %v3128
        %v3253 = vpack.c.b16 %v3133, %v3129
        %v3254 = vpack.c.b16 %v3138, %v3134
        %v3255 = vpack.c.b16 %v3139, %v3135
        %v3256 = vpack.c.b16 %v3140, %v3136
        %v3257 = vpack.c.b16 %v3141, %v3137
        %v3258 = vpack.c.b16 %v3146, %v3142
        %v3259 = vpack.c.b16 %v3147, %v3143
        %v3260 = vpack.c.b16 %v3148, %v3144
        %v3261 = vpack.c.b16 %v3149, %v3145
        %v3262 = vpack.c.b16 %v3154, %v3150
        %v3263 = vpack.c.b16 %v3155, %v3151
        %v3264 = vpack.c.b16 %v3156, %v3152
        %v3265 = vpack.c.b16 %v3157, %v3153
        %v3266 = vpack.c.b16 %v3162, %v3158
        %v3267 = vpack.c.b16 %v3163, %v3159
        %v3268 = vpack.c.b16 %v3164, %v3160
        %v3269 = vpack.c.b16 %v3165, %v3161
        %v3270 = vpack.c.b16 %v3170, %v3166
        %v3271 = vpack.c.b16 %v3171, %v3167
        %v3272 = vpack.c.b16 %v3172, %v3168
        %v3273 = vpack.c.b16 %v3173, %v3169
        %v3274 = vpack.c.b16 %v3178, %v3174
        %v3275 = vpack.c.b16 %v3179, %v3175
        %v3276 = vpack.c.b16 %v3180, %v3176
        %v3277 = vpack.c.b16 %v3181, %v3177
        %v3278 = vpack.c.b16 %v3186, %v3182
        %v3279 = vpack.c.b16 %v3187, %v3183
        %v3280 = vpack.c.b16 %v3188, %v3184
        %v3281 = vpack.c.b16 %v3189, %v3185
        %v3282 = vpack.c.b16 %v3194, %v3190
        %v3283 = vpack.c.b16 %v3195, %v3191
        %v3284 = vpack.c.b16 %v3196, %v3192
        %v3285 = vpack.c.b16 %v3197, %v3193
        %v3286 = vpack.c.b16 %v3202, %v3198
        %v3287 = vpack.c.b16 %v3203, %v3199
        %v3288 = vpack.c.b16 %v3204, %v3200
        %v3289 = vpack.c.b16 %v3205, %v3201
        %v3290 = vpack.c.b16 %v3210, %v3206
        %v3291 = vpack.c.b16 %v3211, %v3207
        %v3292 = vpack.c.b16 %v3212, %v3208
        %v3293 = vpack.c.b16 %v3213, %v3209
        %v3294 = vpack.c.b16 %v3218, %v3214
        %v3295 = vpack.c.b16 %v3219, %v3215
        %v3296 = vpack.c.b16 %v3220, %v3216
        %v3297 = vpack.c.b16 %v3221, %v3217
        %v3298 = vpack.c.b16 %v3226, %v3222
        %v3299 = vpack.c.b16 %v3227, %v3223
        %v3300 = vpack.c.b16 %v3228, %v3224
        %v3301 = vpack.c.b16 %v3229, %v3225
        %v3302 = vpack.c.b16 %v3234, %v3230
        %v3303 = vpack.c.b16 %v3235, %v3231
        %v3304 = vpack.c.b16 %v3236, %v3232
        %v3305 = vpack.c.b16 %v3237, %v3233
        %v3306 = vpack.c.b16 %v3242, %v3238
        %v3307 = vpack.c.b16 %v3243, %v3239
        %v3308 = vpack.c.b16 %v3244, %v3240
        %v3309 = vpack.c.b16 %v3245, %v3241
        %3374 = vmatprep.subr.bf16.mxu0 %v3275
        %3375 = vmatpush1.bf16.msra.mxu0 %v3274
        %3376 = vmatprep.subr.bf16.mxu0 %v3271
        %3377 = vmatpush1.bf16.msra.mxu0 %v3270
        %3378 = vmatprep.subr.bf16.mxu0 %v3267
        %3379 = vmatpush1.bf16.msra.mxu0 %v3266
        %3380 = vmatprep.subr.bf16.mxu0 %v3263
        %3381 = vmatpush1.bf16.msra.mxu0 %v3262
        %3382 = vmatprep.subr.bf16.mxu0 %v3259
        %3383 = vmatpush1.bf16.msra.mxu0 %v3258
        %3384 = vmatprep.subr.bf16.mxu0 %v3255
        %3385 = vmatpush1.bf16.msra.mxu0 %v3254
        %3386 = vmatprep.subr.bf16.mxu0 %v3251
        %3387 = vmatpush1.bf16.msra.mxu0 %v3250
        %3388 = vmatprep.subr.bf16.mxu0 %v3247
        %3389 = vmatpush1.bf16.msra.mxu0 %v3246
        %3390 = vmatprep.subr.bf16.mxu0 %v3307
        %3391 = vmatpush2.bf16.msra.mxu0 %v3306
        %3392 = vmatprep.subr.bf16.mxu0 %v3303
        %3393 = vmatpush2.bf16.msra.mxu0 %v3302
        %3394 = vmatprep.subr.bf16.mxu0 %v3299
        %3395 = vmatpush2.bf16.msra.mxu0 %v3298
        %3396 = vmatprep.subr.bf16.mxu0 %v3295
        %3397 = vmatpush2.bf16.msra.mxu0 %v3294
        %3398 = vmatprep.subr.bf16.mxu0 %v3291
        %3399 = vmatpush2.bf16.msra.mxu0 %v3290
        %3400 = vmatprep.subr.bf16.mxu0 %v3287
        %3401 = vmatpush2.bf16.msra.mxu0 %v3286
        %3402 = vmatprep.subr.bf16.mxu0 %v3283
        %3403 = vmatpush2.bf16.msra.mxu0 %v3282
        %3404 = vmatprep.subr.bf16.mxu0 %v3279
        %3405 = vmatpush2.bf16.msra.mxu0 %v3278
        %3406 = vmatprep.mubr.bf16.mxu0 %v3051
        %3407 = vmatmul.mubr.bf16.gmra.mxu0 %v3050
        %v3408 = vpop.f32.mrf.mxu0
        %v3409 = vadd.f32 %v3027, %v3408
        %v3410 = vpop.f32.mrf.mxu0
        %v3411 = vadd.f32 %v3031, %v3410
        %v3412 = vpop.f32.mrf.mxu0
        %v3413 = vadd.f32 %v3027, %v3412
        %v3414 = vpop.f32.mrf.mxu0
        %v3415 = vadd.f32 %v3031, %v3414
        %3416 = vdwg.mxu0
        %3417 = vmatprep.subr.bf16.mxu0 %v3277
        %3418 = vmatpush1.bf16.msra.mxu0 %v3276
        %3419 = vmatprep.subr.bf16.mxu0 %v3273
        %3420 = vmatpush1.bf16.msra.mxu0 %v3272
        %3421 = vmatprep.subr.bf16.mxu0 %v3269
        %3422 = vmatpush1.bf16.msra.mxu0 %v3268
        %3423 = vmatprep.subr.bf16.mxu0 %v3265
        %3424 = vmatpush1.bf16.msra.mxu0 %v3264
        %3425 = vmatprep.subr.bf16.mxu0 %v3261
        %3426 = vmatpush1.bf16.msra.mxu0 %v3260
        %3427 = vmatprep.subr.bf16.mxu0 %v3257
        %3428 = vmatpush1.bf16.msra.mxu0 %v3256
        %3429 = vmatprep.subr.bf16.mxu0 %v3253
        %3430 = vmatpush1.bf16.msra.mxu0 %v3252
        %3431 = vmatprep.subr.bf16.mxu0 %v3249
        %3432 = vmatpush1.bf16.msra.mxu0 %v3248
        %3433 = vmatprep.subr.bf16.mxu0 %v3309
        %3434 = vmatpush2.bf16.msra.mxu0 %v3308
        %3435 = vmatprep.subr.bf16.mxu0 %v3305
        %3436 = vmatpush2.bf16.msra.mxu0 %v3304
        %3437 = vmatprep.subr.bf16.mxu0 %v3301
        %3438 = vmatpush2.bf16.msra.mxu0 %v3300
        %3439 = vmatprep.subr.bf16.mxu0 %v3297
        %3440 = vmatpush2.bf16.msra.mxu0 %v3296
        %3441 = vmatprep.subr.bf16.mxu0 %v3293
        %3442 = vmatpush2.bf16.msra.mxu0 %v3292
        %3443 = vmatprep.subr.bf16.mxu0 %v3289
        %3444 = vmatpush2.bf16.msra.mxu0 %v3288
        %3445 = vmatprep.subr.bf16.mxu0 %v3285
        %3446 = vmatpush2.bf16.msra.mxu0 %v3284
        %3447 = vmatprep.subr.bf16.mxu0 %v3281
        %3448 = vmatpush2.bf16.msra.mxu0 %v3280
        %3449 = vmatprep.mubr.bf16.mxu0 %v3051
        %3450 = vmatmul.mubr.bf16.gmra.mxu0 %v3050
        %v3451 = vpop.f32.mrf.mxu0
        %v3452 = vadd.f32 %v3035, %v3451
        %v3453 = vpop.f32.mrf.mxu0
        %v3454 = vadd.f32 %v3039, %v3453
        %v3455 = vpop.f32.mrf.mxu0
        %v3456 = vadd.f32 %v3035, %v3455
        %v3457 = vpop.f32.mrf.mxu0
        %v3458 = vadd.f32 %v3039, %v3457
        %3459 = vdwg.mxu0
        %v3460 = vpack.c.bf16 %v2952, %v2952
        %v3461 = vpack.c.bf16 %v2954, %v2954
        %v3462 = vpack.c.bf16 %v3413, %v3409
        %v3463 = vpack.c.bf16 %v3415, %v3411
        %v3464 = vpack.c.bf16 %v3456, %v3452
        %v3465 = vpack.c.bf16 %v3458, %v3454
        %v3466 = vlaneseq
        %v3467 = vshrl.u32 %v3466, 7
        %v3468 = vsub.s32 0, %v3467
        %v3469 = vrot.slane %v1479, %v3468
        %3470 = vmatprep.subr.bf16.mxu0 0
        %3471 = vmatpush1.bf16.xpose.msra.mxu0 0
        %3472 = vmatprep.subr.bf16.mxu0 0
        %3473 = vmatpush1.bf16.xpose.msra.mxu0 0
        %3474 = vmatprep.subr.bf16.mxu0 0
        %3475 = vmatpush1.bf16.xpose.msra.mxu0 0
        %3476 = vmatprep.subr.bf16.mxu0 0
        %3477 = vmatpush1.bf16.xpose.msra.mxu0 0
        %3478 = vmatprep.subr.bf16.mxu0 0
        %3479 = vmatpush1.bf16.xpose.msra.mxu0 0
        %3480 = vmatprep.subr.bf16.mxu0 0
        %3481 = vmatpush1.bf16.xpose.msra.mxu0 0
        %3482 = vmatprep.subr.bf16.mxu0 0
        %3483 = vmatpush1.bf16.xpose.msra.mxu0 0
        %3484 = vmatprep.subr.bf16.mxu0 0
        %3485 = vmatpush1.bf16.xpose.msra.mxu0 %v3462
        %3486 = vmatprep.subr.bf16.mxu0 0
        %3487 = vmatpush2.bf16.xpose.msra.mxu0 0
        %3488 = vmatprep.subr.bf16.mxu0 0
        %3489 = vmatpush2.bf16.xpose.msra.mxu0 0
        %3490 = vmatprep.subr.bf16.mxu0 0
        %3491 = vmatpush2.bf16.xpose.msra.mxu0 0
        %3492 = vmatprep.subr.bf16.mxu0 0
        %3493 = vmatpush2.bf16.xpose.msra.mxu0 0
        %3494 = vmatprep.subr.bf16.mxu0 0
        %3495 = vmatpush2.bf16.xpose.msra.mxu0 0
        %3496 = vmatprep.subr.bf16.mxu0 0
        %3497 = vmatpush2.bf16.xpose.msra.mxu0 0
        %3498 = vmatprep.subr.bf16.mxu0 0
        %3499 = vmatpush2.bf16.xpose.msra.mxu0 0
        %3500 = vmatprep.subr.bf16.mxu0 0
        %3501 = vmatpush2.bf16.xpose.msra.mxu0 0
        %3502 = vmatprep.mubr.bf16.mxu0 0
        %3503 = vmatmul.mubr.bf16.gmra.mxu0 %v3460
        %v3504 = vpop.f32.mrf.mxu0
        %v3505 = vadd.f32 %v3469, %v3504
        %v3506 = vpop.f32.mrf.mxu0
        %v3507 = vpop.f32.mrf.mxu0
        %v3508 = vpop.f32.mrf.mxu0
        %3509 = vdwg.mxu0
        %vm3510 = vcmask 130048
        %v3511 = vsel %vm3510, %v3505, -inf
        %3512 = vmax.xlane.f32.xlu0 %v3511
        %v3513 = vpop.xlane.xlu0 %3512
        %v3514 = vsub.f32 %v3505, %v3513
        %v3515 = vmul.f32 %v3514, 1.442695
        %v3516 = vpow.pop %v3515
        %v3517 = vsel %vm3510, %v3516, 0.0
        %3518 = vadd.xlane.f32.xlu0 %v3517
        %v3519 = vpop.xlane.xlu0 %3518
        %v3520 = vrcp.pop %v3519
        %v3521 = vmul.f32 %v3516, %v3520
        %v3522 = vpack.c.bf16 %v3521, %v3521
        %v3524 = vsel %vm3510, %v3522, 0
        %3526 = vmatprep.subr.bf16.mxu0 0
        %3527 = vmatpush1.bf16.msra.mxu0 0
        %3528 = vmatprep.subr.bf16.mxu0 0
        %3529 = vmatpush1.bf16.msra.mxu0 0
        %3530 = vmatprep.subr.bf16.mxu0 0
        %3531 = vmatpush1.bf16.msra.mxu0 0
        %3532 = vmatprep.subr.bf16.mxu0 0
        %3533 = vmatpush1.bf16.msra.mxu0 0
        %3534 = vmatprep.subr.bf16.mxu0 0
        %3535 = vmatpush1.bf16.msra.mxu0 0
        %3536 = vmatprep.subr.bf16.mxu0 0
        %3537 = vmatpush1.bf16.msra.mxu0 0
        %3538 = vmatprep.subr.bf16.mxu0 0
        %3539 = vmatpush1.bf16.msra.mxu0 0
        %3540 = vmatprep.subr.bf16.mxu0 0
        %3541 = vmatpush1.bf16.msra.mxu0 %v3464
        %3542 = vmatprep.subr.bf16.mxu0 0
        %3543 = vmatpush2.bf16.msra.mxu0 0
        %3544 = vmatprep.subr.bf16.mxu0 0
        %3545 = vmatpush2.bf16.msra.mxu0 0
        %3546 = vmatprep.subr.bf16.mxu0 0
        %3547 = vmatpush2.bf16.msra.mxu0 0
        %3548 = vmatprep.subr.bf16.mxu0 0
        %3549 = vmatpush2.bf16.msra.mxu0 0
        %3550 = vmatprep.subr.bf16.mxu0 0
        %3551 = vmatpush2.bf16.msra.mxu0 0
        %3552 = vmatprep.subr.bf16.mxu0 0
        %3553 = vmatpush2.bf16.msra.mxu0 0
        %3554 = vmatprep.subr.bf16.mxu0 0
        %3555 = vmatpush2.bf16.msra.mxu0 0
        %3556 = vmatprep.subr.bf16.mxu0 0
        %3557 = vmatpush2.bf16.msra.mxu0 0
        %3558 = vmatprep.mubr.bf16.mxu0 0
        %3559 = vmatmul.mubr.bf16.gmra.mxu0 %v3524
        %v3560 = vpop.f32.mrf.mxu0
        %v3561 = vadd.f32 0.0, %v3560
        %v3562 = vpop.f32.mrf.mxu0
        %v3563 = vpop.f32.mrf.mxu0
        %v3564 = vpop.f32.mrf.mxu0
        %3565 = vdwg.mxu0
        %3566 = vmatprep.subr.bf16.mxu0 0
        %3567 = vmatpush1.bf16.xpose.msra.mxu0 0
        %3568 = vmatprep.subr.bf16.mxu0 0
        %3569 = vmatpush1.bf16.xpose.msra.mxu0 0
        %3570 = vmatprep.subr.bf16.mxu0 0
        %3571 = vmatpush1.bf16.xpose.msra.mxu0 0
        %3572 = vmatprep.subr.bf16.mxu0 0
        %3573 = vmatpush1.bf16.xpose.msra.mxu0 0
        %3574 = vmatprep.subr.bf16.mxu0 0
        %3575 = vmatpush1.bf16.xpose.msra.mxu0 0
        %3576 = vmatprep.subr.bf16.mxu0 0
        %3577 = vmatpush1.bf16.xpose.msra.mxu0 0
        %3578 = vmatprep.subr.bf16.mxu0 0
        %3579 = vmatpush1.bf16.xpose.msra.mxu0 0
        %3580 = vmatprep.subr.bf16.mxu0 0
        %3581 = vmatpush1.bf16.xpose.msra.mxu0 %v3463
        %3582 = vmatprep.subr.bf16.mxu0 0
        %3583 = vmatpush2.bf16.xpose.msra.mxu0 0
        %3584 = vmatprep.subr.bf16.mxu0 0
        %3585 = vmatpush2.bf16.xpose.msra.mxu0 0
        %3586 = vmatprep.subr.bf16.mxu0 0
        %3587 = vmatpush2.bf16.xpose.msra.mxu0 0
        %3588 = vmatprep.subr.bf16.mxu0 0
        %3589 = vmatpush2.bf16.xpose.msra.mxu0 0
        %3590 = vmatprep.subr.bf16.mxu0 0
        %3591 = vmatpush2.bf16.xpose.msra.mxu0 0
        %3592 = vmatprep.subr.bf16.mxu0 0
        %3593 = vmatpush2.bf16.xpose.msra.mxu0 0
        %3594 = vmatprep.subr.bf16.mxu0 0
        %3595 = vmatpush2.bf16.xpose.msra.mxu0 0
        %3596 = vmatprep.subr.bf16.mxu0 0
        %3597 = vmatpush2.bf16.xpose.msra.mxu0 0
        %3598 = vmatprep.mubr.bf16.mxu0 0
        %3599 = vmatmul.mubr.bf16.gmra.mxu0 %v3461
        %v3600 = vpop.f32.mrf.mxu0
        %v3601 = vadd.f32 %v3469, %v3600
        %v3602 = vpop.f32.mrf.mxu0
        %v3603 = vpop.f32.mrf.mxu0
        %v3604 = vpop.f32.mrf.mxu0
        %3605 = vdwg.mxu0
        %v3606 = vsel %vm3510, %v3601, -inf
        %3607 = vmax.xlane.f32.xlu0 %v3606
        %v3608 = vpop.xlane.xlu0 %3607
        %v3609 = vsub.f32 %v3601, %v3608
        %v3610 = vmul.f32 %v3609, 1.442695
        %v3611 = vpow.pop %v3610
        %v3612 = vsel %vm3510, %v3611, 0.0
        %3613 = vadd.xlane.f32.xlu0 %v3612
        %v3614 = vpop.xlane.xlu0 %3613
        %v3615 = vrcp.pop %v3614
        %v3616 = vmul.f32 %v3611, %v3615
        %v3617 = vpack.c.bf16 %v3616, %v3616
        %v3619 = vsel %vm3510, %v3617, 0
        %3621 = vmatprep.subr.bf16.mxu0 0
        %3622 = vmatpush1.bf16.msra.mxu0 0
        %3623 = vmatprep.subr.bf16.mxu0 0
        %3624 = vmatpush1.bf16.msra.mxu0 0
        %3625 = vmatprep.subr.bf16.mxu0 0
        %3626 = vmatpush1.bf16.msra.mxu0 0
        %3627 = vmatprep.subr.bf16.mxu0 0
        %3628 = vmatpush1.bf16.msra.mxu0 0
        %3629 = vmatprep.subr.bf16.mxu0 0
        %3630 = vmatpush1.bf16.msra.mxu0 0
        %3631 = vmatprep.subr.bf16.mxu0 0
        %3632 = vmatpush1.bf16.msra.mxu0 0
        %3633 = vmatprep.subr.bf16.mxu0 0
        %3634 = vmatpush1.bf16.msra.mxu0 0
        %3635 = vmatprep.subr.bf16.mxu0 0
        %3636 = vmatpush1.bf16.msra.mxu0 %v3465
        %3637 = vmatprep.subr.bf16.mxu0 0
        %3638 = vmatpush2.bf16.msra.mxu0 0
        %3639 = vmatprep.subr.bf16.mxu0 0
        %3640 = vmatpush2.bf16.msra.mxu0 0
        %3641 = vmatprep.subr.bf16.mxu0 0
        %3642 = vmatpush2.bf16.msra.mxu0 0
        %3643 = vmatprep.subr.bf16.mxu0 0
        %3644 = vmatpush2.bf16.msra.mxu0 0
        %3645 = vmatprep.subr.bf16.mxu0 0
        %3646 = vmatpush2.bf16.msra.mxu0 0
        %3647 = vmatprep.subr.bf16.mxu0 0
        %3648 = vmatpush2.bf16.msra.mxu0 0
        %3649 = vmatprep.subr.bf16.mxu0 0
        %3650 = vmatpush2.bf16.msra.mxu0 0
        %3651 = vmatprep.subr.bf16.mxu0 0
        %3652 = vmatpush2.bf16.msra.mxu0 0
        %3653 = vmatprep.mubr.bf16.mxu0 0
        %3654 = vmatmul.mubr.bf16.gmra.mxu0 %v3619
        %v3655 = vpop.f32.mrf.mxu0
        %v3656 = vadd.f32 0.0, %v3655
        %v3657 = vpop.f32.mrf.mxu0
        %v3658 = vpop.f32.mrf.mxu0
        %v3659 = vpop.f32.mrf.mxu0
        %3660 = vdwg.mxu0
        %v3661 = vld [vmem:[%s1207] sm:$0xff]
        %v3662 = vld [vmem:[%s1207 + $0x8] sm:$0xff]
        %v3663 = vld [vmem:[%s1207 + $0x10] sm:$0xff]
        %v3664 = vld [vmem:[%s1207 + $0x18] sm:$0xff]
        %v3665 = vld [vmem:[%s1207 + $0x20] sm:$0xff]
        %v3666 = vld [vmem:[%s1207 + $0x28] sm:$0xff]
        %v3667 = vld [vmem:[%s1207 + $0x30] sm:$0xff]
        %v3668 = vld [vmem:[%s1207 + $0x38] sm:$0xff]
        %v3669 = vld [vmem:[%s1207 + $0x40] sm:$0xff]
        %v3670 = vld [vmem:[%s1207 + $0x48] sm:$0xff]
        %v3671 = vld [vmem:[%s1207 + $0x50] sm:$0xff]
        %v3672 = vld [vmem:[%s1207 + $0x58] sm:$0xff]
        %v3673 = vld [vmem:[%s1207 + $0x60] sm:$0xff]
        %v3674 = vld [vmem:[%s1207 + $0x68] sm:$0xff]
        %v3675 = vld [vmem:[%s1207 + $0x70] sm:$0xff]
        %v3676 = vld [vmem:[%s1207 + $0x78] sm:$0xff]
        %v3677 = vld [vmem:[%s1207 + $0x80] sm:$0xff]
        %v3678 = vld [vmem:[%s1207 + $0x88] sm:$0xff]
        %v3679 = vld [vmem:[%s1207 + $0x90] sm:$0xff]
        %v3680 = vld [vmem:[%s1207 + $0x98] sm:$0xff]
        %v3681 = vld [vmem:[%s1207 + $0xa0] sm:$0xff]
        %v3682 = vld [vmem:[%s1207 + $0xa8] sm:$0xff]
        %v3683 = vld [vmem:[%s1207 + $0xb0] sm:$0xff]
        %v3684 = vld [vmem:[%s1207 + $0xb8] sm:$0xff]
        %v3685 = vld [vmem:[%s1207 + $0xc0] sm:$0xff]
        %v3686 = vld [vmem:[%s1207 + $0xc8] sm:$0xff]
        %v3687 = vld [vmem:[%s1207 + $0xd0] sm:$0xff]
        %v3688 = vld [vmem:[%s1207 + $0xd8] sm:$0xff]
        %v3689 = vld [vmem:[%s1207 + $0xe0] sm:$0xff]
        %v3690 = vld [vmem:[%s1207 + $0xe8] sm:$0xff]
        %v3691 = vld [vmem:[%s1207 + $0xf0] sm:$0xff]
        %v3692 = vld [vmem:[%s1207 + $0xf8] sm:$0xff]
        %v3693 = vpack.c.bf16 %v3561, %v3561
        %v3694 = vpack.c.bf16 %v3656, %v3656
        %v3695 = vld [vmem:[%s1216] sm:$0x3]
        %v3697 = vlaneseq
        %v3698 = vshrl.u32 %v3697, 7
        %v3699 = vsub.s32 0, %v3698
        %v3700 = vrot.slane %v3695, %v3699
        %v3701 = vlaneseq
        %v3702 = vshrl.u32 %v3701, 7
        %v3703 = vsub.s32 1, %v3702
        %v3704 = vrot.slane %v3695, %v3703
        %v3739 = vunpack.c.l.b16 %v3661
        %v3740 = vunpack.c.h.b16 %v3661
        %v3741 = vunpack.c.l.b16 %v3662
        %v3742 = vunpack.c.h.b16 %v3662
        %v3743 = vunpack.c.l.b16 %v3663
        %v3744 = vunpack.c.h.b16 %v3663
        %v3745 = vunpack.c.l.b16 %v3664
        %v3746 = vunpack.c.h.b16 %v3664
        %v3747 = vunpack.c.l.b16 %v3665
        %v3748 = vunpack.c.h.b16 %v3665
        %v3749 = vunpack.c.l.b16 %v3666
        %v3750 = vunpack.c.h.b16 %v3666
        %v3751 = vunpack.c.l.b16 %v3667
        %v3752 = vunpack.c.h.b16 %v3667
        %v3753 = vunpack.c.l.b16 %v3668
        %v3754 = vunpack.c.h.b16 %v3668
        %v3755 = vunpack.c.l.b16 %v3669
        %v3756 = vunpack.c.h.b16 %v3669
        %v3757 = vunpack.c.l.b16 %v3670
        %v3758 = vunpack.c.h.b16 %v3670
        %v3759 = vunpack.c.l.b16 %v3671
        %v3760 = vunpack.c.h.b16 %v3671
        %v3761 = vunpack.c.l.b16 %v3672
        %v3762 = vunpack.c.h.b16 %v3672
        %v3763 = vunpack.c.l.b16 %v3673
        %v3764 = vunpack.c.h.b16 %v3673
        %v3765 = vunpack.c.l.b16 %v3674
        %v3766 = vunpack.c.h.b16 %v3674
        %v3767 = vunpack.c.l.b16 %v3675
        %v3768 = vunpack.c.h.b16 %v3675
        %v3769 = vunpack.c.l.b16 %v3676
        %v3770 = vunpack.c.h.b16 %v3676
        %v3771 = vunpack.c.l.b16 %v3677
        %v3772 = vunpack.c.h.b16 %v3677
        %v3773 = vunpack.c.l.b16 %v3678
        %v3774 = vunpack.c.h.b16 %v3678
        %v3775 = vunpack.c.l.b16 %v3679
        %v3776 = vunpack.c.h.b16 %v3679
        %v3777 = vunpack.c.l.b16 %v3680
        %v3778 = vunpack.c.h.b16 %v3680
        %v3779 = vunpack.c.l.b16 %v3681
        %v3780 = vunpack.c.h.b16 %v3681
        %v3781 = vunpack.c.l.b16 %v3682
        %v3782 = vunpack.c.h.b16 %v3682
        %v3783 = vunpack.c.l.b16 %v3683
        %v3784 = vunpack.c.h.b16 %v3683
        %v3785 = vunpack.c.l.b16 %v3684
        %v3786 = vunpack.c.h.b16 %v3684
        %v3787 = vunpack.c.l.b16 %v3685
        %v3788 = vunpack.c.h.b16 %v3685
        %v3789 = vunpack.c.l.b16 %v3686
        %v3790 = vunpack.c.h.b16 %v3686
        %v3791 = vunpack.c.l.b16 %v3687
        %v3792 = vunpack.c.h.b16 %v3687
        %v3793 = vunpack.c.l.b16 %v3688
        %v3794 = vunpack.c.h.b16 %v3688
        %v3795 = vunpack.c.l.b16 %v3689
        %v3796 = vunpack.c.h.b16 %v3689
        %v3797 = vunpack.c.l.b16 %v3690
        %v3798 = vunpack.c.h.b16 %v3690
        %v3799 = vunpack.c.l.b16 %v3691
        %v3800 = vunpack.c.h.b16 %v3691
        %v3801 = vunpack.c.l.b16 %v3692
        %v3802 = vunpack.c.h.b16 %v3692
        %v3803 = vpack.c.b16 %v3741, %v3739
        %v3804 = vpack.c.b16 %v3742, %v3740
        %v3805 = vpack.c.b16 %v3745, %v3743
        %v3806 = vpack.c.b16 %v3746, %v3744
        %v3807 = vpack.c.b16 %v3749, %v3747
        %v3808 = vpack.c.b16 %v3750, %v3748
        %v3809 = vpack.c.b16 %v3753, %v3751
        %v3810 = vpack.c.b16 %v3754, %v3752
        %v3811 = vpack.c.b16 %v3757, %v3755
        %v3812 = vpack.c.b16 %v3758, %v3756
        %v3813 = vpack.c.b16 %v3761, %v3759
        %v3814 = vpack.c.b16 %v3762, %v3760
        %v3815 = vpack.c.b16 %v3765, %v3763
        %v3816 = vpack.c.b16 %v3766, %v3764
        %v3817 = vpack.c.b16 %v3769, %v3767
        %v3818 = vpack.c.b16 %v3770, %v3768
        %v3819 = vpack.c.b16 %v3773, %v3771
        %v3820 = vpack.c.b16 %v3774, %v3772
        %v3821 = vpack.c.b16 %v3777, %v3775
        %v3822 = vpack.c.b16 %v3778, %v3776
        %v3823 = vpack.c.b16 %v3781, %v3779
        %v3824 = vpack.c.b16 %v3782, %v3780
        %v3825 = vpack.c.b16 %v3785, %v3783
        %v3826 = vpack.c.b16 %v3786, %v3784
        %v3827 = vpack.c.b16 %v3789, %v3787
        %v3828 = vpack.c.b16 %v3790, %v3788
        %v3829 = vpack.c.b16 %v3793, %v3791
        %v3830 = vpack.c.b16 %v3794, %v3792
        %v3831 = vpack.c.b16 %v3797, %v3795
        %v3832 = vpack.c.b16 %v3798, %v3796
        %v3833 = vpack.c.b16 %v3801, %v3799
        %v3834 = vpack.c.b16 %v3802, %v3800
        %3867 = vmatprep.subr.bf16.mxu0 %v3818
        %3868 = vmatpush1.bf16.msra.mxu0 %v3817
        %3869 = vmatprep.subr.bf16.mxu0 %v3816
        %3870 = vmatpush1.bf16.msra.mxu0 %v3815
        %3871 = vmatprep.subr.bf16.mxu0 %v3814
        %3872 = vmatpush1.bf16.msra.mxu0 %v3813
        %3873 = vmatprep.subr.bf16.mxu0 %v3812
        %3874 = vmatpush1.bf16.msra.mxu0 %v3811
        %3875 = vmatprep.subr.bf16.mxu0 %v3810
        %3876 = vmatpush1.bf16.msra.mxu0 %v3809
        %3877 = vmatprep.subr.bf16.mxu0 %v3808
        %3878 = vmatpush1.bf16.msra.mxu0 %v3807
        %3879 = vmatprep.subr.bf16.mxu0 %v3806
        %3880 = vmatpush1.bf16.msra.mxu0 %v3805
        %3881 = vmatprep.subr.bf16.mxu0 %v3804
        %3882 = vmatpush1.bf16.msra.mxu0 %v3803
        %3883 = vmatprep.subr.bf16.mxu0 %v3834
        %3884 = vmatpush2.bf16.msra.mxu0 %v3833
        %3885 = vmatprep.subr.bf16.mxu0 %v3832
        %3886 = vmatpush2.bf16.msra.mxu0 %v3831
        %3887 = vmatprep.subr.bf16.mxu0 %v3830
        %3888 = vmatpush2.bf16.msra.mxu0 %v3829
        %3889 = vmatprep.subr.bf16.mxu0 %v3828
        %3890 = vmatpush2.bf16.msra.mxu0 %v3827
        %3891 = vmatprep.subr.bf16.mxu0 %v3826
        %3892 = vmatpush2.bf16.msra.mxu0 %v3825
        %3893 = vmatprep.subr.bf16.mxu0 %v3824
        %3894 = vmatpush2.bf16.msra.mxu0 %v3823
        %3895 = vmatprep.subr.bf16.mxu0 %v3822
        %3896 = vmatpush2.bf16.msra.mxu0 %v3821
        %3897 = vmatprep.subr.bf16.mxu0 %v3820
        %3898 = vmatpush2.bf16.msra.mxu0 %v3819
        %3899 = vmatprep.mubr.bf16.mxu0 %v3694
        %3900 = vmatmul.mubr.bf16.gmra.mxu0 %v3693
        %v3901 = vpop.f32.mrf.mxu0
        %v3902 = vadd.f32 %v3700, %v3901
        %v3903 = vpop.f32.mrf.mxu0
        %v3904 = vadd.f32 %v3704, %v3903
        %v3905 = vpop.f32.mrf.mxu0
        %v3906 = vpop.f32.mrf.mxu0
        %3907 = vdwg.mxu0
        %v3908 = vadd.f32 %v2709, %v3902
        %v3909 = vadd.f32 %v2710, %v3904
        %v3910 = vld [vmem:[%s1252] sm:$0x3]
        %v3911 = vld [vmem:[%s1458] sm:$0x3]
        %v3912 = vadd.f32 %v3908, %v3909
        %3913 = vadd.xlane.f32.xlu0 %v3912
        %v3914 = vpop.xlane.xlu0 %3913
        %v3915 = vmul.f32 %v3914, %v2671
        %v3916 = vsub.f32 %v3908, %v3915
        %v3917 = vsub.f32 %v3909, %v3915
        %v3918 = vmul.f32 %v3916, %v3916
        %v3919 = vmul.f32 %v3917, %v3917
        %v3920 = vadd.f32 %v3918, %v3919
        %3921 = vadd.xlane.f32.xlu0 %v3920
        %v3922 = vpop.xlane.xlu0 %3921
        %v3923 = vmul.f32 %v3922, %v2671
        %v3924 = vadd.f32 %v3923, 1e-05
        %v3925 = vrsqrt.pop %v3924
        %v3926 = vmul.f32 %v3916, %v3925
        %v3927 = vmul.f32 %v3917, %v3925
        %v3929 = vlaneseq
        %v3930 = vshrl.u32 %v3929, 7
        %v3931 = vsub.s32 0, %v3930
        %v3932 = vrot.slane %v3910, %v3931
        %v3933 = vlaneseq
        %v3934 = vshrl.u32 %v3933, 7
        %v3935 = vsub.s32 1, %v3934
        %v3936 = vrot.slane %v3910, %v3935
        %v3939 = vmul.f32 %v3926, %v3932
        %v3940 = vmul.f32 %v3927, %v3936
        %v3942 = vlaneseq
        %v3943 = vshrl.u32 %v3942, 7
        %v3944 = vsub.s32 0, %v3943
        %v3945 = vrot.slane %v3911, %v3944
        %v3946 = vlaneseq
        %v3947 = vshrl.u32 %v3946, 7
        %v3948 = vsub.s32 1, %v3947
        %v3949 = vrot.slane %v3911, %v3948
        %v3952 = vadd.f32 %v3939, %v3945
        %v3953 = vadd.f32 %v3940, %v3949
        %v3954 = vld [vmem:[%s1225] sm:$0xff]
        %v3955 = vld [vmem:[%s1225 + $0x8] sm:$0xff]
        %v3956 = vld [vmem:[%s1225 + $0x10] sm:$0xff]
        %v3957 = vld [vmem:[%s1225 + $0x18] sm:$0xff]
        %v3958 = vld [vmem:[%s1225 + $0x20] sm:$0xff]
        %v3959 = vld [vmem:[%s1225 + $0x28] sm:$0xff]
        %v3960 = vld [vmem:[%s1225 + $0x30] sm:$0xff]
        %v3961 = vld [vmem:[%s1225 + $0x38] sm:$0xff]
        %v3962 = vld [vmem:[%s1225 + $0x40] sm:$0xff]
        %v3963 = vld [vmem:[%s1225 + $0x48] sm:$0xff]
        %v3964 = vld [vmem:[%s1225 + $0x50] sm:$0xff]
        %v3965 = vld [vmem:[%s1225 + $0x58] sm:$0xff]
        %v3966 = vld [vmem:[%s1225 + $0x60] sm:$0xff]
        %v3967 = vld [vmem:[%s1225 + $0x68] sm:$0xff]
        %v3968 = vld [vmem:[%s1225 + $0x70] sm:$0xff]
        %v3969 = vld [vmem:[%s1225 + $0x78] sm:$0xff]
        %v3970 = vld [vmem:[%s1225 + $0x80] sm:$0xff]
        %v3971 = vld [vmem:[%s1225 + $0x88] sm:$0xff]
        %v3972 = vld [vmem:[%s1225 + $0x90] sm:$0xff]
        %v3973 = vld [vmem:[%s1225 + $0x98] sm:$0xff]
        %v3974 = vld [vmem:[%s1225 + $0xa0] sm:$0xff]
        %v3975 = vld [vmem:[%s1225 + $0xa8] sm:$0xff]
        %v3976 = vld [vmem:[%s1225 + $0xb0] sm:$0xff]
        %v3977 = vld [vmem:[%s1225 + $0xb8] sm:$0xff]
        %v3978 = vld [vmem:[%s1225 + $0xc0] sm:$0xff]
        %v3979 = vld [vmem:[%s1225 + $0xc8] sm:$0xff]
        %v3980 = vld [vmem:[%s1225 + $0xd0] sm:$0xff]
        %v3981 = vld [vmem:[%s1225 + $0xd8] sm:$0xff]
        %v3982 = vld [vmem:[%s1225 + $0xe0] sm:$0xff]
        %v3983 = vld [vmem:[%s1225 + $0xe8] sm:$0xff]
        %v3984 = vld [vmem:[%s1225 + $0xf0] sm:$0xff]
        %v3985 = vld [vmem:[%s1225 + $0xf8] sm:$0xff]
        %v3986 = vld [vmem:[%s1225 + $0x100] sm:$0xff]
        %v3987 = vld [vmem:[%s1225 + $0x108] sm:$0xff]
        %v3988 = vld [vmem:[%s1225 + $0x110] sm:$0xff]
        %v3989 = vld [vmem:[%s1225 + $0x118] sm:$0xff]
        %v3990 = vld [vmem:[%s1225 + $0x120] sm:$0xff]
        %v3991 = vld [vmem:[%s1225 + $0x128] sm:$0xff]
        %v3992 = vld [vmem:[%s1225 + $0x130] sm:$0xff]
        %v3993 = vld [vmem:[%s1225 + $0x138] sm:$0xff]
        %v3994 = vld [vmem:[%s1225 + $0x140] sm:$0xff]
        %v3995 = vld [vmem:[%s1225 + $0x148] sm:$0xff]
        %v3996 = vld [vmem:[%s1225 + $0x150] sm:$0xff]
        %v3997 = vld [vmem:[%s1225 + $0x158] sm:$0xff]
        %v3998 = vld [vmem:[%s1225 + $0x160] sm:$0xff]
        %v3999 = vld [vmem:[%s1225 + $0x168] sm:$0xff]
        %v4000 = vld [vmem:[%s1225 + $0x170] sm:$0xff]
        %v4001 = vld [vmem:[%s1225 + $0x178] sm:$0xff]
        %v4002 = vld [vmem:[%s1225 + $0x180] sm:$0xff]
        %v4003 = vld [vmem:[%s1225 + $0x188] sm:$0xff]
        %v4004 = vld [vmem:[%s1225 + $0x190] sm:$0xff]
        %v4005 = vld [vmem:[%s1225 + $0x198] sm:$0xff]
        %v4006 = vld [vmem:[%s1225 + $0x1a0] sm:$0xff]
        %v4007 = vld [vmem:[%s1225 + $0x1a8] sm:$0xff]
        %v4008 = vld [vmem:[%s1225 + $0x1b0] sm:$0xff]
        %v4009 = vld [vmem:[%s1225 + $0x1b8] sm:$0xff]
        %v4010 = vld [vmem:[%s1225 + $0x1c0] sm:$0xff]
        %v4011 = vld [vmem:[%s1225 + $0x1c8] sm:$0xff]
        %v4012 = vld [vmem:[%s1225 + $0x1d0] sm:$0xff]
        %v4013 = vld [vmem:[%s1225 + $0x1d8] sm:$0xff]
        %v4014 = vld [vmem:[%s1225 + $0x1e0] sm:$0xff]
        %v4015 = vld [vmem:[%s1225 + $0x1e8] sm:$0xff]
        %v4016 = vld [vmem:[%s1225 + $0x1f0] sm:$0xff]
        %v4017 = vld [vmem:[%s1225 + $0x1f8] sm:$0xff]
        %v4018 = vpack.c.bf16 %v3952, %v3952
        %v4019 = vpack.c.bf16 %v3953, %v3953
        %v4020 = vld [vmem:[%s1446] sm:$0xf]
        %v4022 = vlaneseq
        %v4023 = vshrl.u32 %v4022, 7
        %v4024 = vsub.s32 0, %v4023
        %v4025 = vrot.slane %v4020, %v4024
        %v4026 = vlaneseq
        %v4027 = vshrl.u32 %v4026, 7
        %v4028 = vsub.s32 1, %v4027
        %v4029 = vrot.slane %v4020, %v4028
        %v4030 = vlaneseq
        %v4031 = vshrl.u32 %v4030, 7
        %v4032 = vsub.s32 2, %v4031
        %v4033 = vrot.slane %v4020, %v4032
        %v4034 = vlaneseq
        %v4035 = vshrl.u32 %v4034, 7
        %v4036 = vsub.s32 3, %v4035
        %v4037 = vrot.slane %v4020, %v4036
        %v4106 = vunpack.c.l.b16 %v3954
        %v4107 = vunpack.c.h.b16 %v3954
        %v4108 = vunpack.c.l.b16 %v3955
        %v4109 = vunpack.c.h.b16 %v3955
        %v4110 = vunpack.c.l.b16 %v3956
        %v4111 = vunpack.c.h.b16 %v3956
        %v4112 = vunpack.c.l.b16 %v3957
        %v4113 = vunpack.c.h.b16 %v3957
        %v4114 = vunpack.c.l.b16 %v3958
        %v4115 = vunpack.c.h.b16 %v3958
        %v4116 = vunpack.c.l.b16 %v3959
        %v4117 = vunpack.c.h.b16 %v3959
        %v4118 = vunpack.c.l.b16 %v3960
        %v4119 = vunpack.c.h.b16 %v3960
        %v4120 = vunpack.c.l.b16 %v3961
        %v4121 = vunpack.c.h.b16 %v3961
        %v4122 = vunpack.c.l.b16 %v3962
        %v4123 = vunpack.c.h.b16 %v3962
        %v4124 = vunpack.c.l.b16 %v3963
        %v4125 = vunpack.c.h.b16 %v3963
        %v4126 = vunpack.c.l.b16 %v3964
        %v4127 = vunpack.c.h.b16 %v3964
        %v4128 = vunpack.c.l.b16 %v3965
        %v4129 = vunpack.c.h.b16 %v3965
        %v4130 = vunpack.c.l.b16 %v3966
        %v4131 = vunpack.c.h.b16 %v3966
        %v4132 = vunpack.c.l.b16 %v3967
        %v4133 = vunpack.c.h.b16 %v3967
        %v4134 = vunpack.c.l.b16 %v3968
        %v4135 = vunpack.c.h.b16 %v3968
        %v4136 = vunpack.c.l.b16 %v3969
        %v4137 = vunpack.c.h.b16 %v3969
        %v4138 = vunpack.c.l.b16 %v3970
        %v4139 = vunpack.c.h.b16 %v3970
        %v4140 = vunpack.c.l.b16 %v3971
        %v4141 = vunpack.c.h.b16 %v3971
        %v4142 = vunpack.c.l.b16 %v3972
        %v4143 = vunpack.c.h.b16 %v3972
        %v4144 = vunpack.c.l.b16 %v3973
        %v4145 = vunpack.c.h.b16 %v3973
        %v4146 = vunpack.c.l.b16 %v3974
        %v4147 = vunpack.c.h.b16 %v3974
        %v4148 = vunpack.c.l.b16 %v3975
        %v4149 = vunpack.c.h.b16 %v3975
        %v4150 = vunpack.c.l.b16 %v3976
        %v4151 = vunpack.c.h.b16 %v3976
        %v4152 = vunpack.c.l.b16 %v3977
        %v4153 = vunpack.c.h.b16 %v3977
        %v4154 = vunpack.c.l.b16 %v3978
        %v4155 = vunpack.c.h.b16 %v3978
        %v4156 = vunpack.c.l.b16 %v3979
        %v4157 = vunpack.c.h.b16 %v3979
        %v4158 = vunpack.c.l.b16 %v3980
        %v4159 = vunpack.c.h.b16 %v3980
        %v4160 = vunpack.c.l.b16 %v3981
        %v4161 = vunpack.c.h.b16 %v3981
        %v4162 = vunpack.c.l.b16 %v3982
        %v4163 = vunpack.c.h.b16 %v3982
        %v4164 = vunpack.c.l.b16 %v3983
        %v4165 = vunpack.c.h.b16 %v3983
        %v4166 = vunpack.c.l.b16 %v3984
        %v4167 = vunpack.c.h.b16 %v3984
        %v4168 = vunpack.c.l.b16 %v3985
        %v4169 = vunpack.c.h.b16 %v3985
        %v4170 = vunpack.c.l.b16 %v3986
        %v4171 = vunpack.c.h.b16 %v3986
        %v4172 = vunpack.c.l.b16 %v3987
        %v4173 = vunpack.c.h.b16 %v3987
        %v4174 = vunpack.c.l.b16 %v3988
        %v4175 = vunpack.c.h.b16 %v3988
        %v4176 = vunpack.c.l.b16 %v3989
        %v4177 = vunpack.c.h.b16 %v3989
        %v4178 = vunpack.c.l.b16 %v3990
        %v4179 = vunpack.c.h.b16 %v3990
        %v4180 = vunpack.c.l.b16 %v3991
        %v4181 = vunpack.c.h.b16 %v3991
        %v4182 = vunpack.c.l.b16 %v3992
        %v4183 = vunpack.c.h.b16 %v3992
        %v4184 = vunpack.c.l.b16 %v3993
        %v4185 = vunpack.c.h.b16 %v3993
        %v4186 = vunpack.c.l.b16 %v3994
        %v4187 = vunpack.c.h.b16 %v3994
        %v4188 = vunpack.c.l.b16 %v3995
        %v4189 = vunpack.c.h.b16 %v3995
        %v4190 = vunpack.c.l.b16 %v3996
        %v4191 = vunpack.c.h.b16 %v3996
        %v4192 = vunpack.c.l.b16 %v3997
        %v4193 = vunpack.c.h.b16 %v3997
        %v4194 = vunpack.c.l.b16 %v3998
        %v4195 = vunpack.c.h.b16 %v3998
        %v4196 = vunpack.c.l.b16 %v3999
        %v4197 = vunpack.c.h.b16 %v3999
        %v4198 = vunpack.c.l.b16 %v4000
        %v4199 = vunpack.c.h.b16 %v4000
        %v4200 = vunpack.c.l.b16 %v4001
        %v4201 = vunpack.c.h.b16 %v4001
        %v4202 = vunpack.c.l.b16 %v4002
        %v4203 = vunpack.c.h.b16 %v4002
        %v4204 = vunpack.c.l.b16 %v4003
        %v4205 = vunpack.c.h.b16 %v4003
        %v4206 = vunpack.c.l.b16 %v4004
        %v4207 = vunpack.c.h.b16 %v4004
        %v4208 = vunpack.c.l.b16 %v4005
        %v4209 = vunpack.c.h.b16 %v4005
        %v4210 = vunpack.c.l.b16 %v4006
        %v4211 = vunpack.c.h.b16 %v4006
        %v4212 = vunpack.c.l.b16 %v4007
        %v4213 = vunpack.c.h.b16 %v4007
        %v4214 = vunpack.c.l.b16 %v4008
        %v4215 = vunpack.c.h.b16 %v4008
        %v4216 = vunpack.c.l.b16 %v4009
        %v4217 = vunpack.c.h.b16 %v4009
        %v4218 = vunpack.c.l.b16 %v4010
        %v4219 = vunpack.c.h.b16 %v4010
        %v4220 = vunpack.c.l.b16 %v4011
        %v4221 = vunpack.c.h.b16 %v4011
        %v4222 = vunpack.c.l.b16 %v4012
        %v4223 = vunpack.c.h.b16 %v4012
        %v4224 = vunpack.c.l.b16 %v4013
        %v4225 = vunpack.c.h.b16 %v4013
        %v4226 = vunpack.c.l.b16 %v4014
        %v4227 = vunpack.c.h.b16 %v4014
        %v4228 = vunpack.c.l.b16 %v4015
        %v4229 = vunpack.c.h.b16 %v4015
        %v4230 = vunpack.c.l.b16 %v4016
        %v4231 = vunpack.c.h.b16 %v4016
        %v4232 = vunpack.c.l.b16 %v4017
        %v4233 = vunpack.c.h.b16 %v4017
        %v4234 = vpack.c.b16 %v4110, %v4106
        %v4235 = vpack.c.b16 %v4111, %v4107
        %v4236 = vpack.c.b16 %v4112, %v4108
        %v4237 = vpack.c.b16 %v4113, %v4109
        %v4238 = vpack.c.b16 %v4118, %v4114
        %v4239 = vpack.c.b16 %v4119, %v4115
        %v4240 = vpack.c.b16 %v4120, %v4116
        %v4241 = vpack.c.b16 %v4121, %v4117
        %v4242 = vpack.c.b16 %v4126, %v4122
        %v4243 = vpack.c.b16 %v4127, %v4123
        %v4244 = vpack.c.b16 %v4128, %v4124
        %v4245 = vpack.c.b16 %v4129, %v4125
        %v4246 = vpack.c.b16 %v4134, %v4130
        %v4247 = vpack.c.b16 %v4135, %v4131
        %v4248 = vpack.c.b16 %v4136, %v4132
        %v4249 = vpack.c.b16 %v4137, %v4133
        %v4250 = vpack.c.b16 %v4142, %v4138
        %v4251 = vpack.c.b16 %v4143, %v4139
        %v4252 = vpack.c.b16 %v4144, %v4140
        %v4253 = vpack.c.b16 %v4145, %v4141
        %v4254 = vpack.c.b16 %v4150, %v4146
        %v4255 = vpack.c.b16 %v4151, %v4147
        %v4256 = vpack.c.b16 %v4152, %v4148
        %v4257 = vpack.c.b16 %v4153, %v4149
        %v4258 = vpack.c.b16 %v4158, %v4154
        %v4259 = vpack.c.b16 %v4159, %v4155
        %v4260 = vpack.c.b16 %v4160, %v4156
        %v4261 = vpack.c.b16 %v4161, %v4157
        %v4262 = vpack.c.b16 %v4166, %v4162
        %v4263 = vpack.c.b16 %v4167, %v4163
        %v4264 = vpack.c.b16 %v4168, %v4164
        %v4265 = vpack.c.b16 %v4169, %v4165
        %v4266 = vpack.c.b16 %v4174, %v4170
        %v4267 = vpack.c.b16 %v4175, %v4171
        %v4268 = vpack.c.b16 %v4176, %v4172
        %v4269 = vpack.c.b16 %v4177, %v4173
        %v4270 = vpack.c.b16 %v4182, %v4178
        %v4271 = vpack.c.b16 %v4183, %v4179
        %v4272 = vpack.c.b16 %v4184, %v4180
        %v4273 = vpack.c.b16 %v4185, %v4181
        %v4274 = vpack.c.b16 %v4190, %v4186
        %v4275 = vpack.c.b16 %v4191, %v4187
        %v4276 = vpack.c.b16 %v4192, %v4188
        %v4277 = vpack.c.b16 %v4193, %v4189
        %v4278 = vpack.c.b16 %v4198, %v4194
        %v4279 = vpack.c.b16 %v4199, %v4195
        %v4280 = vpack.c.b16 %v4200, %v4196
        %v4281 = vpack.c.b16 %v4201, %v4197
        %v4282 = vpack.c.b16 %v4206, %v4202
        %v4283 = vpack.c.b16 %v4207, %v4203
        %v4284 = vpack.c.b16 %v4208, %v4204
        %v4285 = vpack.c.b16 %v4209, %v4205
        %v4286 = vpack.c.b16 %v4214, %v4210
        %v4287 = vpack.c.b16 %v4215, %v4211
        %v4288 = vpack.c.b16 %v4216, %v4212
        %v4289 = vpack.c.b16 %v4217, %v4213
        %v4290 = vpack.c.b16 %v4222, %v4218
        %v4291 = vpack.c.b16 %v4223, %v4219
        %v4292 = vpack.c.b16 %v4224, %v4220
        %v4293 = vpack.c.b16 %v4225, %v4221
        %v4294 = vpack.c.b16 %v4230, %v4226
        %v4295 = vpack.c.b16 %v4231, %v4227
        %v4296 = vpack.c.b16 %v4232, %v4228
        %v4297 = vpack.c.b16 %v4233, %v4229
        %4362 = vmatprep.subr.bf16.mxu0 %v4263
        %4363 = vmatpush1.bf16.msra.mxu0 %v4262
        %4364 = vmatprep.subr.bf16.mxu0 %v4259
        %4365 = vmatpush1.bf16.msra.mxu0 %v4258
        %4366 = vmatprep.subr.bf16.mxu0 %v4255
        %4367 = vmatpush1.bf16.msra.mxu0 %v4254
        %4368 = vmatprep.subr.bf16.mxu0 %v4251
        %4369 = vmatpush1.bf16.msra.mxu0 %v4250
        %4370 = vmatprep.subr.bf16.mxu0 %v4247
        %4371 = vmatpush1.bf16.msra.mxu0 %v4246
        %4372 = vmatprep.subr.bf16.mxu0 %v4243
        %4373 = vmatpush1.bf16.msra.mxu0 %v4242
        %4374 = vmatprep.subr.bf16.mxu0 %v4239
        %4375 = vmatpush1.bf16.msra.mxu0 %v4238
        %4376 = vmatprep.subr.bf16.mxu0 %v4235
        %4377 = vmatpush1.bf16.msra.mxu0 %v4234
        %4378 = vmatprep.subr.bf16.mxu0 %v4295
        %4379 = vmatpush2.bf16.msra.mxu0 %v4294
        %4380 = vmatprep.subr.bf16.mxu0 %v4291
        %4381 = vmatpush2.bf16.msra.mxu0 %v4290
        %4382 = vmatprep.subr.bf16.mxu0 %v4287
        %4383 = vmatpush2.bf16.msra.mxu0 %v4286
        %4384 = vmatprep.subr.bf16.mxu0 %v4283
        %4385 = vmatpush2.bf16.msra.mxu0 %v4282
        %4386 = vmatprep.subr.bf16.mxu0 %v4279
        %4387 = vmatpush2.bf16.msra.mxu0 %v4278
        %4388 = vmatprep.subr.bf16.mxu0 %v4275
        %4389 = vmatpush2.bf16.msra.mxu0 %v4274
        %4390 = vmatprep.subr.bf16.mxu0 %v4271
        %4391 = vmatpush2.bf16.msra.mxu0 %v4270
        %4392 = vmatprep.subr.bf16.mxu0 %v4267
        %4393 = vmatpush2.bf16.msra.mxu0 %v4266
        %4394 = vmatprep.mubr.bf16.mxu0 %v4019
        %4395 = vmatmul.mubr.bf16.gmra.mxu0 %v4018
        %v4396 = vpop.f32.mrf.mxu0
        %v4397 = vadd.f32 %v4025, %v4396
        %v4398 = vpop.f32.mrf.mxu0
        %v4399 = vadd.f32 %v4029, %v4398
        %v4400 = vpop.f32.mrf.mxu0
        %v4401 = vpop.f32.mrf.mxu0
        %4402 = vdwg.mxu0
        %4403 = vmatprep.subr.bf16.mxu0 %v4265
        %4404 = vmatpush1.bf16.msra.mxu0 %v4264
        %4405 = vmatprep.subr.bf16.mxu0 %v4261
        %4406 = vmatpush1.bf16.msra.mxu0 %v4260
        %4407 = vmatprep.subr.bf16.mxu0 %v4257
        %4408 = vmatpush1.bf16.msra.mxu0 %v4256
        %4409 = vmatprep.subr.bf16.mxu0 %v4253
        %4410 = vmatpush1.bf16.msra.mxu0 %v4252
        %4411 = vmatprep.subr.bf16.mxu0 %v4249
        %4412 = vmatpush1.bf16.msra.mxu0 %v4248
        %4413 = vmatprep.subr.bf16.mxu0 %v4245
        %4414 = vmatpush1.bf16.msra.mxu0 %v4244
        %4415 = vmatprep.subr.bf16.mxu0 %v4241
        %4416 = vmatpush1.bf16.msra.mxu0 %v4240
        %4417 = vmatprep.subr.bf16.mxu0 %v4237
        %4418 = vmatpush1.bf16.msra.mxu0 %v4236
        %4419 = vmatprep.subr.bf16.mxu0 %v4297
        %4420 = vmatpush2.bf16.msra.mxu0 %v4296
        %4421 = vmatprep.subr.bf16.mxu0 %v4293
        %4422 = vmatpush2.bf16.msra.mxu0 %v4292
        %4423 = vmatprep.subr.bf16.mxu0 %v4289
        %4424 = vmatpush2.bf16.msra.mxu0 %v4288
        %4425 = vmatprep.subr.bf16.mxu0 %v4285
        %4426 = vmatpush2.bf16.msra.mxu0 %v4284
        %4427 = vmatprep.subr.bf16.mxu0 %v4281
        %4428 = vmatpush2.bf16.msra.mxu0 %v4280
        %4429 = vmatprep.subr.bf16.mxu0 %v4277
        %4430 = vmatpush2.bf16.msra.mxu0 %v4276
        %4431 = vmatprep.subr.bf16.mxu0 %v4273
        %4432 = vmatpush2.bf16.msra.mxu0 %v4272
        %4433 = vmatprep.subr.bf16.mxu0 %v4269
        %4434 = vmatpush2.bf16.msra.mxu0 %v4268
        %4435 = vmatprep.mubr.bf16.mxu0 %v4019
        %4436 = vmatmul.mubr.bf16.gmra.mxu0 %v4018
        %v4437 = vpop.f32.mrf.mxu0
        %v4438 = vadd.f32 %v4033, %v4437
        %v4439 = vpop.f32.mrf.mxu0
        %v4440 = vadd.f32 %v4037, %v4439
        %v4441 = vpop.f32.mrf.mxu0
        %v4442 = vpop.f32.mrf.mxu0
        %4443 = vdwg.mxu0
        %v4444 = vmax.f32 %v4397, 0.0
        %v4445 = vmax.f32 %v4399, 0.0
        %v4446 = vmax.f32 %v4438, 0.0
        %v4447 = vmax.f32 %v4440, 0.0
        %v4448 = vld [vmem:[%s1234] sm:$0xff]
        %v4449 = vld [vmem:[%s1234 + $0x8] sm:$0xff]
        %v4450 = vld [vmem:[%s1234 + $0x10] sm:$0xff]
        %v4451 = vld [vmem:[%s1234 + $0x18] sm:$0xff]
        %v4452 = vld [vmem:[%s1234 + $0x20] sm:$0xff]
        %v4453 = vld [vmem:[%s1234 + $0x28] sm:$0xff]
        %v4454 = vld [vmem:[%s1234 + $0x30] sm:$0xff]
        %v4455 = vld [vmem:[%s1234 + $0x38] sm:$0xff]
        %v4456 = vld [vmem:[%s1234 + $0x40] sm:$0xff]
        %v4457 = vld [vmem:[%s1234 + $0x48] sm:$0xff]
        %v4458 = vld [vmem:[%s1234 + $0x50] sm:$0xff]
        %v4459 = vld [vmem:[%s1234 + $0x58] sm:$0xff]
        %v4460 = vld [vmem:[%s1234 + $0x60] sm:$0xff]
        %v4461 = vld [vmem:[%s1234 + $0x68] sm:$0xff]
        %v4462 = vld [vmem:[%s1234 + $0x70] sm:$0xff]
        %v4463 = vld [vmem:[%s1234 + $0x78] sm:$0xff]
        %v4464 = vld [vmem:[%s1234 + $0x80] sm:$0xff]
        %v4465 = vld [vmem:[%s1234 + $0x88] sm:$0xff]
        %v4466 = vld [vmem:[%s1234 + $0x90] sm:$0xff]
        %v4467 = vld [vmem:[%s1234 + $0x98] sm:$0xff]
        %v4468 = vld [vmem:[%s1234 + $0xa0] sm:$0xff]
        %v4469 = vld [vmem:[%s1234 + $0xa8] sm:$0xff]
        %v4470 = vld [vmem:[%s1234 + $0xb0] sm:$0xff]
        %v4471 = vld [vmem:[%s1234 + $0xb8] sm:$0xff]
        %v4472 = vld [vmem:[%s1234 + $0xc0] sm:$0xff]
        %v4473 = vld [vmem:[%s1234 + $0xc8] sm:$0xff]
        %v4474 = vld [vmem:[%s1234 + $0xd0] sm:$0xff]
        %v4475 = vld [vmem:[%s1234 + $0xd8] sm:$0xff]
        %v4476 = vld [vmem:[%s1234 + $0xe0] sm:$0xff]
        %v4477 = vld [vmem:[%s1234 + $0xe8] sm:$0xff]
        %v4478 = vld [vmem:[%s1234 + $0xf0] sm:$0xff]
        %v4479 = vld [vmem:[%s1234 + $0xf8] sm:$0xff]
        %v4480 = vld [vmem:[%s1234 + $0x100] sm:$0xff]
        %v4481 = vld [vmem:[%s1234 + $0x108] sm:$0xff]
        %v4482 = vld [vmem:[%s1234 + $0x110] sm:$0xff]
        %v4483 = vld [vmem:[%s1234 + $0x118] sm:$0xff]
        %v4484 = vld [vmem:[%s1234 + $0x120] sm:$0xff]
        %v4485 = vld [vmem:[%s1234 + $0x128] sm:$0xff]
        %v4486 = vld [vmem:[%s1234 + $0x130] sm:$0xff]
        %v4487 = vld [vmem:[%s1234 + $0x138] sm:$0xff]
        %v4488 = vld [vmem:[%s1234 + $0x140] sm:$0xff]
        %v4489 = vld [vmem:[%s1234 + $0x148] sm:$0xff]
        %v4490 = vld [vmem:[%s1234 + $0x150] sm:$0xff]
        %v4491 = vld [vmem:[%s1234 + $0x158] sm:$0xff]
        %v4492 = vld [vmem:[%s1234 + $0x160] sm:$0xff]
        %v4493 = vld [vmem:[%s1234 + $0x168] sm:$0xff]
        %v4494 = vld [vmem:[%s1234 + $0x170] sm:$0xff]
        %v4495 = vld [vmem:[%s1234 + $0x178] sm:$0xff]
        %v4496 = vld [vmem:[%s1234 + $0x180] sm:$0xff]
        %v4497 = vld [vmem:[%s1234 + $0x188] sm:$0xff]
        %v4498 = vld [vmem:[%s1234 + $0x190] sm:$0xff]
        %v4499 = vld [vmem:[%s1234 + $0x198] sm:$0xff]
        %v4500 = vld [vmem:[%s1234 + $0x1a0] sm:$0xff]
        %v4501 = vld [vmem:[%s1234 + $0x1a8] sm:$0xff]
        %v4502 = vld [vmem:[%s1234 + $0x1b0] sm:$0xff]
        %v4503 = vld [vmem:[%s1234 + $0x1b8] sm:$0xff]
        %v4504 = vld [vmem:[%s1234 + $0x1c0] sm:$0xff]
        %v4505 = vld [vmem:[%s1234 + $0x1c8] sm:$0xff]
        %v4506 = vld [vmem:[%s1234 + $0x1d0] sm:$0xff]
        %v4507 = vld [vmem:[%s1234 + $0x1d8] sm:$0xff]
        %v4508 = vld [vmem:[%s1234 + $0x1e0] sm:$0xff]
        %v4509 = vld [vmem:[%s1234 + $0x1e8] sm:$0xff]
        %v4510 = vld [vmem:[%s1234 + $0x1f0] sm:$0xff]
        %v4511 = vld [vmem:[%s1234 + $0x1f8] sm:$0xff]
        %v4512 = vpack.c.bf16 %v4444, %v4444
        %v4513 = vpack.c.bf16 %v4445, %v4445
        %v4514 = vpack.c.bf16 %v4446, %v4446
        %v4515 = vpack.c.bf16 %v4447, %v4447
        %v4516 = vld [vmem:[%s1450] sm:$0x3]
        %v4518 = vlaneseq
        %v4519 = vshrl.u32 %v4518, 7
        %v4520 = vsub.s32 0, %v4519
        %v4521 = vrot.slane %v4516, %v4520
        %v4522 = vlaneseq
        %v4523 = vshrl.u32 %v4522, 7
        %v4524 = vsub.s32 1, %v4523
        %v4525 = vrot.slane %v4516, %v4524
        %v4592 = vunpack.c.l.b16 %v4448
        %v4593 = vunpack.c.h.b16 %v4448
        %v4594 = vunpack.c.l.b16 %v4449
        %v4595 = vunpack.c.h.b16 %v4449
        %v4596 = vunpack.c.l.b16 %v4450
        %v4597 = vunpack.c.h.b16 %v4450
        %v4598 = vunpack.c.l.b16 %v4451
        %v4599 = vunpack.c.h.b16 %v4451
        %v4600 = vunpack.c.l.b16 %v4452
        %v4601 = vunpack.c.h.b16 %v4452
        %v4602 = vunpack.c.l.b16 %v4453
        %v4603 = vunpack.c.h.b16 %v4453
        %v4604 = vunpack.c.l.b16 %v4454
        %v4605 = vunpack.c.h.b16 %v4454
        %v4606 = vunpack.c.l.b16 %v4455
        %v4607 = vunpack.c.h.b16 %v4455
        %v4608 = vunpack.c.l.b16 %v4456
        %v4609 = vunpack.c.h.b16 %v4456
        %v4610 = vunpack.c.l.b16 %v4457
        %v4611 = vunpack.c.h.b16 %v4457
        %v4612 = vunpack.c.l.b16 %v4458
        %v4613 = vunpack.c.h.b16 %v4458
        %v4614 = vunpack.c.l.b16 %v4459
        %v4615 = vunpack.c.h.b16 %v4459
        %v4616 = vunpack.c.l.b16 %v4460
        %v4617 = vunpack.c.h.b16 %v4460
        %v4618 = vunpack.c.l.b16 %v4461
        %v4619 = vunpack.c.h.b16 %v4461
        %v4620 = vunpack.c.l.b16 %v4462
        %v4621 = vunpack.c.h.b16 %v4462
        %v4622 = vunpack.c.l.b16 %v4463
        %v4623 = vunpack.c.h.b16 %v4463
        %v4624 = vunpack.c.l.b16 %v4464
        %v4625 = vunpack.c.h.b16 %v4464
        %v4626 = vunpack.c.l.b16 %v4465
        %v4627 = vunpack.c.h.b16 %v4465
        %v4628 = vunpack.c.l.b16 %v4466
        %v4629 = vunpack.c.h.b16 %v4466
        %v4630 = vunpack.c.l.b16 %v4467
        %v4631 = vunpack.c.h.b16 %v4467
        %v4632 = vunpack.c.l.b16 %v4468
        %v4633 = vunpack.c.h.b16 %v4468
        %v4634 = vunpack.c.l.b16 %v4469
        %v4635 = vunpack.c.h.b16 %v4469
        %v4636 = vunpack.c.l.b16 %v4470
        %v4637 = vunpack.c.h.b16 %v4470
        %v4638 = vunpack.c.l.b16 %v4471
        %v4639 = vunpack.c.h.b16 %v4471
        %v4640 = vunpack.c.l.b16 %v4472
        %v4641 = vunpack.c.h.b16 %v4472
        %v4642 = vunpack.c.l.b16 %v4473
        %v4643 = vunpack.c.h.b16 %v4473
        %v4644 = vunpack.c.l.b16 %v4474
        %v4645 = vunpack.c.h.b16 %v4474
        %v4646 = vunpack.c.l.b16 %v4475
        %v4647 = vunpack.c.h.b16 %v4475
        %v4648 = vunpack.c.l.b16 %v4476
        %v4649 = vunpack.c.h.b16 %v4476
        %v4650 = vunpack.c.l.b16 %v4477
        %v4651 = vunpack.c.h.b16 %v4477
        %v4652 = vunpack.c.l.b16 %v4478
        %v4653 = vunpack.c.h.b16 %v4478
        %v4654 = vunpack.c.l.b16 %v4479
        %v4655 = vunpack.c.h.b16 %v4479
        %v4656 = vunpack.c.l.b16 %v4480
        %v4657 = vunpack.c.h.b16 %v4480
        %v4658 = vunpack.c.l.b16 %v4481
        %v4659 = vunpack.c.h.b16 %v4481
        %v4660 = vunpack.c.l.b16 %v4482
        %v4661 = vunpack.c.h.b16 %v4482
        %v4662 = vunpack.c.l.b16 %v4483
        %v4663 = vunpack.c.h.b16 %v4483
        %v4664 = vunpack.c.l.b16 %v4484
        %v4665 = vunpack.c.h.b16 %v4484
        %v4666 = vunpack.c.l.b16 %v4485
        %v4667 = vunpack.c.h.b16 %v4485
        %v4668 = vunpack.c.l.b16 %v4486
        %v4669 = vunpack.c.h.b16 %v4486
        %v4670 = vunpack.c.l.b16 %v4487
        %v4671 = vunpack.c.h.b16 %v4487
        %v4672 = vunpack.c.l.b16 %v4488
        %v4673 = vunpack.c.h.b16 %v4488
        %v4674 = vunpack.c.l.b16 %v4489
        %v4675 = vunpack.c.h.b16 %v4489
        %v4676 = vunpack.c.l.b16 %v4490
        %v4677 = vunpack.c.h.b16 %v4490
        %v4678 = vunpack.c.l.b16 %v4491
        %v4679 = vunpack.c.h.b16 %v4491
        %v4680 = vunpack.c.l.b16 %v4492
        %v4681 = vunpack.c.h.b16 %v4492
        %v4682 = vunpack.c.l.b16 %v4493
        %v4683 = vunpack.c.h.b16 %v4493
        %v4684 = vunpack.c.l.b16 %v4494
        %v4685 = vunpack.c.h.b16 %v4494
        %v4686 = vunpack.c.l.b16 %v4495
        %v4687 = vunpack.c.h.b16 %v4495
        %v4688 = vunpack.c.l.b16 %v4496
        %v4689 = vunpack.c.h.b16 %v4496
        %v4690 = vunpack.c.l.b16 %v4497
        %v4691 = vunpack.c.h.b16 %v4497
        %v4692 = vunpack.c.l.b16 %v4498
        %v4693 = vunpack.c.h.b16 %v4498
        %v4694 = vunpack.c.l.b16 %v4499
        %v4695 = vunpack.c.h.b16 %v4499
        %v4696 = vunpack.c.l.b16 %v4500
        %v4697 = vunpack.c.h.b16 %v4500
        %v4698 = vunpack.c.l.b16 %v4501
        %v4699 = vunpack.c.h.b16 %v4501
        %v4700 = vunpack.c.l.b16 %v4502
        %v4701 = vunpack.c.h.b16 %v4502
        %v4702 = vunpack.c.l.b16 %v4503
        %v4703 = vunpack.c.h.b16 %v4503
        %v4704 = vunpack.c.l.b16 %v4504
        %v4705 = vunpack.c.h.b16 %v4504
        %v4706 = vunpack.c.l.b16 %v4505
        %v4707 = vunpack.c.h.b16 %v4505
        %v4708 = vunpack.c.l.b16 %v4506
        %v4709 = vunpack.c.h.b16 %v4506
        %v4710 = vunpack.c.l.b16 %v4507
        %v4711 = vunpack.c.h.b16 %v4507
        %v4712 = vunpack.c.l.b16 %v4508
        %v4713 = vunpack.c.h.b16 %v4508
        %v4714 = vunpack.c.l.b16 %v4509
        %v4715 = vunpack.c.h.b16 %v4509
        %v4716 = vunpack.c.l.b16 %v4510
        %v4717 = vunpack.c.h.b16 %v4510
        %v4718 = vunpack.c.l.b16 %v4511
        %v4719 = vunpack.c.h.b16 %v4511
        %v4720 = vpack.c.b16 %v4594, %v4592
        %v4721 = vpack.c.b16 %v4595, %v4593
        %v4722 = vpack.c.b16 %v4598, %v4596
        %v4723 = vpack.c.b16 %v4599, %v4597
        %v4724 = vpack.c.b16 %v4602, %v4600
        %v4725 = vpack.c.b16 %v4603, %v4601
        %v4726 = vpack.c.b16 %v4606, %v4604
        %v4727 = vpack.c.b16 %v4607, %v4605
        %v4728 = vpack.c.b16 %v4610, %v4608
        %v4729 = vpack.c.b16 %v4611, %v4609
        %v4730 = vpack.c.b16 %v4614, %v4612
        %v4731 = vpack.c.b16 %v4615, %v4613
        %v4732 = vpack.c.b16 %v4618, %v4616
        %v4733 = vpack.c.b16 %v4619, %v4617
        %v4734 = vpack.c.b16 %v4622, %v4620
        %v4735 = vpack.c.b16 %v4623, %v4621
        %v4736 = vpack.c.b16 %v4626, %v4624
        %v4737 = vpack.c.b16 %v4627, %v4625
        %v4738 = vpack.c.b16 %v4630, %v4628
        %v4739 = vpack.c.b16 %v4631, %v4629
        %v4740 = vpack.c.b16 %v4634, %v4632
        %v4741 = vpack.c.b16 %v4635, %v4633
        %v4742 = vpack.c.b16 %v4638, %v4636
        %v4743 = vpack.c.b16 %v4639, %v4637
        %v4744 = vpack.c.b16 %v4642, %v4640
        %v4745 = vpack.c.b16 %v4643, %v4641
        %v4746 = vpack.c.b16 %v4646, %v4644
        %v4747 = vpack.c.b16 %v4647, %v4645
        %v4748 = vpack.c.b16 %v4650, %v4648
        %v4749 = vpack.c.b16 %v4651, %v4649
        %v4750 = vpack.c.b16 %v4654, %v4652
        %v4751 = vpack.c.b16 %v4655, %v4653
        %v4752 = vpack.c.b16 %v4658, %v4656
        %v4753 = vpack.c.b16 %v4659, %v4657
        %v4754 = vpack.c.b16 %v4662, %v4660
        %v4755 = vpack.c.b16 %v4663, %v4661
        %v4756 = vpack.c.b16 %v4666, %v4664
        %v4757 = vpack.c.b16 %v4667, %v4665
        %v4758 = vpack.c.b16 %v4670, %v4668
        %v4759 = vpack.c.b16 %v4671, %v4669
        %v4760 = vpack.c.b16 %v4674, %v4672
        %v4761 = vpack.c.b16 %v4675, %v4673
        %v4762 = vpack.c.b16 %v4678, %v4676
        %v4763 = vpack.c.b16 %v4679, %v4677
        %v4764 = vpack.c.b16 %v4682, %v4680
        %v4765 = vpack.c.b16 %v4683, %v4681
        %v4766 = vpack.c.b16 %v4686, %v4684
        %v4767 = vpack.c.b16 %v4687, %v4685
        %v4768 = vpack.c.b16 %v4690, %v4688
        %v4769 = vpack.c.b16 %v4691, %v4689
        %v4770 = vpack.c.b16 %v4694, %v4692
        %v4771 = vpack.c.b16 %v4695, %v4693
        %v4772 = vpack.c.b16 %v4698, %v4696
        %v4773 = vpack.c.b16 %v4699, %v4697
        %v4774 = vpack.c.b16 %v4702, %v4700
        %v4775 = vpack.c.b16 %v4703, %v4701
        %v4776 = vpack.c.b16 %v4706, %v4704
        %v4777 = vpack.c.b16 %v4707, %v4705
        %v4778 = vpack.c.b16 %v4710, %v4708
        %v4779 = vpack.c.b16 %v4711, %v4709
        %v4780 = vpack.c.b16 %v4714, %v4712
        %v4781 = vpack.c.b16 %v4715, %v4713
        %v4782 = vpack.c.b16 %v4718, %v4716
        %v4783 = vpack.c.b16 %v4719, %v4717
        %4848 = vmatprep.subr.bf16.mxu0 %v4735
        %4849 = vmatpush1.bf16.msra.mxu0 %v4734
        %4850 = vmatprep.subr.bf16.mxu0 %v4733
        %4851 = vmatpush1.bf16.msra.mxu0 %v4732
        %4852 = vmatprep.subr.bf16.mxu0 %v4731
        %4853 = vmatpush1.bf16.msra.mxu0 %v4730
        %4854 = vmatprep.subr.bf16.mxu0 %v4729
        %4855 = vmatpush1.bf16.msra.mxu0 %v4728
        %4856 = vmatprep.subr.bf16.mxu0 %v4727
        %4857 = vmatpush1.bf16.msra.mxu0 %v4726
        %4858 = vmatprep.subr.bf16.mxu0 %v4725
        %4859 = vmatpush1.bf16.msra.mxu0 %v4724
        %4860 = vmatprep.subr.bf16.mxu0 %v4723
        %4861 = vmatpush1.bf16.msra.mxu0 %v4722
        %4862 = vmatprep.subr.bf16.mxu0 %v4721
        %4863 = vmatpush1.bf16.msra.mxu0 %v4720
        %4864 = vmatprep.subr.bf16.mxu0 %v4751
        %4865 = vmatpush2.bf16.msra.mxu0 %v4750
        %4866 = vmatprep.subr.bf16.mxu0 %v4749
        %4867 = vmatpush2.bf16.msra.mxu0 %v4748
        %4868 = vmatprep.subr.bf16.mxu0 %v4747
        %4869 = vmatpush2.bf16.msra.mxu0 %v4746
        %4870 = vmatprep.subr.bf16.mxu0 %v4745
        %4871 = vmatpush2.bf16.msra.mxu0 %v4744
        %4872 = vmatprep.subr.bf16.mxu0 %v4743
        %4873 = vmatpush2.bf16.msra.mxu0 %v4742
        %4874 = vmatprep.subr.bf16.mxu0 %v4741
        %4875 = vmatpush2.bf16.msra.mxu0 %v4740
        %4876 = vmatprep.subr.bf16.mxu0 %v4739
        %4877 = vmatpush2.bf16.msra.mxu0 %v4738
        %4878 = vmatprep.subr.bf16.mxu0 %v4737
        %4879 = vmatpush2.bf16.msra.mxu0 %v4736
        %4880 = vmatprep.mubr.bf16.mxu0 %v4513
        %4881 = vmatmul.mubr.bf16.gmra.mxu0 %v4512
        %v4882 = vpop.f32.mrf.mxu0
        %v4883 = vadd.f32 %v4521, %v4882
        %v4884 = vpop.f32.mrf.mxu0
        %v4885 = vadd.f32 %v4525, %v4884
        %v4886 = vpop.f32.mrf.mxu0
        %v4887 = vpop.f32.mrf.mxu0
        %4888 = vdwg.mxu0
        %4889 = vmatprep.subr.bf16.mxu0 %v4767
        %4890 = vmatpush1.bf16.msra.mxu0 %v4766
        %4891 = vmatprep.subr.bf16.mxu0 %v4765
        %4892 = vmatpush1.bf16.msra.mxu0 %v4764
        %4893 = vmatprep.subr.bf16.mxu0 %v4763
        %4894 = vmatpush1.bf16.msra.mxu0 %v4762
        %4895 = vmatprep.subr.bf16.mxu0 %v4761
        %4896 = vmatpush1.bf16.msra.mxu0 %v4760
        %4897 = vmatprep.subr.bf16.mxu0 %v4759
        %4898 = vmatpush1.bf16.msra.mxu0 %v4758
        %4899 = vmatprep.subr.bf16.mxu0 %v4757
        %4900 = vmatpush1.bf16.msra.mxu0 %v4756
        %4901 = vmatprep.subr.bf16.mxu0 %v4755
        %4902 = vmatpush1.bf16.msra.mxu0 %v4754
        %4903 = vmatprep.subr.bf16.mxu0 %v4753
        %4904 = vmatpush1.bf16.msra.mxu0 %v4752
        %4905 = vmatprep.subr.bf16.mxu0 %v4783
        %4906 = vmatpush2.bf16.msra.mxu0 %v4782
        %4907 = vmatprep.subr.bf16.mxu0 %v4781
        %4908 = vmatpush2.bf16.msra.mxu0 %v4780
        %4909 = vmatprep.subr.bf16.mxu0 %v4779
        %4910 = vmatpush2.bf16.msra.mxu0 %v4778
        %4911 = vmatprep.subr.bf16.mxu0 %v4777
        %4912 = vmatpush2.bf16.msra.mxu0 %v4776
        %4913 = vmatprep.subr.bf16.mxu0 %v4775
        %4914 = vmatpush2.bf16.msra.mxu0 %v4774
        %4915 = vmatprep.subr.bf16.mxu0 %v4773
        %4916 = vmatpush2.bf16.msra.mxu0 %v4772
        %4917 = vmatprep.subr.bf16.mxu0 %v4771
        %4918 = vmatpush2.bf16.msra.mxu0 %v4770
        %4919 = vmatprep.subr.bf16.mxu0 %v4769
        %4920 = vmatpush2.bf16.msra.mxu0 %v4768
        %4921 = vmatprep.mubr.bf16.mxu0 %v4515
        %4922 = vmatmul.mubr.bf16.gmra.mxu0 %v4514
        %v4923 = vpop.f32.mrf.mxu0
        %v4924 = vadd.f32 %v4883, %v4923
        %v4925 = vpop.f32.mrf.mxu0
        %v4926 = vadd.f32 %v4885, %v4925
        %v4927 = vpop.f32.mrf.mxu0
        %v4928 = vpop.f32.mrf.mxu0
        %4929 = vdwg.mxu0
        %v4930 = vadd.f32 %v3952, %v4924
        %v4931 = vadd.f32 %v3953, %v4926
        %v4932 = vld [vmem:[%s1261] sm:$0x3]
        %v4933 = vld [vmem:[%s1462] sm:$0x3]
        %v4934 = vadd.f32 %v4930, %v4931
        %4935 = vadd.xlane.f32.xlu0 %v4934
        %v4936 = vpop.xlane.xlu0 %4935
        %v4937 = vmul.f32 %v4936, %v2671
        %v4938 = vsub.f32 %v4930, %v4937
        %v4939 = vsub.f32 %v4931, %v4937
        %v4940 = vmul.f32 %v4938, %v4938
        %v4941 = vmul.f32 %v4939, %v4939
        %v4942 = vadd.f32 %v4940, %v4941
        %4943 = vadd.xlane.f32.xlu0 %v4942
        %v4944 = vpop.xlane.xlu0 %4943
        %v4945 = vmul.f32 %v4944, %v2671
        %v4946 = vadd.f32 %v4945, 1e-05
        %v4947 = vrsqrt.pop %v4946
        %v4948 = vmul.f32 %v4938, %v4947
        %v4949 = vmul.f32 %v4939, %v4947
        %v4951 = vlaneseq
        %v4952 = vshrl.u32 %v4951, 7
        %v4953 = vsub.s32 0, %v4952
        %v4954 = vrot.slane %v4932, %v4953
        %v4955 = vlaneseq
        %v4956 = vshrl.u32 %v4955, 7
        %v4957 = vsub.s32 1, %v4956
        %v4958 = vrot.slane %v4932, %v4957
        %v4961 = vmul.f32 %v4948, %v4954
        %v4962 = vmul.f32 %v4949, %v4958
        %v4964 = vlaneseq
        %v4965 = vshrl.u32 %v4964, 7
        %v4966 = vsub.s32 0, %v4965
        %v4967 = vrot.slane %v4933, %v4966
        %v4968 = vlaneseq
        %v4969 = vshrl.u32 %v4968, 7
        %v4970 = vsub.s32 1, %v4969
        %v4971 = vrot.slane %v4933, %v4970
        %v4974 = vadd.f32 %v4961, %v4967
        %v4975 = vadd.f32 %v4962, %v4971
        %4976 = vst [vmem:[%s1431] sm:$0xff] %v4974
        %4977 = vst [vmem:[%s1431 + $0x8] sm:$0xff] %v4975
        %s4978 = sand.u32 %s709, 1
        %s4979 = scalar_lea.sflag [#allocation4], %s4978
        %s4980 = sand.u32 %s709, 1
        %s4981 = smul.addr %s4980, 16
        %s4982 = scalar_lea.vmem [#allocation28], %s4981
        // Predicated region
        $region185: #{tpu_custom_call.1} parent=115 // pred_check
          %p4983 = pneg %p719
        $region186: #{tpu_custom_call.1} parent=115 // pred_check_branch
          %4985 = sbr.rel (%p4983) target = $region188
        $region187: #{tpu_custom_call.1} parent=115 // pred_region
          %s4987 = ssub.s32 256, 256
          %4988 = vsyncadd %s4979, %s4987
          %s4989 = smul.addr %s69, 2
          %s4990 = smul.addr %s4989, 128
          %s4991 = scalar_lea.hbm %s24, %s4990
          %s4993 = sshll.u32 %s4982, 4
          %s4994 = int_to_ptr.vmem [resolvable:$true] %s4993
          %4996 = dma.vmem_to_hbm [thread:$0]  %s4994, 256, %s4991, %s4979
        $region188: #{tpu_custom_call.1} parent=115 // pred_fallthru
          _
      $region116: #{tpu_custom_call.1} parent=5 // pred_fallthru
        _
      %p4997 = scmp.le.s32.totalorder 2, %s60
      // Predicated region
      $region189: #{tpu_custom_call.1} parent=5 // pred_check
        %p4998 = pneg %p4997
      $region190: #{tpu_custom_call.1} parent=5 // pred_check_branch
        %5000 = sbr.rel (%p4998) target = $region192
      $region191: #{tpu_custom_call.1} parent=5 // pred_region
        %s5001 = ssub.s32 %s60, 2
        // Predicated region
        $region193: #{tpu_custom_call.1} parent=191 // pred_check
          %p5002 = pneg %p725
        $region194: #{tpu_custom_call.1} parent=191 // pred_check_branch
          %5004 = sbr.rel (%p5002) target = $region196
        $region195: #{tpu_custom_call.1} parent=191 // pred_region
          %s5005 = sand.u32 %s710, 1
          %s5006 = scalar_lea.sflag [#allocation4], %s5005
          %s5007 = sand.u32 %s710, 1
          %s5008 = smul.addr %s5007, 16
          %s5009 = scalar_lea.vmem [#allocation28], %s5008
          %5010 = dma.done %s5006, 256
        $region196: #{tpu_custom_call.1} parent=191 // pred_fallthru
          _
      $region192: #{tpu_custom_call.1} parent=5 // pred_fallthru
        _
    $region6: #{tpu_custom_call.1} parent=1 // loop_footer
      %s64 = sadd.s32 1, %s60
    $region7: #{tpu_custom_call.1} parent=1 // loop_footer_branch
      %59 = sbr.rel target = $region3
    $region8: #{tpu_custom_call.1} parent=1 // loop_exit
      _
    %5011 = vsyncpa [#allocation3], 1
    %s5012 = scalar_lea.sflag [#allocation3], 1
    %5013 = vsyncpa %s5012, 1
    %5014 = vsyncpa [#allocation6], 1
    %s5015 = scalar_lea.sflag [#allocation6], 1
    %5016 = vsyncpa %s5015, 1
    %5017 = vsyncpa [#allocation9], 1
    %s5018 = scalar_lea.sflag [#allocation9], 1
    %5019 = vsyncpa %s5018, 1
    %5020 = vsyncpa [#allocation12], 1
    %s5021 = scalar_lea.sflag [#allocation12], 1
    %5022 = vsyncpa %s5021, 1
    %5023 = vsyncpa [#allocation15], 1
    %s5024 = scalar_lea.sflag [#allocation15], 1
    %5025 = vsyncpa %s5024, 1
    %5026 = vsyncpa [#allocation18], 1
    %s5027 = scalar_lea.sflag [#allocation18], 1
    %5028 = vsyncpa %s5027, 1
    %5029 = vsyncpa [#allocation21], 1
    %s5030 = scalar_lea.sflag [#allocation21], 1
    %5031 = vsyncpa %s5030, 1
    %5032 = vsyncpa [#allocation24], 1
    %s5033 = scalar_lea.sflag [#allocation24], 1
    %5034 = vsyncpa %s5033, 1
    %5035 = vsyncpa [#allocation27], 1
    %s5036 = scalar_lea.sflag [#allocation27], 1
    %5037 = vsyncpa %s5036, 1
    %5038 = vsyncpa [#allocation4], 1
    %s5039 = scalar_lea.sflag [#allocation4], 1
    %5040 = vsyncpa %s5039, 1

</llo_original>
